<compile_context>
chip_gen: v5e
topology: v5e:2x2
jax: 0.10.0
libtpu: 0.0.40
codegen_flags: <defaults>
</compile_context>

<pallas_src>
import numpy as np
import jax
import jax.numpy as jnp
from jax import lax
from jax.experimental import pallas as pl
from jax.experimental.pallas import tpu as pltpu

# ----- model hyper-parameters (from the PyTorch module __init__) -----------------
C1, K1, S1 = 32, 9, 2       # conv    : Conv1d(1, 32, kernel_size=9, stride=2)
P2K, P2S = 5, 2             # maxpool2: MaxPool1d(5, stride=2)
C2, K2 = 64, 5              # conv2   : Conv1d(32, 64, kernel_size=5)
P3K, P3S = 3, 3             # maxpool3: MaxPool1d(3)  (stride defaults to kernel)

TB = 8                      # pairs per grid step; G = 2*TB keeps every shift tile-aligned


def init_params(key):
    ks = jax.random.split(key, 6)
    w1 = jax.random.normal(ks[0], (C1, 1, K1), jnp.float32) * 0.2
    b1 = jax.random.normal(ks[1], (C1,), jnp.float32) * 0.1
    w2 = jax.random.normal(ks[2], (C2, C1, K2), jnp.float32) * 0.05
    b2 = jax.random.normal(ks[3], (C2,), jnp.float32) * 0.1
    w3 = jax.random.normal(ks[4], (1, C2, 1), jnp.float32) * 0.2
    b3 = jax.random.normal(ks[5], (1,), jnp.float32) * 0.1
    return w1, b1, w2, b2, w3, b3


def prepare_params(params):
    """One-time weight preprocessing (hoisted out of the per-call path).

    Dot operands are pre-cast to bf16 (matching the MXU's default single-pass
    precision); biases and the 1x1 embeder weight stay f32 since every elementwise
    op in the kernel runs in f32.
    """
    w1, b1, w2, b2, w3, b3 = params
    w1d = w1[:, 0, :].T.astype(jnp.bfloat16)                          # (K1, C1)
    w2d = (jnp.transpose(w2, (2, 1, 0)).reshape(K2 * C1, C2)
           .astype(jnp.bfloat16))                                     # (K2*C1, C2)
    w3d = w3[:, :, 0].reshape(1, C2)                                  # (1, C2) f32
    # b3 cancels in the pairwise difference a_0 - a_1, so the kernel never needs it.
    return w1d, b1.reshape(1, C1), w2d, b2.reshape(1, C2), w3d


@jax.jit
def cnn_rank_forward(x, prep):
    """Pallas implementation of CNNRankModel.forward.  x: (B, 2, L) f32 -> (B,) f32."""
    w1d, b1r, w2d, b2r, w3r = prep
    f32 = jnp.float32
    B, two, L = x.shape
    assert two == 2

    # static per-stage lengths
    L1 = (L - K1) // S1 + 1                 # after conv1 (stride 2)
    L2 = (L1 - P2K) // P2S + 1              # after maxpool2 (win 5, stride 2)
    L3 = L2 - K2 + 1                        # after conv2
    M2 = L3 - P3K + 1                       # stride-1 window-max length for maxpool3
    L4 = (L3 - P3K) // P3S + 1              # after maxpool3 / embeder
    assert L2 >= 1 and L3 >= 1 and M2 >= 1 and L4 >= 1
    # Guards for the even/odd phase decomposition of stride-2 conv1 + stride-2 maxpool2.
    assert L1 % 2 == 0, "phase layout assumes an even conv1 output length"
    Ds = L1 // 2                            # positions per phase stream
    assert Ds >= L2 + 2                     # phase reach used by maxpool2 (holds algebraically)

    G = 2 * TB                              # (branch, sample) rows per position
    NB = -(-B // TB)                        # grid steps (ceil)
    Bp = NB * TB
    R1 = 2 * Ds * G                         # conv1 rows per grid step (phase-major)
    RD = M2 * G - TB                        # rows carrying the branch0 - branch1 diff

    # --- batch padding: padded pairs are all-zero -> distance 0; sliced off below.
    xpad = jnp.pad(x, ((0, Bp - B), (0, 0), (0, 0)))

    # --- fused, position-major im2col for conv1 (both branches + both stride-2 phases
    #     in ONE gather, cast to bf16).  Row index inside a block:
    #        r = s*(Ds*G) + j*G + b*TB + t   (s: phase, j: position, b: branch, t: sample)
    #     so every later "shift position by d" is a plain slice at offset d*G, which is
    #     (8,128)/(16,128) tile aligned.
    off = ((S1 * P2S) * np.arange(Ds)[None, :, None]
           + S1 * np.arange(2)[:, None, None]
           + np.arange(K1)[None, None, :])                      # (2, Ds, K1) time offsets
    xg = xpad[:, :, off]                                        # (Bp, b, s, j, k)
    xw = (xg.reshape(NB, TB, 2, 2, Ds, K1)
            .transpose(0, 3, 4, 2, 1, 5)                        # (NB, s, j, b, t, k)
            .reshape(NB, R1, K1)
            .astype(jnp.bfloat16))
    # TODO(synk): build this im2col in-kernel from a phase-packed (TB, 2, 4, Ds) block to
    # remove the remaining ~4x HBM expansion of the wrapper-side gather.

    # Constant selection matrix: for diff row r = i*G + b*TB + t, column t gets weight 1
    # iff b == 0 (branch-0 rows) and i % P3S == 0 (maxpool3's stride-3 positions); it
    # folds maxpool3's stride, the branch selection and the per-sample reduction into a
    # single masked sublane-sum.
    rr = np.arange(RD)
    msel = ((rr[:, None] % G == np.arange(TB)[None, :])
            & ((rr[:, None] // G) % P3S == 0)).astype(np.float32)
    msel = jnp.asarray(msel)

    def kernel(xw_ref, w1_ref, b1_ref, w2_ref, b2_ref, w3_ref, msel_ref, out_ref):
        # conv1: both branches, both phases, TB samples -> one (R1, K1) x (K1, C1) dot.
        xwv = xw_ref[0]                                          # (R1, K1) bf16
        h1 = jnp.dot(xwv, w1_ref[...], preferred_element_type=f32)
        h1 = jnp.maximum(h1 + b1_ref[...], 0.0)                  # (R1, C1) f32
        h1e = h1[0:Ds * G]                                       # phase 0: h1[2j]
        h1o = h1[Ds * G:2 * Ds * G]                              # phase 1: h1[2j+1]
        # maxpool2 (win 5, stride 2): the stride is folded into the phases, so only
        # tile-aligned G-row slices remain (no sublane-rotate relayouts).
        p2 = jnp.maximum(h1e[0:L2 * G], h1o[0:L2 * G])
        p2 = jnp.maximum(p2, h1e[G:(L2 + 1) * G])
        p2 = jnp.maximum(p2, h1o[G:(L2 + 1) * G])
        p2 = jnp.maximum(p2, h1e[2 * G:(L2 + 2) * G])            # (L2*G, C1) f32
        # conv2: in-kernel lane-axis im2col (bf16) -> one K = K2*C1 = 160 dot + ReLU.
        p2b = p2.astype(jnp.bfloat16)
        xw2 = jnp.concatenate([p2b[k * G:(k + L3) * G] for k in range(K2)], axis=1)
        h2 = jnp.dot(xw2, w2_ref[...], preferred_element_type=f32)
        h2 = jnp.maximum(h2 + b2_ref[...], 0.0)                  # (L3*G, C2) f32
        # maxpool3: stride-1 window max; its stride-3 subsample lives in msel below.
        m2 = jnp.maximum(jnp.maximum(h2[0:M2 * G], h2[G:(M2 + 1) * G]),
                         h2[2 * G:(M2 + 2) * G])                 # (M2*G, C2) f32
        # embeder (1x1 conv); its bias cancels in the pairwise difference.
        dm = jnp.sum(m2 * w3_ref[...], axis=1, keepdims=True)    # (M2*G, 1)
        # branch0 - branch1: branch blocks of TB rows inside each G-row position block.
        diff = dm[0:RD] - dm[TB:M2 * G]                          # (RD, 1)
        # masked per-sample sum of squares -> lane-dense (1, TB) output.
        d2 = jnp.sum(diff * diff * msel_ref[...], axis=0, keepdims=True)
        out_ref[0] = jnp.sqrt(d2)

    out = pl.pallas_call(
        kernel,
        out_shape=jax.ShapeDtypeStruct((NB, 1, TB), f32),
        grid=(NB,),
        in_specs=[
            pl.BlockSpec((1, R1, K1), lambda nb: (nb, 0, 0)),
            # Grid-invariant weights/constants: constant index_map -> no re-DMA across
            # steps.  (pl.Buffered(1) would also drop their 2x VMEM double-buffer, but
            # the ~0.7 MiB headroom is not needed, so the default is kept for lowering
            # robustness.)
            pl.BlockSpec((K1, C1), lambda nb: (0, 0)),
            pl.BlockSpec((1, C1), lambda nb: (0, 0)),
            pl.BlockSpec((K2 * C1, C2), lambda nb: (0, 0)),
            pl.BlockSpec((1, C2), lambda nb: (0, 0)),
            pl.BlockSpec((1, C2), lambda nb: (0, 0)),
            pl.BlockSpec((RD, TB), lambda nb: (0, 0)),
        ],
        out_specs=pl.BlockSpec((1, 1, TB), lambda nb: (nb, 0, 0)),
        # TB pairs per step amortize the ~0.35 us/step overhead and fill the MXU M dim;
        # "parallel" lets v7x's two TensorCores split the batch blocks (keep NB >= 2
        # there at realistic B).  Per-step VMEM (~0.4 MiB xw block + ~1.5 MiB of live
        # intermediates) is far below the scoped default on every generation.
        compiler_params=pltpu.CompilerParams(dimension_semantics=("parallel",)),
    )(xw, w1d, b1r, w2d, b2r, w3r, msel)
    return out.reshape(Bp)[:B]


# ----- pure-JAX reference (semantics check against the PyTorch module) ------------
def reference_forward(x, params):
    w1, b1, w2, b2, w3, b3 = params
    dn = ("NCH", "OIH", "NCH")

    def nn_layer(v):                                    # v: (B, L)
        h = v[:, None, :]                               # (B, 1, L)
        h = lax.conv_general_dilated(h, w1, (S1,), "VALID",
                                     dimension_numbers=dn) + b1[None, :, None]
        h = jnp.maximum(h, 0.0)
        h = lax.reduce_window(h, -jnp.inf, lax.max, (1, 1, P2K), (1, 1, P2S), "VALID")
        h = lax.conv_general_dilated(h, w2, (1,), "VALID",
                                     dimension_numbers=dn) + b2[None, :, None]
        h = jnp.maximum(h, 0.0)
        h = lax.reduce_window(h, -jnp.inf, lax.max, (1, 1, P3K), (1, 1, P3S), "VALID")
        h = lax.conv_general_dilated(h, w3, (1,), "VALID",
                                     dimension_numbers=dn) + b3[None, :, None]
        return h.reshape(h.shape[0], -1)

    a0 = nn_layer(x[:, 0])
    a1 = nn_layer(x[:, 1])
    d = a0 - a1
    return jnp.sqrt(jnp.sum(d * d, axis=1))


if __name__ == "__main__":
    key = jax.random.PRNGKey(0)
    pkey, xkey = jax.random.split(key)
    params = init_params(pkey)
    prep = prepare_params(params)                       # one-time weight preprocessing

    B, L = 2, 200                                       # x: (batch, pair, signal_len)
    x = jax.random.normal(xkey, (B, 2, L), jnp.float32)

    out = jax.block_until_ready(cnn_rank_forward(x, prep))
    ref = jax.block_until_ready(reference_forward(x, params))

    assert out.shape == (B,), out.shape
    # Kernel dots use explicit bf16 operands with f32 accumulation; the XLA reference
    # convs also run at default (bf16-pass) precision on TPU, so the results agree to
    # roughly bf16-level relative accuracy for well-separated pairs.
    assert jnp.allclose(out, ref, rtol=1e-2, atol=1e-2), (out, ref)
    print("KERNEL_OK")
</pallas_src>

<mosaic_0001>
module attributes {stable_mosaic.version = 11 : i64} {
  func.func @kernel(%arg0: i32, %arg1: memref<1x1536x9xbf16, #tpu.memory_space<vmem>>, %arg2: memref<9x32xbf16, #tpu.memory_space<vmem>>, %arg3: memref<1x32xf32, #tpu.memory_space<vmem>>, %arg4: memref<160x64xbf16, #tpu.memory_space<vmem>>, %arg5: memref<1x64xf32, #tpu.memory_space<vmem>>, %arg6: memref<1x64xf32, #tpu.memory_space<vmem>>, %arg7: memref<632x8xf32, #tpu.memory_space<vmem>>, %arg8: memref<1x1x8xf32, #tpu.memory_space<vmem>>) attributes {dimension_semantics = [#tpu.dimension_semantics<parallel>], iteration_bounds = array<i64: 1>, scalar_prefetch = 0 : i64, scratch_operands = 0 : i64, tpu.core_type = #tpu.core_type<tc>, window_params = [{transform_indices = @transform_0, window_bounds = array<i64: 1, 1536, 9>}, {pipeline_mode = #tpu.pipeline_mode<synchronous>, transform_indices = @transform_1, window_bounds = array<i64: 9, 32>}, {pipeline_mode = #tpu.pipeline_mode<synchronous>, transform_indices = @transform_2, window_bounds = array<i64: 1, 32>}, {pipeline_mode = #tpu.pipeline_mode<synchronous>, transform_indices = @transform_3, window_bounds = array<i64: 160, 64>}, {pipeline_mode = #tpu.pipeline_mode<synchronous>, transform_indices = @transform_4, window_bounds = array<i64: 1, 64>}, {pipeline_mode = #tpu.pipeline_mode<synchronous>, transform_indices = @transform_5, window_bounds = array<i64: 1, 64>}, {pipeline_mode = #tpu.pipeline_mode<synchronous>, transform_indices = @transform_6, window_bounds = array<i64: 632, 8>}, {transform_indices = @transform_7, window_bounds = array<i64: 1, 1, 8>}]} {
    %c0 = arith.constant 0 : index
    %c0_0 = arith.constant 0 : index
    %c0_1 = arith.constant 0 : index
    %0 = vector.load %arg1[%c0, %c0_0, %c0_1] : memref<1x1536x9xbf16, #tpu.memory_space<vmem>>, vector<1x1536x9xbf16>
    %1 = vector.shape_cast %0 : vector<1x1536x9xbf16> to vector<1536x9xbf16>
    %c0_2 = arith.constant 0 : index
    %c0_3 = arith.constant 0 : index
    %2 = vector.load %arg2[%c0_2, %c0_3] : memref<9x32xbf16, #tpu.memory_space<vmem>>, vector<9x32xbf16>
    %cst = arith.constant dense<0.000000e+00> : vector<1536x32xf32>
    %3 = tpu.matmul %1, %2, %cst {dimension_numbers = #tpu.dot_dimension_numbers<[1], [0], [0], [1], [0, 0, 1, 1], [], []>} : vector<1536x9xbf16>, vector<9x32xbf16>, vector<1536x32xf32> -> vector<1536x32xf32>
    %c0_4 = arith.constant 0 : index
    %c0_5 = arith.constant 0 : index
    %4 = vector.load %arg3[%c0_4, %c0_5] : memref<1x32xf32, #tpu.memory_space<vmem>>, vector<1x32xf32>
    %5 = vector.broadcast %4 : vector<1x32xf32> to vector<1536x32xf32>
    %6 = arith.addf %3, %5 : vector<1536x32xf32>
    %cst_6 = arith.constant 0.000000e+00 : f32
    %7 = vector.broadcast %cst_6 : f32 to vector<1536x32xf32>
    %8 = arith.maximumf %6, %7 : vector<1536x32xf32>
    %9 = vector.extract_strided_slice %8 {offsets = [0, 0], sizes = [768, 32], strides = [1, 1]} : vector<1536x32xf32> to vector<768x32xf32>
    %10 = vector.extract_strided_slice %8 {offsets = [768, 0], sizes = [768, 32], strides = [1, 1]} : vector<1536x32xf32> to vector<768x32xf32>
    %11 = vector.extract_strided_slice %9 {offsets = [0, 0], sizes = [736, 32], strides = [1, 1]} : vector<768x32xf32> to vector<736x32xf32>
    %12 = vector.extract_strided_slice %10 {offsets = [0, 0], sizes = [736, 32], strides = [1, 1]} : vector<768x32xf32> to vector<736x32xf32>
    %13 = arith.maximumf %11, %12 : vector<736x32xf32>
    %14 = vector.extract_strided_slice %9 {offsets = [16, 0], sizes = [736, 32], strides = [1, 1]} : vector<768x32xf32> to vector<736x32xf32>
    %15 = arith.maximumf %13, %14 : vector<736x32xf32>
    %16 = vector.extract_strided_slice %10 {offsets = [16, 0], sizes = [736, 32], strides = [1, 1]} : vector<768x32xf32> to vector<736x32xf32>
    %17 = arith.maximumf %15, %16 : vector<736x32xf32>
    %18 = vector.extract_strided_slice %9 {offsets = [32, 0], sizes = [736, 32], strides = [1, 1]} : vector<768x32xf32> to vector<736x32xf32>
    %19 = arith.maximumf %17, %18 : vector<736x32xf32>
    %20 = arith.truncf %19 : vector<736x32xf32> to vector<736x32xbf16>
    %21 = vector.extract_strided_slice %20 {offsets = [0, 0], sizes = [672, 32], strides = [1, 1]} : vector<736x32xbf16> to vector<672x32xbf16>
    %22 = vector.extract_strided_slice %20 {offsets = [16, 0], sizes = [672, 32], strides = [1, 1]} : vector<736x32xbf16> to vector<672x32xbf16>
    %23 = vector.extract_strided_slice %20 {offsets = [32, 0], sizes = [672, 32], strides = [1, 1]} : vector<736x32xbf16> to vector<672x32xbf16>
    %24 = vector.extract_strided_slice %20 {offsets = [48, 0], sizes = [672, 32], strides = [1, 1]} : vector<736x32xbf16> to vector<672x32xbf16>
    %25 = vector.extract_strided_slice %20 {offsets = [64, 0], sizes = [672, 32], strides = [1, 1]} : vector<736x32xbf16> to vector<672x32xbf16>
    %26 = tpu.concatenate %21, %22, %23, %24, %25 in 1 : vector<672x32xbf16>, vector<672x32xbf16>, vector<672x32xbf16>, vector<672x32xbf16>, vector<672x32xbf16> -> vector<672x160xbf16>
    %c0_7 = arith.constant 0 : index
    %c0_8 = arith.constant 0 : index
    %27 = vector.load %arg4[%c0_7, %c0_8] : memref<160x64xbf16, #tpu.memory_space<vmem>>, vector<160x64xbf16>
    %cst_9 = arith.constant dense<0.000000e+00> : vector<672x64xf32>
    %28 = tpu.matmul %26, %27, %cst_9 {dimension_numbers = #tpu.dot_dimension_numbers<[1], [0], [0], [1], [0, 0, 1, 1], [], []>} : vector<672x160xbf16>, vector<160x64xbf16>, vector<672x64xf32> -> vector<672x64xf32>
    %c0_10 = arith.constant 0 : index
    %c0_11 = arith.constant 0 : index
    %29 = vector.load %arg5[%c0_10, %c0_11] : memref<1x64xf32, #tpu.memory_space<vmem>>, vector<1x64xf32>
    %30 = vector.broadcast %29 : vector<1x64xf32> to vector<672x64xf32>
    %31 = arith.addf %28, %30 : vector<672x64xf32>
    %cst_12 = arith.constant 0.000000e+00 : f32
    %32 = vector.broadcast %cst_12 : f32 to vector<672x64xf32>
    %33 = arith.maximumf %31, %32 : vector<672x64xf32>
    %34 = vector.extract_strided_slice %33 {offsets = [0, 0], sizes = [640, 64], strides = [1, 1]} : vector<672x64xf32> to vector<640x64xf32>
    %35 = vector.extract_strided_slice %33 {offsets = [16, 0], sizes = [640, 64], strides = [1, 1]} : vector<672x64xf32> to vector<640x64xf32>
    %36 = arith.maximumf %34, %35 : vector<640x64xf32>
    %37 = vector.extract_strided_slice %33 {offsets = [32, 0], sizes = [640, 64], strides = [1, 1]} : vector<672x64xf32> to vector<640x64xf32>
    %38 = arith.maximumf %36, %37 : vector<640x64xf32>
    %c0_13 = arith.constant 0 : index
    %c0_14 = arith.constant 0 : index
    %39 = vector.load %arg6[%c0_13, %c0_14] : memref<1x64xf32, #tpu.memory_space<vmem>>, vector<1x64xf32>
    %40 = vector.broadcast %39 : vector<1x64xf32> to vector<640x64xf32>
    %41 = arith.mulf %38, %40 : vector<640x64xf32>
    %cst_15 = arith.constant dense<0.000000e+00> : vector<640xf32>
    %42 = vector.multi_reduction <add>, %41, %cst_15 [1] : vector<640x64xf32> to vector<640xf32>
    %43 = vector.shape_cast %42 : vector<640xf32> to vector<640x1xf32>
    %44 = vector.extract_strided_slice %43 {offsets = [0, 0], sizes = [632, 1], strides = [1, 1]} : vector<640x1xf32> to vector<632x1xf32>
    %45 = vector.extract_strided_slice %43 {offsets = [8, 0], sizes = [632, 1], strides = [1, 1]} : vector<640x1xf32> to vector<632x1xf32>
    %46 = arith.subf %44, %45 : vector<632x1xf32>
    %47 = arith.mulf %46, %46 : vector<632x1xf32>
    %c0_16 = arith.constant 0 : index
    %c0_17 = arith.constant 0 : index
    %48 = vector.load %arg7[%c0_16, %c0_17] : memref<632x8xf32, #tpu.memory_space<vmem>>, vector<632x8xf32>
    %49 = vector.broadcast %47 : vector<632x1xf32> to vector<632x8xf32>
    %50 = arith.mulf %49, %48 : vector<632x8xf32>
    %cst_18 = arith.constant dense<0.000000e+00> : vector<8xf32>
    %51 = vector.multi_reduction <add>, %50, %cst_18 [0] : vector<632x8xf32> to vector<8xf32>
    %52 = vector.shape_cast %51 : vector<8xf32> to vector<1x8xf32>
    %53 = math.sqrt %52 : vector<1x8xf32>
    %c0_19 = arith.constant 0 : index
    %c0_20 = arith.constant 0 : index
    %c0_21 = arith.constant 0 : index
    %54 = vector.load %arg8[%c0_19, %c0_20, %c0_21] : memref<1x1x8xf32, #tpu.memory_space<vmem>>, vector<1x1x8xf32>
    %55 = vector.shape_cast %54 : vector<1x1x8xf32> to vector<1x8xf32>
    %56 = vector.shape_cast %53 : vector<1x8xf32> to vector<1x1x8xf32>
    tpu.vector_store %arg8[%c0_19, %c0_20, %c0_21], %56 {strides = array<i32>} : memref<1x1x8xf32, #tpu.memory_space<vmem>>, vector<1x1x8xf32>,
    return
  }
  func.func @transform_0(%arg0: i32) -> (i32, i32, i32) {
    %c0_i32 = arith.constant 0 : i32
    %c0_i32_0 = arith.constant 0 : i32
    %c0_i32_1 = arith.constant 0 : i32
    return %arg0, %c0_i32, %c0_i32_0 : i32, i32, i32
  }
  func.func @transform_1(%arg0: i32) -> (i32, i32) {
    %c0_i32 = arith.constant 0 : i32
    %c0_i32_0 = arith.constant 0 : i32
    %c0_i32_1 = arith.constant 0 : i32
    return %c0_i32, %c0_i32_0 : i32, i32
  }
  func.func @transform_2(%arg0: i32) -> (i32, i32) {
    %c0_i32 = arith.constant 0 : i32
    %c0_i32_0 = arith.constant 0 : i32
    %c0_i32_1 = arith.constant 0 : i32
    return %c0_i32, %c0_i32_0 : i32, i32
  }
  func.func @transform_3(%arg0: i32) -> (i32, i32) {
    %c0_i32 = arith.constant 0 : i32
    %c0_i32_0 = arith.constant 0 : i32
    %c0_i32_1 = arith.constant 0 : i32
    return %c0_i32, %c0_i32_0 : i32, i32
  }
  func.func @transform_4(%arg0: i32) -> (i32, i32) {
    %c0_i32 = arith.constant 0 : i32
    %c0_i32_0 = arith.constant 0 : i32
    %c0_i32_1 = arith.constant 0 : i32
    return %c0_i32, %c0_i32_0 : i32, i32
  }
  func.func @transform_5(%arg0: i32) -> (i32, i32) {
    %c0_i32 = arith.constant 0 : i32
    %c0_i32_0 = arith.constant 0 : i32
    %c0_i32_1 = arith.constant 0 : i32
    return %c0_i32, %c0_i32_0 : i32, i32
  }
  func.func @transform_6(%arg0: i32) -> (i32, i32) {
    %c0_i32 = arith.constant 0 : i32
    %c0_i32_0 = arith.constant 0 : i32
    %c0_i32_1 = arith.constant 0 : i32
    return %c0_i32, %c0_i32_0 : i32, i32
  }
  func.func @transform_7(%arg0: i32) -> (i32, i32, i32) {
    %c0_i32 = arith.constant 0 : i32
    %c0_i32_0 = arith.constant 0 : i32
    %c0_i32_1 = arith.constant 0 : i32
    return %arg0, %c0_i32, %c0_i32_0 : i32, i32, i32
  }
}

</mosaic_0001>

<llo_original>
// kernel: cnn_rank_forward.1
$region0: #{cnn_rank_forward.1}
  #allocation0 [shape = 'u32[]', space=smem, size = 0x4, offset = 0x4, fixed_abs, tag = 'smem constant byte address 0x4 - core index']
  #allocation1 [shape = 'u32[72,128]{1,0:T(1,128)}', space=vmem, size = 0x9000, scoped, tag = 'internal scratch']
  %s0 = inlined_call_operand.vmem [shape: bf16[1,1536,9], index: 0, kind: input, shape index: {}]
  %s1 = inlined_call_operand.vmem [shape: bf16[9,32], index: 1, kind: input, shape index: {}]
  %s2 = inlined_call_operand.vmem [shape: f32[1,32], index: 2, kind: input, shape index: {}]
  %s3 = inlined_call_operand.vmem [shape: bf16[160,64], index: 3, kind: input, shape index: {}]
  %s4 = inlined_call_operand.vmem [shape: f32[1,64], index: 4, kind: input, shape index: {}]
  %s5 = inlined_call_operand.vmem [shape: f32[1,64], index: 5, kind: input, shape index: {}]
  %s6 = inlined_call_operand.vmem [shape: f32[632,8], index: 6, kind: input, shape index: {}]
  %s7 = inlined_call_operand.vmem [shape: f32[1,1,8], index: 7, kind: output, shape index: {}]
  %s8 = sld [smem:[#allocation0]]
  $region38: #{cnn_rank_forward.1} parent=0
    _
  %s10 = ssub.s32 1, %s8
  %s11 = scalar_select 0, %s10, %s8
  // Predicated region
  $region2: #{cnn_rank_forward.1} parent=0 // pred_check
    _
  $region3: #{cnn_rank_forward.1} parent=0 // pred_check_branch
    %13 = sbr.rel (0) target = $region5
  $region4: #{cnn_rank_forward.1} parent=0 // pred_region
    _
  $region5: #{cnn_rank_forward.1} parent=0 // pred_fallthru
    _
  // Predicated region
  $region6: #{cnn_rank_forward.1} parent=0 // pred_check
    _
  $region7: #{cnn_rank_forward.1} parent=0 // pred_check_branch
    %15 = sbr.rel (0) target = $region9
  $region8: #{cnn_rank_forward.1} parent=0 // pred_region
    _
  $region9: #{cnn_rank_forward.1} parent=0 // pred_fallthru
    _
  // Predicated region
  $region10: #{cnn_rank_forward.1} parent=0 // pred_check
    _
  $region11: #{cnn_rank_forward.1} parent=0 // pred_check_branch
    %17 = sbr.rel (0) target = $region13
  $region12: #{cnn_rank_forward.1} parent=0 // pred_region
    _
  $region13: #{cnn_rank_forward.1} parent=0 // pred_fallthru
    _
  // Predicated region
  $region14: #{cnn_rank_forward.1} parent=0 // pred_check
    _
  $region15: #{cnn_rank_forward.1} parent=0 // pred_check_branch
    %19 = sbr.rel (0) target = $region17
  $region16: #{cnn_rank_forward.1} parent=0 // pred_region
    _
  $region17: #{cnn_rank_forward.1} parent=0 // pred_fallthru
    _
  // Predicated region
  $region18: #{cnn_rank_forward.1} parent=0 // pred_check
    _
  $region19: #{cnn_rank_forward.1} parent=0 // pred_check_branch
    %21 = sbr.rel (0) target = $region21
  $region20: #{cnn_rank_forward.1} parent=0 // pred_region
    _
  $region21: #{cnn_rank_forward.1} parent=0 // pred_fallthru
    _
  // Predicated region
  $region22: #{cnn_rank_forward.1} parent=0 // pred_check
    _
  $region23: #{cnn_rank_forward.1} parent=0 // pred_check_branch
    %23 = sbr.rel (0) target = $region25
  $region24: #{cnn_rank_forward.1} parent=0 // pred_region
    _
  $region25: #{cnn_rank_forward.1} parent=0 // pred_fallthru
    _
  // Predicated region
  $region26: #{cnn_rank_forward.1} parent=0 // pred_check
    _
  $region27: #{cnn_rank_forward.1} parent=0 // pred_check_branch
    %25 = sbr.rel (0) target = $region29
  $region28: #{cnn_rank_forward.1} parent=0 // pred_region
    _
  $region29: #{cnn_rank_forward.1} parent=0 // pred_fallthru
    _
  %v27 = vld [vmem:[%s0] sm:$0xf]
  %v28 = vld [vmem:[%s0 + $0x4] sm:$0xf]
  %v29 = vld [vmem:[%s0 + $0x8] sm:$0xf]
  %v30 = vld [vmem:[%s0 + $0xc] sm:$0xf]
  %v31 = vld [vmem:[%s0 + $0x10] sm:$0xf]
  %v32 = vld [vmem:[%s0 + $0x14] sm:$0xf]
  %v33 = vld [vmem:[%s0 + $0x18] sm:$0xf]
  %v34 = vld [vmem:[%s0 + $0x1c] sm:$0xf]
  %v35 = vld [vmem:[%s0 + $0x20] sm:$0xf]
  %v36 = vld [vmem:[%s0 + $0x24] sm:$0xf]
  %v37 = vld [vmem:[%s0 + $0x28] sm:$0xf]
  %v38 = vld [vmem:[%s0 + $0x2c] sm:$0xf]
  %v39 = vld [vmem:[%s0 + $0x30] sm:$0xf]
  %v40 = vld [vmem:[%s0 + $0x34] sm:$0xf]
  %v41 = vld [vmem:[%s0 + $0x38] sm:$0xf]
  %v42 = vld [vmem:[%s0 + $0x3c] sm:$0xf]
  %v43 = vld [vmem:[%s0 + $0x40] sm:$0xf]
  %v44 = vld [vmem:[%s0 + $0x44] sm:$0xf]
  %v45 = vld [vmem:[%s0 + $0x48] sm:$0xf]
  %v46 = vld [vmem:[%s0 + $0x4c] sm:$0xf]
  %v47 = vld [vmem:[%s0 + $0x50] sm:$0xf]
  %v48 = vld [vmem:[%s0 + $0x54] sm:$0xf]
  %v49 = vld [vmem:[%s0 + $0x58] sm:$0xf]
  %v50 = vld [vmem:[%s0 + $0x5c] sm:$0xf]
  %v51 = vld [vmem:[%s0 + $0x60] sm:$0xf]
  %v52 = vld [vmem:[%s0 + $0x64] sm:$0xf]
  %v53 = vld [vmem:[%s0 + $0x68] sm:$0xf]
  %v54 = vld [vmem:[%s0 + $0x6c] sm:$0xf]
  %v55 = vld [vmem:[%s0 + $0x70] sm:$0xf]
  %v56 = vld [vmem:[%s0 + $0x74] sm:$0xf]
  %v57 = vld [vmem:[%s0 + $0x78] sm:$0xf]
  %v58 = vld [vmem:[%s0 + $0x7c] sm:$0xf]
  %v59 = vld [vmem:[%s0 + $0x80] sm:$0xf]
  %v60 = vld [vmem:[%s0 + $0x84] sm:$0xf]
  %v61 = vld [vmem:[%s0 + $0x88] sm:$0xf]
  %v62 = vld [vmem:[%s0 + $0x8c] sm:$0xf]
  %v63 = vld [vmem:[%s0 + $0x90] sm:$0xf]
  %v64 = vld [vmem:[%s0 + $0x94] sm:$0xf]
  %v65 = vld [vmem:[%s0 + $0x98] sm:$0xf]
  %v66 = vld [vmem:[%s0 + $0x9c] sm:$0xf]
  %v67 = vld [vmem:[%s0 + $0xa0] sm:$0xf]
  %v68 = vld [vmem:[%s0 + $0xa4] sm:$0xf]
  %v69 = vld [vmem:[%s0 + $0xa8] sm:$0xf]
  %v70 = vld [vmem:[%s0 + $0xac] sm:$0xf]
  %v71 = vld [vmem:[%s0 + $0xb0] sm:$0xf]
  %v72 = vld [vmem:[%s0 + $0xb4] sm:$0xf]
  %v73 = vld [vmem:[%s0 + $0xb8] sm:$0xf]
  %v74 = vld [vmem:[%s0 + $0xbc] sm:$0xf]
  %v75 = vld [vmem:[%s0 + $0xc0] sm:$0xf]
  %v76 = vld [vmem:[%s0 + $0xc4] sm:$0xf]
  %v77 = vld [vmem:[%s0 + $0xc8] sm:$0xf]
  %v78 = vld [vmem:[%s0 + $0xcc] sm:$0xf]
  %v79 = vld [vmem:[%s0 + $0xd0] sm:$0xf]
  %v80 = vld [vmem:[%s0 + $0xd4] sm:$0xf]
  %v81 = vld [vmem:[%s0 + $0xd8] sm:$0xf]
  %v82 = vld [vmem:[%s0 + $0xdc] sm:$0xf]
  %v83 = vld [vmem:[%s0 + $0xe0] sm:$0xf]
  %v84 = vld [vmem:[%s0 + $0xe4] sm:$0xf]
  %v85 = vld [vmem:[%s0 + $0xe8] sm:$0xf]
  %v86 = vld [vmem:[%s0 + $0xec] sm:$0xf]
  %v87 = vld [vmem:[%s0 + $0xf0] sm:$0xf]
  %v88 = vld [vmem:[%s0 + $0xf4] sm:$0xf]
  %v89 = vld [vmem:[%s0 + $0xf8] sm:$0xf]
  %v90 = vld [vmem:[%s0 + $0xfc] sm:$0xf]
  %v91 = vld [vmem:[%s0 + $0x100] sm:$0xf]
  %v92 = vld [vmem:[%s0 + $0x104] sm:$0xf]
  %v93 = vld [vmem:[%s0 + $0x108] sm:$0xf]
  %v94 = vld [vmem:[%s0 + $0x10c] sm:$0xf]
  %v95 = vld [vmem:[%s0 + $0x110] sm:$0xf]
  %v96 = vld [vmem:[%s0 + $0x114] sm:$0xf]
  %v97 = vld [vmem:[%s0 + $0x118] sm:$0xf]
  %v98 = vld [vmem:[%s0 + $0x11c] sm:$0xf]
  %v99 = vld [vmem:[%s0 + $0x120] sm:$0xf]
  %v100 = vld [vmem:[%s0 + $0x124] sm:$0xf]
  %v101 = vld [vmem:[%s0 + $0x128] sm:$0xf]
  %v102 = vld [vmem:[%s0 + $0x12c] sm:$0xf]
  %v103 = vld [vmem:[%s0 + $0x130] sm:$0xf]
  %v104 = vld [vmem:[%s0 + $0x134] sm:$0xf]
  %v105 = vld [vmem:[%s0 + $0x138] sm:$0xf]
  %v106 = vld [vmem:[%s0 + $0x13c] sm:$0xf]
  %v107 = vld [vmem:[%s0 + $0x140] sm:$0xf]
  %v108 = vld [vmem:[%s0 + $0x144] sm:$0xf]
  %v109 = vld [vmem:[%s0 + $0x148] sm:$0xf]
  %v110 = vld [vmem:[%s0 + $0x14c] sm:$0xf]
  %v111 = vld [vmem:[%s0 + $0x150] sm:$0xf]
  %v112 = vld [vmem:[%s0 + $0x154] sm:$0xf]
  %v113 = vld [vmem:[%s0 + $0x158] sm:$0xf]
  %v114 = vld [vmem:[%s0 + $0x15c] sm:$0xf]
  %v115 = vld [vmem:[%s0 + $0x160] sm:$0xf]
  %v116 = vld [vmem:[%s0 + $0x164] sm:$0xf]
  %v117 = vld [vmem:[%s0 + $0x168] sm:$0xf]
  %v118 = vld [vmem:[%s0 + $0x16c] sm:$0xf]
  %v119 = vld [vmem:[%s0 + $0x170] sm:$0xf]
  %v120 = vld [vmem:[%s0 + $0x174] sm:$0xf]
  %v121 = vld [vmem:[%s0 + $0x178] sm:$0xf]
  %v122 = vld [vmem:[%s0 + $0x17c] sm:$0xf]
  %v123 = vld [vmem:[%s0 + $0x180] sm:$0xf]
  %v124 = vld [vmem:[%s0 + $0x184] sm:$0xf]
  %v125 = vld [vmem:[%s0 + $0x188] sm:$0xf]
  %v126 = vld [vmem:[%s0 + $0x18c] sm:$0xf]
  %v127 = vld [vmem:[%s0 + $0x190] sm:$0xf]
  %v128 = vld [vmem:[%s0 + $0x194] sm:$0xf]
  %v129 = vld [vmem:[%s0 + $0x198] sm:$0xf]
  %v130 = vld [vmem:[%s0 + $0x19c] sm:$0xf]
  %v131 = vld [vmem:[%s0 + $0x1a0] sm:$0xf]
  %v132 = vld [vmem:[%s0 + $0x1a4] sm:$0xf]
  %v133 = vld [vmem:[%s0 + $0x1a8] sm:$0xf]
  %v134 = vld [vmem:[%s0 + $0x1ac] sm:$0xf]
  %v135 = vld [vmem:[%s0 + $0x1b0] sm:$0xf]
  %v136 = vld [vmem:[%s0 + $0x1b4] sm:$0xf]
  %v137 = vld [vmem:[%s0 + $0x1b8] sm:$0xf]
  %v138 = vld [vmem:[%s0 + $0x1bc] sm:$0xf]
  %v139 = vld [vmem:[%s0 + $0x1c0] sm:$0xf]
  %v140 = vld [vmem:[%s0 + $0x1c4] sm:$0xf]
  %v141 = vld [vmem:[%s0 + $0x1c8] sm:$0xf]
  %v142 = vld [vmem:[%s0 + $0x1cc] sm:$0xf]
  %v143 = vld [vmem:[%s0 + $0x1d0] sm:$0xf]
  %v144 = vld [vmem:[%s0 + $0x1d4] sm:$0xf]
  %v145 = vld [vmem:[%s0 + $0x1d8] sm:$0xf]
  %v146 = vld [vmem:[%s0 + $0x1dc] sm:$0xf]
  %v147 = vld [vmem:[%s0 + $0x1e0] sm:$0xf]
  %v148 = vld [vmem:[%s0 + $0x1e4] sm:$0xf]
  %v149 = vld [vmem:[%s0 + $0x1e8] sm:$0xf]
  %v150 = vld [vmem:[%s0 + $0x1ec] sm:$0xf]
  %v151 = vld [vmem:[%s0 + $0x1f0] sm:$0xf]
  %v152 = vld [vmem:[%s0 + $0x1f4] sm:$0xf]
  %v153 = vld [vmem:[%s0 + $0x1f8] sm:$0xf]
  %v154 = vld [vmem:[%s0 + $0x1fc] sm:$0xf]
  %v155 = vld [vmem:[%s0 + $0x200] sm:$0xf]
  %v156 = vld [vmem:[%s0 + $0x204] sm:$0xf]
  %v157 = vld [vmem:[%s0 + $0x208] sm:$0xf]
  %v158 = vld [vmem:[%s0 + $0x20c] sm:$0xf]
  %v159 = vld [vmem:[%s0 + $0x210] sm:$0xf]
  %v160 = vld [vmem:[%s0 + $0x214] sm:$0xf]
  %v161 = vld [vmem:[%s0 + $0x218] sm:$0xf]
  %v162 = vld [vmem:[%s0 + $0x21c] sm:$0xf]
  %v163 = vld [vmem:[%s0 + $0x220] sm:$0xf]
  %v164 = vld [vmem:[%s0 + $0x224] sm:$0xf]
  %v165 = vld [vmem:[%s0 + $0x228] sm:$0xf]
  %v166 = vld [vmem:[%s0 + $0x22c] sm:$0xf]
  %v167 = vld [vmem:[%s0 + $0x230] sm:$0xf]
  %v168 = vld [vmem:[%s0 + $0x234] sm:$0xf]
  %v169 = vld [vmem:[%s0 + $0x238] sm:$0xf]
  %v170 = vld [vmem:[%s0 + $0x23c] sm:$0xf]
  %v171 = vld [vmem:[%s0 + $0x240] sm:$0xf]
  %v172 = vld [vmem:[%s0 + $0x244] sm:$0xf]
  %v173 = vld [vmem:[%s0 + $0x248] sm:$0xf]
  %v174 = vld [vmem:[%s0 + $0x24c] sm:$0xf]
  %v175 = vld [vmem:[%s0 + $0x250] sm:$0xf]
  %v176 = vld [vmem:[%s0 + $0x254] sm:$0xf]
  %v177 = vld [vmem:[%s0 + $0x258] sm:$0xf]
  %v178 = vld [vmem:[%s0 + $0x25c] sm:$0xf]
  %v179 = vld [vmem:[%s0 + $0x260] sm:$0xf]
  %v180 = vld [vmem:[%s0 + $0x264] sm:$0xf]
  %v181 = vld [vmem:[%s0 + $0x268] sm:$0xf]
  %v182 = vld [vmem:[%s0 + $0x26c] sm:$0xf]
  %v183 = vld [vmem:[%s0 + $0x270] sm:$0xf]
  %v184 = vld [vmem:[%s0 + $0x274] sm:$0xf]
  %v185 = vld [vmem:[%s0 + $0x278] sm:$0xf]
  %v186 = vld [vmem:[%s0 + $0x27c] sm:$0xf]
  %v187 = vld [vmem:[%s0 + $0x280] sm:$0xf]
  %v188 = vld [vmem:[%s0 + $0x284] sm:$0xf]
  %v189 = vld [vmem:[%s0 + $0x288] sm:$0xf]
  %v190 = vld [vmem:[%s0 + $0x28c] sm:$0xf]
  %v191 = vld [vmem:[%s0 + $0x290] sm:$0xf]
  %v192 = vld [vmem:[%s0 + $0x294] sm:$0xf]
  %v193 = vld [vmem:[%s0 + $0x298] sm:$0xf]
  %v194 = vld [vmem:[%s0 + $0x29c] sm:$0xf]
  %v195 = vld [vmem:[%s0 + $0x2a0] sm:$0xf]
  %v196 = vld [vmem:[%s0 + $0x2a4] sm:$0xf]
  %v197 = vld [vmem:[%s0 + $0x2a8] sm:$0xf]
  %v198 = vld [vmem:[%s0 + $0x2ac] sm:$0xf]
  %v199 = vld [vmem:[%s0 + $0x2b0] sm:$0xf]
  %v200 = vld [vmem:[%s0 + $0x2b4] sm:$0xf]
  %v201 = vld [vmem:[%s0 + $0x2b8] sm:$0xf]
  %v202 = vld [vmem:[%s0 + $0x2bc] sm:$0xf]
  %v203 = vld [vmem:[%s0 + $0x2c0] sm:$0xf]
  %v204 = vld [vmem:[%s0 + $0x2c4] sm:$0xf]
  %v205 = vld [vmem:[%s0 + $0x2c8] sm:$0xf]
  %v206 = vld [vmem:[%s0 + $0x2cc] sm:$0xf]
  %v207 = vld [vmem:[%s0 + $0x2d0] sm:$0xf]
  %v208 = vld [vmem:[%s0 + $0x2d4] sm:$0xf]
  %v209 = vld [vmem:[%s0 + $0x2d8] sm:$0xf]
  %v210 = vld [vmem:[%s0 + $0x2dc] sm:$0xf]
  %v211 = vld [vmem:[%s0 + $0x2e0] sm:$0xf]
  %v212 = vld [vmem:[%s0 + $0x2e4] sm:$0xf]
  %v213 = vld [vmem:[%s0 + $0x2e8] sm:$0xf]
  %v214 = vld [vmem:[%s0 + $0x2ec] sm:$0xf]
  %v215 = vld [vmem:[%s0 + $0x2f0] sm:$0xf]
  %v216 = vld [vmem:[%s0 + $0x2f4] sm:$0xf]
  %v217 = vld [vmem:[%s0 + $0x2f8] sm:$0xf]
  %v218 = vld [vmem:[%s0 + $0x2fc] sm:$0xf]
  %v219 = vld [vmem:[%s1] sm:$0xf]
  %v220 = vld [vmem:[%s1 + $0x4] sm:$0x1]
  %v221 = vld [vmem:[%s2] sm:$0x1]
  %v223 = vperm.slane %v221, 0
  %v417 = vunpack.c.l.b16 %v27
  %v418 = vunpack.c.l.b16 %v28
  %v419 = vunpack.c.l.b16 %v29
  %v420 = vunpack.c.l.b16 %v30
  %v421 = vunpack.c.l.b16 %v31
  %v422 = vunpack.c.l.b16 %v32
  %v423 = vunpack.c.l.b16 %v33
  %v424 = vunpack.c.l.b16 %v34
  %v425 = vunpack.c.l.b16 %v35
  %v426 = vunpack.c.l.b16 %v36
  %v427 = vunpack.c.l.b16 %v37
  %v428 = vunpack.c.l.b16 %v38
  %v429 = vunpack.c.l.b16 %v39
  %v430 = vunpack.c.l.b16 %v40
  %v431 = vunpack.c.l.b16 %v41
  %v432 = vunpack.c.l.b16 %v42
  %v433 = vunpack.c.l.b16 %v43
  %v434 = vunpack.c.l.b16 %v44
  %v435 = vunpack.c.l.b16 %v45
  %v436 = vunpack.c.l.b16 %v46
  %v437 = vunpack.c.l.b16 %v47
  %v438 = vunpack.c.l.b16 %v48
  %v439 = vunpack.c.l.b16 %v49
  %v440 = vunpack.c.l.b16 %v50
  %v441 = vunpack.c.l.b16 %v51
  %v442 = vunpack.c.l.b16 %v52
  %v443 = vunpack.c.l.b16 %v53
  %v444 = vunpack.c.l.b16 %v54
  %v445 = vunpack.c.l.b16 %v55
  %v446 = vunpack.c.l.b16 %v56
  %v447 = vunpack.c.l.b16 %v57
  %v448 = vunpack.c.l.b16 %v58
  %v449 = vunpack.c.l.b16 %v59
  %v450 = vunpack.c.l.b16 %v60
  %v451 = vunpack.c.l.b16 %v61
  %v452 = vunpack.c.l.b16 %v62
  %v453 = vunpack.c.l.b16 %v63
  %v454 = vunpack.c.l.b16 %v64
  %v455 = vunpack.c.l.b16 %v65
  %v456 = vunpack.c.l.b16 %v66
  %v457 = vunpack.c.l.b16 %v67
  %v458 = vunpack.c.l.b16 %v68
  %v459 = vunpack.c.l.b16 %v69
  %v460 = vunpack.c.l.b16 %v70
  %v461 = vunpack.c.l.b16 %v71
  %v462 = vunpack.c.l.b16 %v72
  %v463 = vunpack.c.l.b16 %v73
  %v464 = vunpack.c.l.b16 %v74
  %v465 = vunpack.c.l.b16 %v75
  %v466 = vunpack.c.l.b16 %v76
  %v467 = vunpack.c.l.b16 %v77
  %v468 = vunpack.c.l.b16 %v78
  %v469 = vunpack.c.l.b16 %v79
  %v470 = vunpack.c.l.b16 %v80
  %v471 = vunpack.c.l.b16 %v81
  %v472 = vunpack.c.l.b16 %v82
  %v473 = vunpack.c.l.b16 %v83
  %v474 = vunpack.c.l.b16 %v84
  %v475 = vunpack.c.l.b16 %v85
  %v476 = vunpack.c.l.b16 %v86
  %v477 = vunpack.c.l.b16 %v87
  %v478 = vunpack.c.l.b16 %v88
  %v479 = vunpack.c.l.b16 %v89
  %v480 = vunpack.c.l.b16 %v90
  %v481 = vunpack.c.l.b16 %v91
  %v482 = vunpack.c.l.b16 %v92
  %v483 = vunpack.c.l.b16 %v93
  %v484 = vunpack.c.l.b16 %v94
  %v485 = vunpack.c.l.b16 %v95
  %v486 = vunpack.c.l.b16 %v96
  %v487 = vunpack.c.l.b16 %v97
  %v488 = vunpack.c.l.b16 %v98
  %v489 = vunpack.c.l.b16 %v99
  %v490 = vunpack.c.l.b16 %v100
  %v491 = vunpack.c.l.b16 %v101
  %v492 = vunpack.c.l.b16 %v102
  %v493 = vunpack.c.l.b16 %v103
  %v494 = vunpack.c.l.b16 %v104
  %v495 = vunpack.c.l.b16 %v105
  %v496 = vunpack.c.l.b16 %v106
  %v497 = vunpack.c.l.b16 %v107
  %v498 = vunpack.c.l.b16 %v108
  %v499 = vunpack.c.l.b16 %v109
  %v500 = vunpack.c.l.b16 %v110
  %v501 = vunpack.c.l.b16 %v111
  %v502 = vunpack.c.l.b16 %v112
  %v503 = vunpack.c.l.b16 %v113
  %v504 = vunpack.c.l.b16 %v114
  %v505 = vunpack.c.l.b16 %v115
  %v506 = vunpack.c.l.b16 %v116
  %v507 = vunpack.c.l.b16 %v117
  %v508 = vunpack.c.l.b16 %v118
  %v509 = vunpack.c.l.b16 %v119
  %v510 = vunpack.c.l.b16 %v120
  %v511 = vunpack.c.l.b16 %v121
  %v512 = vunpack.c.l.b16 %v122
  %v513 = vunpack.c.l.b16 %v123
  %v514 = vunpack.c.l.b16 %v124
  %v515 = vunpack.c.l.b16 %v125
  %v516 = vunpack.c.l.b16 %v126
  %v517 = vunpack.c.l.b16 %v127
  %v518 = vunpack.c.l.b16 %v128
  %v519 = vunpack.c.l.b16 %v129
  %v520 = vunpack.c.l.b16 %v130
  %v521 = vunpack.c.l.b16 %v131
  %v522 = vunpack.c.l.b16 %v132
  %v523 = vunpack.c.l.b16 %v133
  %v524 = vunpack.c.l.b16 %v134
  %v525 = vunpack.c.l.b16 %v135
  %v526 = vunpack.c.l.b16 %v136
  %v527 = vunpack.c.l.b16 %v137
  %v528 = vunpack.c.l.b16 %v138
  %v529 = vunpack.c.l.b16 %v139
  %v530 = vunpack.c.l.b16 %v140
  %v531 = vunpack.c.l.b16 %v141
  %v532 = vunpack.c.l.b16 %v142
  %v533 = vunpack.c.l.b16 %v143
  %v534 = vunpack.c.l.b16 %v144
  %v535 = vunpack.c.l.b16 %v145
  %v536 = vunpack.c.l.b16 %v146
  %v537 = vunpack.c.l.b16 %v147
  %v538 = vunpack.c.l.b16 %v148
  %v539 = vunpack.c.l.b16 %v149
  %v540 = vunpack.c.l.b16 %v150
  %v541 = vunpack.c.l.b16 %v151
  %v542 = vunpack.c.l.b16 %v152
  %v543 = vunpack.c.l.b16 %v153
  %v544 = vunpack.c.l.b16 %v154
  %v545 = vunpack.c.l.b16 %v155
  %v546 = vunpack.c.l.b16 %v156
  %v547 = vunpack.c.l.b16 %v157
  %v548 = vunpack.c.l.b16 %v158
  %v549 = vunpack.c.l.b16 %v159
  %v550 = vunpack.c.l.b16 %v160
  %v551 = vunpack.c.l.b16 %v161
  %v552 = vunpack.c.l.b16 %v162
  %v553 = vunpack.c.l.b16 %v163
  %v554 = vunpack.c.l.b16 %v164
  %v555 = vunpack.c.l.b16 %v165
  %v556 = vunpack.c.l.b16 %v166
  %v557 = vunpack.c.l.b16 %v167
  %v558 = vunpack.c.l.b16 %v168
  %v559 = vunpack.c.l.b16 %v169
  %v560 = vunpack.c.l.b16 %v170
  %v561 = vunpack.c.l.b16 %v171
  %v562 = vunpack.c.l.b16 %v172
  %v563 = vunpack.c.l.b16 %v173
  %v564 = vunpack.c.l.b16 %v174
  %v565 = vunpack.c.l.b16 %v175
  %v566 = vunpack.c.l.b16 %v176
  %v567 = vunpack.c.l.b16 %v177
  %v568 = vunpack.c.l.b16 %v178
  %v569 = vunpack.c.l.b16 %v179
  %v570 = vunpack.c.l.b16 %v180
  %v571 = vunpack.c.l.b16 %v181
  %v572 = vunpack.c.l.b16 %v182
  %v573 = vunpack.c.l.b16 %v183
  %v574 = vunpack.c.l.b16 %v184
  %v575 = vunpack.c.l.b16 %v185
  %v576 = vunpack.c.l.b16 %v186
  %v577 = vunpack.c.l.b16 %v187
  %v578 = vunpack.c.l.b16 %v188
  %v579 = vunpack.c.l.b16 %v189
  %v580 = vunpack.c.l.b16 %v190
  %v581 = vunpack.c.l.b16 %v191
  %v582 = vunpack.c.l.b16 %v192
  %v583 = vunpack.c.l.b16 %v193
  %v584 = vunpack.c.l.b16 %v194
  %v585 = vunpack.c.l.b16 %v195
  %v586 = vunpack.c.l.b16 %v196
  %v587 = vunpack.c.l.b16 %v197
  %v588 = vunpack.c.l.b16 %v198
  %v589 = vunpack.c.l.b16 %v199
  %v590 = vunpack.c.l.b16 %v200
  %v591 = vunpack.c.l.b16 %v201
  %v592 = vunpack.c.l.b16 %v202
  %v593 = vunpack.c.l.b16 %v203
  %v594 = vunpack.c.l.b16 %v204
  %v595 = vunpack.c.l.b16 %v205
  %v596 = vunpack.c.l.b16 %v206
  %v597 = vunpack.c.l.b16 %v207
  %v598 = vunpack.c.l.b16 %v208
  %v599 = vunpack.c.l.b16 %v209
  %v600 = vunpack.c.l.b16 %v210
  %v601 = vunpack.c.l.b16 %v211
  %v602 = vunpack.c.l.b16 %v212
  %v603 = vunpack.c.l.b16 %v213
  %v604 = vunpack.c.l.b16 %v214
  %v605 = vunpack.c.l.b16 %v215
  %v606 = vunpack.c.l.b16 %v216
  %v607 = vunpack.c.l.b16 %v217
  %v608 = vunpack.c.l.b16 %v218
  %v609 = vpack.c.b16 %v418, %v417
  %v610 = vpack.c.b16 %v420, %v419
  %v611 = vpack.c.b16 %v422, %v421
  %v612 = vpack.c.b16 %v424, %v423
  %v613 = vpack.c.b16 %v426, %v425
  %v614 = vpack.c.b16 %v428, %v427
  %v615 = vpack.c.b16 %v430, %v429
  %v616 = vpack.c.b16 %v432, %v431
  %v617 = vpack.c.b16 %v434, %v433
  %v618 = vpack.c.b16 %v436, %v435
  %v619 = vpack.c.b16 %v438, %v437
  %v620 = vpack.c.b16 %v440, %v439
  %v621 = vpack.c.b16 %v442, %v441
  %v622 = vpack.c.b16 %v444, %v443
  %v623 = vpack.c.b16 %v446, %v445
  %v624 = vpack.c.b16 %v448, %v447
  %v625 = vpack.c.b16 %v450, %v449
  %v626 = vpack.c.b16 %v452, %v451
  %v627 = vpack.c.b16 %v454, %v453
  %v628 = vpack.c.b16 %v456, %v455
  %v629 = vpack.c.b16 %v458, %v457
  %v630 = vpack.c.b16 %v460, %v459
  %v631 = vpack.c.b16 %v462, %v461
  %v632 = vpack.c.b16 %v464, %v463
  %v633 = vpack.c.b16 %v466, %v465
  %v634 = vpack.c.b16 %v468, %v467
  %v635 = vpack.c.b16 %v470, %v469
  %v636 = vpack.c.b16 %v472, %v471
  %v637 = vpack.c.b16 %v474, %v473
  %v638 = vpack.c.b16 %v476, %v475
  %v639 = vpack.c.b16 %v478, %v477
  %v640 = vpack.c.b16 %v480, %v479
  %v641 = vpack.c.b16 %v482, %v481
  %v642 = vpack.c.b16 %v484, %v483
  %v643 = vpack.c.b16 %v486, %v485
  %v644 = vpack.c.b16 %v488, %v487
  %v645 = vpack.c.b16 %v490, %v489
  %v646 = vpack.c.b16 %v492, %v491
  %v647 = vpack.c.b16 %v494, %v493
  %v648 = vpack.c.b16 %v496, %v495
  %v649 = vpack.c.b16 %v498, %v497
  %v650 = vpack.c.b16 %v500, %v499
  %v651 = vpack.c.b16 %v502, %v501
  %v652 = vpack.c.b16 %v504, %v503
  %v653 = vpack.c.b16 %v506, %v505
  %v654 = vpack.c.b16 %v508, %v507
  %v655 = vpack.c.b16 %v510, %v509
  %v656 = vpack.c.b16 %v512, %v511
  %v657 = vpack.c.b16 %v514, %v513
  %v658 = vpack.c.b16 %v516, %v515
  %v659 = vpack.c.b16 %v518, %v517
  %v660 = vpack.c.b16 %v520, %v519
  %v661 = vpack.c.b16 %v522, %v521
  %v662 = vpack.c.b16 %v524, %v523
  %v663 = vpack.c.b16 %v526, %v525
  %v664 = vpack.c.b16 %v528, %v527
  %v665 = vpack.c.b16 %v530, %v529
  %v666 = vpack.c.b16 %v532, %v531
  %v667 = vpack.c.b16 %v534, %v533
  %v668 = vpack.c.b16 %v536, %v535
  %v669 = vpack.c.b16 %v538, %v537
  %v670 = vpack.c.b16 %v540, %v539
  %v671 = vpack.c.b16 %v542, %v541
  %v672 = vpack.c.b16 %v544, %v543
  %v673 = vpack.c.b16 %v546, %v545
  %v674 = vpack.c.b16 %v548, %v547
  %v675 = vpack.c.b16 %v550, %v549
  %v676 = vpack.c.b16 %v552, %v551
  %v677 = vpack.c.b16 %v554, %v553
  %v678 = vpack.c.b16 %v556, %v555
  %v679 = vpack.c.b16 %v558, %v557
  %v680 = vpack.c.b16 %v560, %v559
  %v681 = vpack.c.b16 %v562, %v561
  %v682 = vpack.c.b16 %v564, %v563
  %v683 = vpack.c.b16 %v566, %v565
  %v684 = vpack.c.b16 %v568, %v567
  %v685 = vpack.c.b16 %v570, %v569
  %v686 = vpack.c.b16 %v572, %v571
  %v687 = vpack.c.b16 %v574, %v573
  %v688 = vpack.c.b16 %v576, %v575
  %v689 = vpack.c.b16 %v578, %v577
  %v690 = vpack.c.b16 %v580, %v579
  %v691 = vpack.c.b16 %v582, %v581
  %v692 = vpack.c.b16 %v584, %v583
  %v693 = vpack.c.b16 %v586, %v585
  %v694 = vpack.c.b16 %v588, %v587
  %v695 = vpack.c.b16 %v590, %v589
  %v696 = vpack.c.b16 %v592, %v591
  %v697 = vpack.c.b16 %v594, %v593
  %v698 = vpack.c.b16 %v596, %v595
  %v699 = vpack.c.b16 %v598, %v597
  %v700 = vpack.c.b16 %v600, %v599
  %v701 = vpack.c.b16 %v602, %v601
  %v702 = vpack.c.b16 %v604, %v603
  %v703 = vpack.c.b16 %v606, %v605
  %v704 = vpack.c.b16 %v608, %v607
  %v707 = vunpack.c.l.b16 %v219
  %v708 = vunpack.c.l.b16 %v220
  %v709 = vpack.c.b16 %v708, %v707
  %vm710 = vcmask 72704
  %v712 = vsel %vm710, %v609, 0
  %v715 = vsel %vm710, %v610, 0
  %v718 = vsel %vm710, %v611, 0
  %v721 = vsel %vm710, %v612, 0
  %v724 = vsel %vm710, %v613, 0
  %v727 = vsel %vm710, %v614, 0
  %v730 = vsel %vm710, %v615, 0
  %v733 = vsel %vm710, %v616, 0
  %v736 = vsel %vm710, %v617, 0
  %v739 = vsel %vm710, %v618, 0
  %v742 = vsel %vm710, %v619, 0
  %v745 = vsel %vm710, %v620, 0
  %v748 = vsel %vm710, %v621, 0
  %v751 = vsel %vm710, %v622, 0
  %v754 = vsel %vm710, %v623, 0
  %v757 = vsel %vm710, %v624, 0
  %v760 = vsel %vm710, %v625, 0
  %v763 = vsel %vm710, %v626, 0
  %v766 = vsel %vm710, %v627, 0
  %v769 = vsel %vm710, %v628, 0
  %v772 = vsel %vm710, %v629, 0
  %v775 = vsel %vm710, %v630, 0
  %v778 = vsel %vm710, %v631, 0
  %v781 = vsel %vm710, %v632, 0
  %v784 = vsel %vm710, %v633, 0
  %v787 = vsel %vm710, %v634, 0
  %v790 = vsel %vm710, %v635, 0
  %v793 = vsel %vm710, %v636, 0
  %v796 = vsel %vm710, %v637, 0
  %v799 = vsel %vm710, %v638, 0
  %v802 = vsel %vm710, %v639, 0
  %v805 = vsel %vm710, %v640, 0
  %v808 = vsel %vm710, %v641, 0
  %v811 = vsel %vm710, %v642, 0
  %v814 = vsel %vm710, %v643, 0
  %v817 = vsel %vm710, %v644, 0
  %v820 = vsel %vm710, %v645, 0
  %v823 = vsel %vm710, %v646, 0
  %v826 = vsel %vm710, %v647, 0
  %v829 = vsel %vm710, %v648, 0
  %v832 = vsel %vm710, %v649, 0
  %v835 = vsel %vm710, %v650, 0
  %v838 = vsel %vm710, %v651, 0
  %v841 = vsel %vm710, %v652, 0
  %v844 = vsel %vm710, %v653, 0
  %v847 = vsel %vm710, %v654, 0
  %v850 = vsel %vm710, %v655, 0
  %v853 = vsel %vm710, %v656, 0
  %v856 = vsel %vm710, %v657, 0
  %v859 = vsel %vm710, %v658, 0
  %v862 = vsel %vm710, %v659, 0
  %v865 = vsel %vm710, %v660, 0
  %v868 = vsel %vm710, %v661, 0
  %v871 = vsel %vm710, %v662, 0
  %v874 = vsel %vm710, %v663, 0
  %v877 = vsel %vm710, %v664, 0
  %v880 = vsel %vm710, %v665, 0
  %v883 = vsel %vm710, %v666, 0
  %v886 = vsel %vm710, %v667, 0
  %v889 = vsel %vm710, %v668, 0
  %v892 = vsel %vm710, %v669, 0
  %v895 = vsel %vm710, %v670, 0
  %v898 = vsel %vm710, %v671, 0
  %v901 = vsel %vm710, %v672, 0
  %v904 = vsel %vm710, %v673, 0
  %v907 = vsel %vm710, %v674, 0
  %v910 = vsel %vm710, %v675, 0
  %v913 = vsel %vm710, %v676, 0
  %v916 = vsel %vm710, %v677, 0
  %v919 = vsel %vm710, %v678, 0
  %v922 = vsel %vm710, %v679, 0
  %v925 = vsel %vm710, %v680, 0
  %v928 = vsel %vm710, %v681, 0
  %v931 = vsel %vm710, %v682, 0
  %v934 = vsel %vm710, %v683, 0
  %v937 = vsel %vm710, %v684, 0
  %v940 = vsel %vm710, %v685, 0
  %v943 = vsel %vm710, %v686, 0
  %v946 = vsel %vm710, %v687, 0
  %v949 = vsel %vm710, %v688, 0
  %v952 = vsel %vm710, %v689, 0
  %v955 = vsel %vm710, %v690, 0
  %v958 = vsel %vm710, %v691, 0
  %v961 = vsel %vm710, %v692, 0
  %v964 = vsel %vm710, %v693, 0
  %v967 = vsel %vm710, %v694, 0
  %v970 = vsel %vm710, %v695, 0
  %v973 = vsel %vm710, %v696, 0
  %v976 = vsel %vm710, %v697, 0
  %v979 = vsel %vm710, %v698, 0
  %v982 = vsel %vm710, %v699, 0
  %v985 = vsel %vm710, %v700, 0
  %v988 = vsel %vm710, %v701, 0
  %v991 = vsel %vm710, %v702, 0
  %v994 = vsel %vm710, %v703, 0
  %v997 = vsel %vm710, %v704, 0
  %vm999 = vcmask 1043456
  %vm1000 = vcmask 1044480
  %v1001 = vsel %vm999, 4294967295, 65535
  %v1002 = vsel %vm1000, %v1001, 0
  %v1004 = vand.u32 %v709, %v1002
  %1006 = vmatpush.bf16.msra.mxu0 0
  %1007 = vmatpush.bf16.msra.mxu0 0
  %1008 = vmatpush.bf16.msra.mxu0 0
  %1009 = vmatpush.bf16.msra.mxu0 0
  %1010 = vmatpush.bf16.msra.mxu0 0
  %1011 = vmatpush.bf16.msra.mxu0 0
  %1012 = vmatpush.bf16.msra.mxu0 0
  %1013 = vmatpush.bf16.msra.mxu0 %v1004
  %1014 = vmatmul.bf16.gmra.mxu0 %v712
  %v1015 = vpop.f32.mrf.mxu0
  %v1016 = vadd.f32 %v223, %v1015
  %v1017 = vpop.f32.mrf.mxu0
  %v1018 = vadd.f32 %v223, %v1017
  %1019 = vmatmul.bf16.gmra.mxu0 %v715
  %v1020 = vpop.f32.mrf.mxu0
  %v1021 = vadd.f32 %v223, %v1020
  %v1022 = vpop.f32.mrf.mxu0
  %v1023 = vadd.f32 %v223, %v1022
  %1024 = vmatmul.bf16.gmra.mxu0 %v718
  %v1025 = vpop.f32.mrf.mxu0
  %v1026 = vadd.f32 %v223, %v1025
  %v1027 = vpop.f32.mrf.mxu0
  %v1028 = vadd.f32 %v223, %v1027
  %1029 = vmatmul.bf16.gmra.mxu0 %v721
  %v1030 = vpop.f32.mrf.mxu0
  %v1031 = vadd.f32 %v223, %v1030
  %v1032 = vpop.f32.mrf.mxu0
  %v1033 = vadd.f32 %v223, %v1032
  %1034 = vmatmul.bf16.gmra.mxu0 %v724
  %v1035 = vpop.f32.mrf.mxu0
  %v1036 = vadd.f32 %v223, %v1035
  %v1037 = vpop.f32.mrf.mxu0
  %v1038 = vadd.f32 %v223, %v1037
  %1039 = vmatmul.bf16.gmra.mxu0 %v727
  %v1040 = vpop.f32.mrf.mxu0
  %v1041 = vadd.f32 %v223, %v1040
  %v1042 = vpop.f32.mrf.mxu0
  %v1043 = vadd.f32 %v223, %v1042
  %1044 = vmatmul.bf16.gmra.mxu0 %v730
  %v1045 = vpop.f32.mrf.mxu0
  %v1046 = vadd.f32 %v223, %v1045
  %v1047 = vpop.f32.mrf.mxu0
  %v1048 = vadd.f32 %v223, %v1047
  %1049 = vmatmul.bf16.gmra.mxu0 %v733
  %v1050 = vpop.f32.mrf.mxu0
  %v1051 = vadd.f32 %v223, %v1050
  %v1052 = vpop.f32.mrf.mxu0
  %v1053 = vadd.f32 %v223, %v1052
  %1054 = vmatmul.bf16.gmra.mxu0 %v736
  %v1055 = vpop.f32.mrf.mxu0
  %v1056 = vadd.f32 %v223, %v1055
  %v1057 = vpop.f32.mrf.mxu0
  %v1058 = vadd.f32 %v223, %v1057
  %1059 = vmatmul.bf16.gmra.mxu0 %v739
  %v1060 = vpop.f32.mrf.mxu0
  %v1061 = vadd.f32 %v223, %v1060
  %v1062 = vpop.f32.mrf.mxu0
  %v1063 = vadd.f32 %v223, %v1062
  %1064 = vmatmul.bf16.gmra.mxu0 %v742
  %v1065 = vpop.f32.mrf.mxu0
  %v1066 = vadd.f32 %v223, %v1065
  %v1067 = vpop.f32.mrf.mxu0
  %v1068 = vadd.f32 %v223, %v1067
  %1069 = vmatmul.bf16.gmra.mxu0 %v745
  %v1070 = vpop.f32.mrf.mxu0
  %v1071 = vadd.f32 %v223, %v1070
  %v1072 = vpop.f32.mrf.mxu0
  %v1073 = vadd.f32 %v223, %v1072
  %1074 = vmatmul.bf16.gmra.mxu0 %v748
  %v1075 = vpop.f32.mrf.mxu0
  %v1076 = vadd.f32 %v223, %v1075
  %v1077 = vpop.f32.mrf.mxu0
  %v1078 = vadd.f32 %v223, %v1077
  %1079 = vmatmul.bf16.gmra.mxu0 %v751
  %v1080 = vpop.f32.mrf.mxu0
  %v1081 = vadd.f32 %v223, %v1080
  %v1082 = vpop.f32.mrf.mxu0
  %v1083 = vadd.f32 %v223, %v1082
  %1084 = vmatmul.bf16.gmra.mxu0 %v754
  %v1085 = vpop.f32.mrf.mxu0
  %v1086 = vadd.f32 %v223, %v1085
  %v1087 = vpop.f32.mrf.mxu0
  %v1088 = vadd.f32 %v223, %v1087
  %1089 = vmatmul.bf16.gmra.mxu0 %v757
  %v1090 = vpop.f32.mrf.mxu0
  %v1091 = vadd.f32 %v223, %v1090
  %v1092 = vpop.f32.mrf.mxu0
  %v1093 = vadd.f32 %v223, %v1092
  %1094 = vmatmul.bf16.gmra.mxu0 %v760
  %v1095 = vpop.f32.mrf.mxu0
  %v1096 = vadd.f32 %v223, %v1095
  %v1097 = vpop.f32.mrf.mxu0
  %v1098 = vadd.f32 %v223, %v1097
  %1099 = vmatmul.bf16.gmra.mxu0 %v763
  %v1100 = vpop.f32.mrf.mxu0
  %v1101 = vadd.f32 %v223, %v1100
  %v1102 = vpop.f32.mrf.mxu0
  %v1103 = vadd.f32 %v223, %v1102
  %1104 = vmatmul.bf16.gmra.mxu0 %v766
  %v1105 = vpop.f32.mrf.mxu0
  %v1106 = vadd.f32 %v223, %v1105
  %v1107 = vpop.f32.mrf.mxu0
  %v1108 = vadd.f32 %v223, %v1107
  %1109 = vmatmul.bf16.gmra.mxu0 %v769
  %v1110 = vpop.f32.mrf.mxu0
  %v1111 = vadd.f32 %v223, %v1110
  %v1112 = vpop.f32.mrf.mxu0
  %v1113 = vadd.f32 %v223, %v1112
  %1114 = vmatmul.bf16.gmra.mxu0 %v772
  %v1115 = vpop.f32.mrf.mxu0
  %v1116 = vadd.f32 %v223, %v1115
  %v1117 = vpop.f32.mrf.mxu0
  %v1118 = vadd.f32 %v223, %v1117
  %1119 = vmatmul.bf16.gmra.mxu0 %v775
  %v1120 = vpop.f32.mrf.mxu0
  %v1121 = vadd.f32 %v223, %v1120
  %v1122 = vpop.f32.mrf.mxu0
  %v1123 = vadd.f32 %v223, %v1122
  %1124 = vmatmul.bf16.gmra.mxu0 %v778
  %v1125 = vpop.f32.mrf.mxu0
  %v1126 = vadd.f32 %v223, %v1125
  %v1127 = vpop.f32.mrf.mxu0
  %v1128 = vadd.f32 %v223, %v1127
  %1129 = vmatmul.bf16.gmra.mxu0 %v781
  %v1130 = vpop.f32.mrf.mxu0
  %v1131 = vadd.f32 %v223, %v1130
  %v1132 = vpop.f32.mrf.mxu0
  %v1133 = vadd.f32 %v223, %v1132
  %1134 = vmatmul.bf16.gmra.mxu0 %v784
  %v1135 = vpop.f32.mrf.mxu0
  %v1136 = vadd.f32 %v223, %v1135
  %v1137 = vpop.f32.mrf.mxu0
  %v1138 = vadd.f32 %v223, %v1137
  %1139 = vmatmul.bf16.gmra.mxu0 %v787
  %v1140 = vpop.f32.mrf.mxu0
  %v1141 = vadd.f32 %v223, %v1140
  %v1142 = vpop.f32.mrf.mxu0
  %v1143 = vadd.f32 %v223, %v1142
  %1144 = vmatmul.bf16.gmra.mxu0 %v790
  %v1145 = vpop.f32.mrf.mxu0
  %v1146 = vadd.f32 %v223, %v1145
  %v1147 = vpop.f32.mrf.mxu0
  %v1148 = vadd.f32 %v223, %v1147
  %1149 = vmatmul.bf16.gmra.mxu0 %v793
  %v1150 = vpop.f32.mrf.mxu0
  %v1151 = vadd.f32 %v223, %v1150
  %v1152 = vpop.f32.mrf.mxu0
  %v1153 = vadd.f32 %v223, %v1152
  %1154 = vmatmul.bf16.gmra.mxu0 %v796
  %v1155 = vpop.f32.mrf.mxu0
  %v1156 = vadd.f32 %v223, %v1155
  %v1157 = vpop.f32.mrf.mxu0
  %v1158 = vadd.f32 %v223, %v1157
  %1159 = vmatmul.bf16.gmra.mxu0 %v799
  %v1160 = vpop.f32.mrf.mxu0
  %v1161 = vadd.f32 %v223, %v1160
  %v1162 = vpop.f32.mrf.mxu0
  %v1163 = vadd.f32 %v223, %v1162
  %1164 = vmatmul.bf16.gmra.mxu0 %v802
  %v1165 = vpop.f32.mrf.mxu0
  %v1166 = vadd.f32 %v223, %v1165
  %v1167 = vpop.f32.mrf.mxu0
  %v1168 = vadd.f32 %v223, %v1167
  %1169 = vmatmul.bf16.gmra.mxu0 %v805
  %v1170 = vpop.f32.mrf.mxu0
  %v1171 = vadd.f32 %v223, %v1170
  %v1172 = vpop.f32.mrf.mxu0
  %v1173 = vadd.f32 %v223, %v1172
  %1174 = vmatmul.bf16.gmra.mxu0 %v808
  %v1175 = vpop.f32.mrf.mxu0
  %v1176 = vadd.f32 %v223, %v1175
  %v1177 = vpop.f32.mrf.mxu0
  %v1178 = vadd.f32 %v223, %v1177
  %1179 = vmatmul.bf16.gmra.mxu0 %v811
  %v1180 = vpop.f32.mrf.mxu0
  %v1181 = vadd.f32 %v223, %v1180
  %v1182 = vpop.f32.mrf.mxu0
  %v1183 = vadd.f32 %v223, %v1182
  %1184 = vmatmul.bf16.gmra.mxu0 %v814
  %v1185 = vpop.f32.mrf.mxu0
  %v1186 = vadd.f32 %v223, %v1185
  %v1187 = vpop.f32.mrf.mxu0
  %v1188 = vadd.f32 %v223, %v1187
  %1189 = vmatmul.bf16.gmra.mxu0 %v817
  %v1190 = vpop.f32.mrf.mxu0
  %v1191 = vadd.f32 %v223, %v1190
  %v1192 = vpop.f32.mrf.mxu0
  %v1193 = vadd.f32 %v223, %v1192
  %1194 = vmatmul.bf16.gmra.mxu0 %v820
  %v1195 = vpop.f32.mrf.mxu0
  %v1196 = vadd.f32 %v223, %v1195
  %v1197 = vpop.f32.mrf.mxu0
  %v1198 = vadd.f32 %v223, %v1197
  %1199 = vmatmul.bf16.gmra.mxu0 %v823
  %v1200 = vpop.f32.mrf.mxu0
  %v1201 = vadd.f32 %v223, %v1200
  %v1202 = vpop.f32.mrf.mxu0
  %v1203 = vadd.f32 %v223, %v1202
  %1204 = vmatmul.bf16.gmra.mxu0 %v826
  %v1205 = vpop.f32.mrf.mxu0
  %v1206 = vadd.f32 %v223, %v1205
  %v1207 = vpop.f32.mrf.mxu0
  %v1208 = vadd.f32 %v223, %v1207
  %1209 = vmatmul.bf16.gmra.mxu0 %v829
  %v1210 = vpop.f32.mrf.mxu0
  %v1211 = vadd.f32 %v223, %v1210
  %v1212 = vpop.f32.mrf.mxu0
  %v1213 = vadd.f32 %v223, %v1212
  %1214 = vmatmul.bf16.gmra.mxu0 %v832
  %v1215 = vpop.f32.mrf.mxu0
  %v1216 = vadd.f32 %v223, %v1215
  %v1217 = vpop.f32.mrf.mxu0
  %v1218 = vadd.f32 %v223, %v1217
  %1219 = vmatmul.bf16.gmra.mxu0 %v835
  %v1220 = vpop.f32.mrf.mxu0
  %v1221 = vadd.f32 %v223, %v1220
  %v1222 = vpop.f32.mrf.mxu0
  %v1223 = vadd.f32 %v223, %v1222
  %1224 = vmatmul.bf16.gmra.mxu0 %v838
  %v1225 = vpop.f32.mrf.mxu0
  %v1226 = vadd.f32 %v223, %v1225
  %v1227 = vpop.f32.mrf.mxu0
  %v1228 = vadd.f32 %v223, %v1227
  %1229 = vmatmul.bf16.gmra.mxu0 %v841
  %v1230 = vpop.f32.mrf.mxu0
  %v1231 = vadd.f32 %v223, %v1230
  %v1232 = vpop.f32.mrf.mxu0
  %v1233 = vadd.f32 %v223, %v1232
  %1234 = vmatmul.bf16.gmra.mxu0 %v844
  %v1235 = vpop.f32.mrf.mxu0
  %v1236 = vadd.f32 %v223, %v1235
  %v1237 = vpop.f32.mrf.mxu0
  %v1238 = vadd.f32 %v223, %v1237
  %1239 = vmatmul.bf16.gmra.mxu0 %v847
  %v1240 = vpop.f32.mrf.mxu0
  %v1241 = vadd.f32 %v223, %v1240
  %v1242 = vpop.f32.mrf.mxu0
  %v1243 = vadd.f32 %v223, %v1242
  %1244 = vmatmul.bf16.gmra.mxu0 %v850
  %v1245 = vpop.f32.mrf.mxu0
  %v1246 = vadd.f32 %v223, %v1245
  %v1247 = vpop.f32.mrf.mxu0
  %v1248 = vadd.f32 %v223, %v1247
  %1249 = vmatmul.bf16.gmra.mxu0 %v853
  %v1250 = vpop.f32.mrf.mxu0
  %v1251 = vadd.f32 %v223, %v1250
  %v1252 = vpop.f32.mrf.mxu0
  %v1253 = vadd.f32 %v223, %v1252
  %1254 = vmatmul.bf16.gmra.mxu0 %v856
  %v1255 = vpop.f32.mrf.mxu0
  %v1256 = vadd.f32 %v223, %v1255
  %v1257 = vpop.f32.mrf.mxu0
  %v1258 = vadd.f32 %v223, %v1257
  %1259 = vmatmul.bf16.gmra.mxu0 %v859
  %v1260 = vpop.f32.mrf.mxu0
  %v1261 = vadd.f32 %v223, %v1260
  %v1262 = vpop.f32.mrf.mxu0
  %v1263 = vadd.f32 %v223, %v1262
  %1264 = vmatmul.bf16.gmra.mxu0 %v862
  %v1265 = vpop.f32.mrf.mxu0
  %v1266 = vadd.f32 %v223, %v1265
  %v1267 = vpop.f32.mrf.mxu0
  %v1268 = vadd.f32 %v223, %v1267
  %1269 = vmatmul.bf16.gmra.mxu0 %v865
  %v1270 = vpop.f32.mrf.mxu0
  %v1271 = vadd.f32 %v223, %v1270
  %v1272 = vpop.f32.mrf.mxu0
  %v1273 = vadd.f32 %v223, %v1272
  %1274 = vmatmul.bf16.gmra.mxu0 %v868
  %v1275 = vpop.f32.mrf.mxu0
  %v1276 = vadd.f32 %v223, %v1275
  %v1277 = vpop.f32.mrf.mxu0
  %v1278 = vadd.f32 %v223, %v1277
  %1279 = vmatmul.bf16.gmra.mxu0 %v871
  %v1280 = vpop.f32.mrf.mxu0
  %v1281 = vadd.f32 %v223, %v1280
  %v1282 = vpop.f32.mrf.mxu0
  %v1283 = vadd.f32 %v223, %v1282
  %1284 = vmatmul.bf16.gmra.mxu0 %v874
  %v1285 = vpop.f32.mrf.mxu0
  %v1286 = vadd.f32 %v223, %v1285
  %v1287 = vpop.f32.mrf.mxu0
  %v1288 = vadd.f32 %v223, %v1287
  %1289 = vmatmul.bf16.gmra.mxu0 %v877
  %v1290 = vpop.f32.mrf.mxu0
  %v1291 = vadd.f32 %v223, %v1290
  %v1292 = vpop.f32.mrf.mxu0
  %v1293 = vadd.f32 %v223, %v1292
  %1294 = vmatmul.bf16.gmra.mxu0 %v880
  %v1295 = vpop.f32.mrf.mxu0
  %v1296 = vadd.f32 %v223, %v1295
  %v1297 = vpop.f32.mrf.mxu0
  %v1298 = vadd.f32 %v223, %v1297
  %1299 = vmatmul.bf16.gmra.mxu0 %v883
  %v1300 = vpop.f32.mrf.mxu0
  %v1301 = vadd.f32 %v223, %v1300
  %v1302 = vpop.f32.mrf.mxu0
  %v1303 = vadd.f32 %v223, %v1302
  %1304 = vmatmul.bf16.gmra.mxu0 %v886
  %v1305 = vpop.f32.mrf.mxu0
  %v1306 = vadd.f32 %v223, %v1305
  %v1307 = vpop.f32.mrf.mxu0
  %v1308 = vadd.f32 %v223, %v1307
  %1309 = vmatmul.bf16.gmra.mxu0 %v889
  %v1310 = vpop.f32.mrf.mxu0
  %v1311 = vadd.f32 %v223, %v1310
  %v1312 = vpop.f32.mrf.mxu0
  %v1313 = vadd.f32 %v223, %v1312
  %1314 = vmatmul.bf16.gmra.mxu0 %v892
  %v1315 = vpop.f32.mrf.mxu0
  %v1316 = vadd.f32 %v223, %v1315
  %v1317 = vpop.f32.mrf.mxu0
  %v1318 = vadd.f32 %v223, %v1317
  %1319 = vmatmul.bf16.gmra.mxu0 %v895
  %v1320 = vpop.f32.mrf.mxu0
  %v1321 = vadd.f32 %v223, %v1320
  %v1322 = vpop.f32.mrf.mxu0
  %v1323 = vadd.f32 %v223, %v1322
  %1324 = vmatmul.bf16.gmra.mxu0 %v898
  %v1325 = vpop.f32.mrf.mxu0
  %v1326 = vadd.f32 %v223, %v1325
  %v1327 = vpop.f32.mrf.mxu0
  %v1328 = vadd.f32 %v223, %v1327
  %1329 = vmatmul.bf16.gmra.mxu0 %v901
  %v1330 = vpop.f32.mrf.mxu0
  %v1331 = vadd.f32 %v223, %v1330
  %v1332 = vpop.f32.mrf.mxu0
  %v1333 = vadd.f32 %v223, %v1332
  %1334 = vmatmul.bf16.gmra.mxu0 %v904
  %v1335 = vpop.f32.mrf.mxu0
  %v1336 = vadd.f32 %v223, %v1335
  %v1337 = vpop.f32.mrf.mxu0
  %v1338 = vadd.f32 %v223, %v1337
  %1339 = vmatmul.bf16.gmra.mxu0 %v907
  %v1340 = vpop.f32.mrf.mxu0
  %v1341 = vadd.f32 %v223, %v1340
  %v1342 = vpop.f32.mrf.mxu0
  %v1343 = vadd.f32 %v223, %v1342
  %1344 = vmatmul.bf16.gmra.mxu0 %v910
  %v1345 = vpop.f32.mrf.mxu0
  %v1346 = vadd.f32 %v223, %v1345
  %v1347 = vpop.f32.mrf.mxu0
  %v1348 = vadd.f32 %v223, %v1347
  %1349 = vmatmul.bf16.gmra.mxu0 %v913
  %v1350 = vpop.f32.mrf.mxu0
  %v1351 = vadd.f32 %v223, %v1350
  %v1352 = vpop.f32.mrf.mxu0
  %v1353 = vadd.f32 %v223, %v1352
  %1354 = vmatmul.bf16.gmra.mxu0 %v916
  %v1355 = vpop.f32.mrf.mxu0
  %v1356 = vadd.f32 %v223, %v1355
  %v1357 = vpop.f32.mrf.mxu0
  %v1358 = vadd.f32 %v223, %v1357
  %1359 = vmatmul.bf16.gmra.mxu0 %v919
  %v1360 = vpop.f32.mrf.mxu0
  %v1361 = vadd.f32 %v223, %v1360
  %v1362 = vpop.f32.mrf.mxu0
  %v1363 = vadd.f32 %v223, %v1362
  %1364 = vmatmul.bf16.gmra.mxu0 %v922
  %v1365 = vpop.f32.mrf.mxu0
  %v1366 = vadd.f32 %v223, %v1365
  %v1367 = vpop.f32.mrf.mxu0
  %v1368 = vadd.f32 %v223, %v1367
  %1369 = vmatmul.bf16.gmra.mxu0 %v925
  %v1370 = vpop.f32.mrf.mxu0
  %v1371 = vadd.f32 %v223, %v1370
  %v1372 = vpop.f32.mrf.mxu0
  %v1373 = vadd.f32 %v223, %v1372
  %1374 = vmatmul.bf16.gmra.mxu0 %v928
  %v1375 = vpop.f32.mrf.mxu0
  %v1376 = vadd.f32 %v223, %v1375
  %v1377 = vpop.f32.mrf.mxu0
  %v1378 = vadd.f32 %v223, %v1377
  %1379 = vmatmul.bf16.gmra.mxu0 %v931
  %v1380 = vpop.f32.mrf.mxu0
  %v1381 = vadd.f32 %v223, %v1380
  %v1382 = vpop.f32.mrf.mxu0
  %v1383 = vadd.f32 %v223, %v1382
  %1384 = vmatmul.bf16.gmra.mxu0 %v934
  %v1385 = vpop.f32.mrf.mxu0
  %v1386 = vadd.f32 %v223, %v1385
  %v1387 = vpop.f32.mrf.mxu0
  %v1388 = vadd.f32 %v223, %v1387
  %1389 = vmatmul.bf16.gmra.mxu0 %v937
  %v1390 = vpop.f32.mrf.mxu0
  %v1391 = vadd.f32 %v223, %v1390
  %v1392 = vpop.f32.mrf.mxu0
  %v1393 = vadd.f32 %v223, %v1392
  %1394 = vmatmul.bf16.gmra.mxu0 %v940
  %v1395 = vpop.f32.mrf.mxu0
  %v1396 = vadd.f32 %v223, %v1395
  %v1397 = vpop.f32.mrf.mxu0
  %v1398 = vadd.f32 %v223, %v1397
  %1399 = vmatmul.bf16.gmra.mxu0 %v943
  %v1400 = vpop.f32.mrf.mxu0
  %v1401 = vadd.f32 %v223, %v1400
  %v1402 = vpop.f32.mrf.mxu0
  %v1403 = vadd.f32 %v223, %v1402
  %1404 = vmatmul.bf16.gmra.mxu0 %v946
  %v1405 = vpop.f32.mrf.mxu0
  %v1406 = vadd.f32 %v223, %v1405
  %v1407 = vpop.f32.mrf.mxu0
  %v1408 = vadd.f32 %v223, %v1407
  %1409 = vmatmul.bf16.gmra.mxu0 %v949
  %v1410 = vpop.f32.mrf.mxu0
  %v1411 = vadd.f32 %v223, %v1410
  %v1412 = vpop.f32.mrf.mxu0
  %v1413 = vadd.f32 %v223, %v1412
  %1414 = vmatmul.bf16.gmra.mxu0 %v952
  %v1415 = vpop.f32.mrf.mxu0
  %v1416 = vadd.f32 %v223, %v1415
  %v1417 = vpop.f32.mrf.mxu0
  %v1418 = vadd.f32 %v223, %v1417
  %1419 = vmatmul.bf16.gmra.mxu0 %v955
  %v1420 = vpop.f32.mrf.mxu0
  %v1421 = vadd.f32 %v223, %v1420
  %v1422 = vpop.f32.mrf.mxu0
  %v1423 = vadd.f32 %v223, %v1422
  %1424 = vmatmul.bf16.gmra.mxu0 %v958
  %v1425 = vpop.f32.mrf.mxu0
  %v1426 = vadd.f32 %v223, %v1425
  %v1427 = vpop.f32.mrf.mxu0
  %v1428 = vadd.f32 %v223, %v1427
  %1429 = vmatmul.bf16.gmra.mxu0 %v961
  %v1430 = vpop.f32.mrf.mxu0
  %v1431 = vadd.f32 %v223, %v1430
  %v1432 = vpop.f32.mrf.mxu0
  %v1433 = vadd.f32 %v223, %v1432
  %1434 = vmatmul.bf16.gmra.mxu0 %v964
  %v1435 = vpop.f32.mrf.mxu0
  %v1436 = vadd.f32 %v223, %v1435
  %v1437 = vpop.f32.mrf.mxu0
  %v1438 = vadd.f32 %v223, %v1437
  %1439 = vmatmul.bf16.gmra.mxu0 %v967
  %v1440 = vpop.f32.mrf.mxu0
  %v1441 = vadd.f32 %v223, %v1440
  %v1442 = vpop.f32.mrf.mxu0
  %v1443 = vadd.f32 %v223, %v1442
  %1444 = vmatmul.bf16.gmra.mxu0 %v970
  %v1445 = vpop.f32.mrf.mxu0
  %v1446 = vadd.f32 %v223, %v1445
  %v1447 = vpop.f32.mrf.mxu0
  %v1448 = vadd.f32 %v223, %v1447
  %1449 = vmatmul.bf16.gmra.mxu0 %v973
  %v1450 = vpop.f32.mrf.mxu0
  %v1451 = vadd.f32 %v223, %v1450
  %v1452 = vpop.f32.mrf.mxu0
  %v1453 = vadd.f32 %v223, %v1452
  %1454 = vmatmul.bf16.gmra.mxu0 %v976
  %v1455 = vpop.f32.mrf.mxu0
  %v1456 = vadd.f32 %v223, %v1455
  %v1457 = vpop.f32.mrf.mxu0
  %v1458 = vadd.f32 %v223, %v1457
  %1459 = vmatmul.bf16.gmra.mxu0 %v979
  %v1460 = vpop.f32.mrf.mxu0
  %v1461 = vadd.f32 %v223, %v1460
  %v1462 = vpop.f32.mrf.mxu0
  %v1463 = vadd.f32 %v223, %v1462
  %1464 = vmatmul.bf16.gmra.mxu0 %v982
  %v1465 = vpop.f32.mrf.mxu0
  %v1466 = vadd.f32 %v223, %v1465
  %v1467 = vpop.f32.mrf.mxu0
  %v1468 = vadd.f32 %v223, %v1467
  %1469 = vmatmul.bf16.gmra.mxu0 %v985
  %v1470 = vpop.f32.mrf.mxu0
  %v1471 = vadd.f32 %v223, %v1470
  %v1472 = vpop.f32.mrf.mxu0
  %v1473 = vadd.f32 %v223, %v1472
  %1474 = vmatmul.bf16.gmra.mxu0 %v988
  %v1475 = vpop.f32.mrf.mxu0
  %v1476 = vadd.f32 %v223, %v1475
  %v1477 = vpop.f32.mrf.mxu0
  %v1478 = vadd.f32 %v223, %v1477
  %1479 = vmatmul.bf16.gmra.mxu0 %v991
  %v1480 = vpop.f32.mrf.mxu0
  %v1481 = vadd.f32 %v223, %v1480
  %v1482 = vpop.f32.mrf.mxu0
  %v1483 = vadd.f32 %v223, %v1482
  %1484 = vmatmul.bf16.gmra.mxu0 %v994
  %v1485 = vpop.f32.mrf.mxu0
  %v1486 = vadd.f32 %v223, %v1485
  %v1487 = vpop.f32.mrf.mxu0
  %v1488 = vadd.f32 %v223, %v1487
  %1489 = vmatmul.bf16.gmra.mxu0 %v997
  %v1490 = vpop.f32.mrf.mxu0
  %v1491 = vpop.f32.mrf.mxu0
  %1492 = vdwg.mxu0
  %v1493 = vmax.f32 %v1016, 0.0
  %v1494 = vmax.f32 %v1018, 0.0
  %v1495 = vmax.f32 %v1021, 0.0
  %v1496 = vmax.f32 %v1023, 0.0
  %v1497 = vmax.f32 %v1026, 0.0
  %v1498 = vmax.f32 %v1028, 0.0
  %v1499 = vmax.f32 %v1031, 0.0
  %v1500 = vmax.f32 %v1033, 0.0
  %v1501 = vmax.f32 %v1036, 0.0
  %v1502 = vmax.f32 %v1038, 0.0
  %v1503 = vmax.f32 %v1041, 0.0
  %v1504 = vmax.f32 %v1043, 0.0
  %v1505 = vmax.f32 %v1046, 0.0
  %v1506 = vmax.f32 %v1048, 0.0
  %v1507 = vmax.f32 %v1051, 0.0
  %v1508 = vmax.f32 %v1053, 0.0
  %v1509 = vmax.f32 %v1056, 0.0
  %v1510 = vmax.f32 %v1058, 0.0
  %v1511 = vmax.f32 %v1061, 0.0
  %v1512 = vmax.f32 %v1063, 0.0
  %v1513 = vmax.f32 %v1066, 0.0
  %v1514 = vmax.f32 %v1068, 0.0
  %v1515 = vmax.f32 %v1071, 0.0
  %v1516 = vmax.f32 %v1073, 0.0
  %v1517 = vmax.f32 %v1076, 0.0
  %v1518 = vmax.f32 %v1078, 0.0
  %v1519 = vmax.f32 %v1081, 0.0
  %v1520 = vmax.f32 %v1083, 0.0
  %v1521 = vmax.f32 %v1086, 0.0
  %v1522 = vmax.f32 %v1088, 0.0
  %v1523 = vmax.f32 %v1091, 0.0
  %v1524 = vmax.f32 %v1093, 0.0
  %v1525 = vmax.f32 %v1096, 0.0
  %v1526 = vmax.f32 %v1098, 0.0
  %v1527 = vmax.f32 %v1101, 0.0
  %v1528 = vmax.f32 %v1103, 0.0
  %v1529 = vmax.f32 %v1106, 0.0
  %v1530 = vmax.f32 %v1108, 0.0
  %v1531 = vmax.f32 %v1111, 0.0
  %v1532 = vmax.f32 %v1113, 0.0
  %v1533 = vmax.f32 %v1116, 0.0
  %v1534 = vmax.f32 %v1118, 0.0
  %v1535 = vmax.f32 %v1121, 0.0
  %v1536 = vmax.f32 %v1123, 0.0
  %v1537 = vmax.f32 %v1126, 0.0
  %v1538 = vmax.f32 %v1128, 0.0
  %v1539 = vmax.f32 %v1131, 0.0
  %v1540 = vmax.f32 %v1133, 0.0
  %v1541 = vmax.f32 %v1136, 0.0
  %v1542 = vmax.f32 %v1138, 0.0
  %v1543 = vmax.f32 %v1141, 0.0
  %v1544 = vmax.f32 %v1143, 0.0
  %v1545 = vmax.f32 %v1146, 0.0
  %v1546 = vmax.f32 %v1148, 0.0
  %v1547 = vmax.f32 %v1151, 0.0
  %v1548 = vmax.f32 %v1153, 0.0
  %v1549 = vmax.f32 %v1156, 0.0
  %v1550 = vmax.f32 %v1158, 0.0
  %v1551 = vmax.f32 %v1161, 0.0
  %v1552 = vmax.f32 %v1163, 0.0
  %v1553 = vmax.f32 %v1166, 0.0
  %v1554 = vmax.f32 %v1168, 0.0
  %v1555 = vmax.f32 %v1171, 0.0
  %v1556 = vmax.f32 %v1173, 0.0
  %v1557 = vmax.f32 %v1176, 0.0
  %v1558 = vmax.f32 %v1178, 0.0
  %v1559 = vmax.f32 %v1181, 0.0
  %v1560 = vmax.f32 %v1183, 0.0
  %v1561 = vmax.f32 %v1186, 0.0
  %v1562 = vmax.f32 %v1188, 0.0
  %v1563 = vmax.f32 %v1191, 0.0
  %v1564 = vmax.f32 %v1193, 0.0
  %v1565 = vmax.f32 %v1196, 0.0
  %v1566 = vmax.f32 %v1198, 0.0
  %v1567 = vmax.f32 %v1201, 0.0
  %v1568 = vmax.f32 %v1203, 0.0
  %v1569 = vmax.f32 %v1206, 0.0
  %v1570 = vmax.f32 %v1208, 0.0
  %v1571 = vmax.f32 %v1211, 0.0
  %v1572 = vmax.f32 %v1213, 0.0
  %v1573 = vmax.f32 %v1216, 0.0
  %v1574 = vmax.f32 %v1218, 0.0
  %v1575 = vmax.f32 %v1221, 0.0
  %v1576 = vmax.f32 %v1223, 0.0
  %v1577 = vmax.f32 %v1226, 0.0
  %v1578 = vmax.f32 %v1228, 0.0
  %v1579 = vmax.f32 %v1231, 0.0
  %v1580 = vmax.f32 %v1233, 0.0
  %v1581 = vmax.f32 %v1236, 0.0
  %v1582 = vmax.f32 %v1238, 0.0
  %v1583 = vmax.f32 %v1241, 0.0
  %v1584 = vmax.f32 %v1243, 0.0
  %v1585 = vmax.f32 %v1246, 0.0
  %v1586 = vmax.f32 %v1248, 0.0
  %v1587 = vmax.f32 %v1251, 0.0
  %v1588 = vmax.f32 %v1253, 0.0
  %v1589 = vmax.f32 %v1256, 0.0
  %v1590 = vmax.f32 %v1258, 0.0
  %v1591 = vmax.f32 %v1261, 0.0
  %v1592 = vmax.f32 %v1263, 0.0
  %v1593 = vmax.f32 %v1266, 0.0
  %v1594 = vmax.f32 %v1268, 0.0
  %v1595 = vmax.f32 %v1271, 0.0
  %v1596 = vmax.f32 %v1273, 0.0
  %v1597 = vmax.f32 %v1276, 0.0
  %v1598 = vmax.f32 %v1278, 0.0
  %v1599 = vmax.f32 %v1281, 0.0
  %v1600 = vmax.f32 %v1283, 0.0
  %v1601 = vmax.f32 %v1286, 0.0
  %v1602 = vmax.f32 %v1288, 0.0
  %v1603 = vmax.f32 %v1291, 0.0
  %v1604 = vmax.f32 %v1293, 0.0
  %v1605 = vmax.f32 %v1296, 0.0
  %v1606 = vmax.f32 %v1298, 0.0
  %v1607 = vmax.f32 %v1301, 0.0
  %v1608 = vmax.f32 %v1303, 0.0
  %v1609 = vmax.f32 %v1306, 0.0
  %v1610 = vmax.f32 %v1308, 0.0
  %v1611 = vmax.f32 %v1311, 0.0
  %v1612 = vmax.f32 %v1313, 0.0
  %v1613 = vmax.f32 %v1316, 0.0
  %v1614 = vmax.f32 %v1318, 0.0
  %v1615 = vmax.f32 %v1321, 0.0
  %v1616 = vmax.f32 %v1323, 0.0
  %v1617 = vmax.f32 %v1326, 0.0
  %v1618 = vmax.f32 %v1328, 0.0
  %v1619 = vmax.f32 %v1331, 0.0
  %v1620 = vmax.f32 %v1333, 0.0
  %v1621 = vmax.f32 %v1336, 0.0
  %v1622 = vmax.f32 %v1338, 0.0
  %v1623 = vmax.f32 %v1341, 0.0
  %v1624 = vmax.f32 %v1343, 0.0
  %v1625 = vmax.f32 %v1346, 0.0
  %v1626 = vmax.f32 %v1348, 0.0
  %v1627 = vmax.f32 %v1351, 0.0
  %v1628 = vmax.f32 %v1353, 0.0
  %v1629 = vmax.f32 %v1356, 0.0
  %v1630 = vmax.f32 %v1358, 0.0
  %v1631 = vmax.f32 %v1361, 0.0
  %v1632 = vmax.f32 %v1363, 0.0
  %v1633 = vmax.f32 %v1366, 0.0
  %v1634 = vmax.f32 %v1368, 0.0
  %v1635 = vmax.f32 %v1371, 0.0
  %v1636 = vmax.f32 %v1373, 0.0
  %v1637 = vmax.f32 %v1376, 0.0
  %v1638 = vmax.f32 %v1378, 0.0
  %v1639 = vmax.f32 %v1381, 0.0
  %v1640 = vmax.f32 %v1383, 0.0
  %v1641 = vmax.f32 %v1386, 0.0
  %v1642 = vmax.f32 %v1388, 0.0
  %v1643 = vmax.f32 %v1391, 0.0
  %v1644 = vmax.f32 %v1393, 0.0
  %v1645 = vmax.f32 %v1396, 0.0
  %v1646 = vmax.f32 %v1398, 0.0
  %v1647 = vmax.f32 %v1401, 0.0
  %v1648 = vmax.f32 %v1403, 0.0
  %v1649 = vmax.f32 %v1406, 0.0
  %v1650 = vmax.f32 %v1408, 0.0
  %v1651 = vmax.f32 %v1411, 0.0
  %v1652 = vmax.f32 %v1413, 0.0
  %v1653 = vmax.f32 %v1416, 0.0
  %v1654 = vmax.f32 %v1418, 0.0
  %v1655 = vmax.f32 %v1421, 0.0
  %v1656 = vmax.f32 %v1423, 0.0
  %v1657 = vmax.f32 %v1426, 0.0
  %v1658 = vmax.f32 %v1428, 0.0
  %v1659 = vmax.f32 %v1431, 0.0
  %v1660 = vmax.f32 %v1433, 0.0
  %v1661 = vmax.f32 %v1436, 0.0
  %v1662 = vmax.f32 %v1438, 0.0
  %v1663 = vmax.f32 %v1441, 0.0
  %v1664 = vmax.f32 %v1443, 0.0
  %v1665 = vmax.f32 %v1446, 0.0
  %v1666 = vmax.f32 %v1448, 0.0
  %v1667 = vmax.f32 %v1451, 0.0
  %v1668 = vmax.f32 %v1453, 0.0
  %v1669 = vmax.f32 %v1456, 0.0
  %v1670 = vmax.f32 %v1458, 0.0
  %v1671 = vmax.f32 %v1461, 0.0
  %v1672 = vmax.f32 %v1463, 0.0
  %v1673 = vmax.f32 %v1466, 0.0
  %v1674 = vmax.f32 %v1468, 0.0
  %v1675 = vmax.f32 %v1471, 0.0
  %v1676 = vmax.f32 %v1473, 0.0
  %v1677 = vmax.f32 %v1476, 0.0
  %v1678 = vmax.f32 %v1478, 0.0
  %v1679 = vmax.f32 %v1481, 0.0
  %v1680 = vmax.f32 %v1483, 0.0
  %v1681 = vmax.f32 %v1486, 0.0
  %v1682 = vmax.f32 %v1488, 0.0
  %v1683 = vmax.f32 %v1493, %v1589
  %v1684 = vmax.f32 %v1494, %v1590
  %v1685 = vmax.f32 %v1495, %v1591
  %v1686 = vmax.f32 %v1496, %v1592
  %v1687 = vmax.f32 %v1497, %v1593
  %v1688 = vmax.f32 %v1498, %v1594
  %v1689 = vmax.f32 %v1499, %v1595
  %v1690 = vmax.f32 %v1500, %v1596
  %v1691 = vmax.f32 %v1501, %v1597
  %v1692 = vmax.f32 %v1502, %v1598
  %v1693 = vmax.f32 %v1503, %v1599
  %v1694 = vmax.f32 %v1504, %v1600
  %v1695 = vmax.f32 %v1505, %v1601
  %v1696 = vmax.f32 %v1506, %v1602
  %v1697 = vmax.f32 %v1507, %v1603
  %v1698 = vmax.f32 %v1508, %v1604
  %v1699 = vmax.f32 %v1509, %v1605
  %v1700 = vmax.f32 %v1510, %v1606
  %v1701 = vmax.f32 %v1511, %v1607
  %v1702 = vmax.f32 %v1512, %v1608
  %v1703 = vmax.f32 %v1513, %v1609
  %v1704 = vmax.f32 %v1514, %v1610
  %v1705 = vmax.f32 %v1515, %v1611
  %v1706 = vmax.f32 %v1516, %v1612
  %v1707 = vmax.f32 %v1517, %v1613
  %v1708 = vmax.f32 %v1518, %v1614
  %v1709 = vmax.f32 %v1519, %v1615
  %v1710 = vmax.f32 %v1520, %v1616
  %v1711 = vmax.f32 %v1521, %v1617
  %v1712 = vmax.f32 %v1522, %v1618
  %v1713 = vmax.f32 %v1523, %v1619
  %v1714 = vmax.f32 %v1524, %v1620
  %v1715 = vmax.f32 %v1525, %v1621
  %v1716 = vmax.f32 %v1526, %v1622
  %v1717 = vmax.f32 %v1527, %v1623
  %v1718 = vmax.f32 %v1528, %v1624
  %v1719 = vmax.f32 %v1529, %v1625
  %v1720 = vmax.f32 %v1530, %v1626
  %v1721 = vmax.f32 %v1531, %v1627
  %v1722 = vmax.f32 %v1532, %v1628
  %v1723 = vmax.f32 %v1533, %v1629
  %v1724 = vmax.f32 %v1534, %v1630
  %v1725 = vmax.f32 %v1535, %v1631
  %v1726 = vmax.f32 %v1536, %v1632
  %v1727 = vmax.f32 %v1537, %v1633
  %v1728 = vmax.f32 %v1538, %v1634
  %v1729 = vmax.f32 %v1539, %v1635
  %v1730 = vmax.f32 %v1540, %v1636
  %v1731 = vmax.f32 %v1541, %v1637
  %v1732 = vmax.f32 %v1542, %v1638
  %v1733 = vmax.f32 %v1543, %v1639
  %v1734 = vmax.f32 %v1544, %v1640
  %v1735 = vmax.f32 %v1545, %v1641
  %v1736 = vmax.f32 %v1546, %v1642
  %v1737 = vmax.f32 %v1547, %v1643
  %v1738 = vmax.f32 %v1548, %v1644
  %v1739 = vmax.f32 %v1549, %v1645
  %v1740 = vmax.f32 %v1550, %v1646
  %v1741 = vmax.f32 %v1551, %v1647
  %v1742 = vmax.f32 %v1552, %v1648
  %v1743 = vmax.f32 %v1553, %v1649
  %v1744 = vmax.f32 %v1554, %v1650
  %v1745 = vmax.f32 %v1555, %v1651
  %v1746 = vmax.f32 %v1556, %v1652
  %v1747 = vmax.f32 %v1557, %v1653
  %v1748 = vmax.f32 %v1558, %v1654
  %v1749 = vmax.f32 %v1559, %v1655
  %v1750 = vmax.f32 %v1560, %v1656
  %v1751 = vmax.f32 %v1561, %v1657
  %v1752 = vmax.f32 %v1562, %v1658
  %v1753 = vmax.f32 %v1563, %v1659
  %v1754 = vmax.f32 %v1564, %v1660
  %v1755 = vmax.f32 %v1565, %v1661
  %v1756 = vmax.f32 %v1566, %v1662
  %v1757 = vmax.f32 %v1567, %v1663
  %v1758 = vmax.f32 %v1568, %v1664
  %v1759 = vmax.f32 %v1569, %v1665
  %v1760 = vmax.f32 %v1570, %v1666
  %v1761 = vmax.f32 %v1571, %v1667
  %v1762 = vmax.f32 %v1572, %v1668
  %v1763 = vmax.f32 %v1573, %v1669
  %v1764 = vmax.f32 %v1574, %v1670
  %v1765 = vmax.f32 %v1575, %v1671
  %v1766 = vmax.f32 %v1576, %v1672
  %v1767 = vmax.f32 %v1577, %v1673
  %v1768 = vmax.f32 %v1578, %v1674
  %v1769 = vmax.f32 %v1579, %v1675
  %v1770 = vmax.f32 %v1580, %v1676
  %v1771 = vmax.f32 %v1581, %v1677
  %v1772 = vmax.f32 %v1582, %v1678
  %v1773 = vmax.f32 %v1583, %v1679
  %v1774 = vmax.f32 %v1584, %v1680
  %v1775 = vmax.f32 %v1683, %v1495
  %v1776 = vmax.f32 %v1684, %v1496
  %v1777 = vmax.f32 %v1685, %v1497
  %v1778 = vmax.f32 %v1686, %v1498
  %v1779 = vmax.f32 %v1687, %v1499
  %v1780 = vmax.f32 %v1688, %v1500
  %v1781 = vmax.f32 %v1689, %v1501
  %v1782 = vmax.f32 %v1690, %v1502
  %v1783 = vmax.f32 %v1691, %v1503
  %v1784 = vmax.f32 %v1692, %v1504
  %v1785 = vmax.f32 %v1693, %v1505
  %v1786 = vmax.f32 %v1694, %v1506
  %v1787 = vmax.f32 %v1695, %v1507
  %v1788 = vmax.f32 %v1696, %v1508
  %v1789 = vmax.f32 %v1697, %v1509
  %v1790 = vmax.f32 %v1698, %v1510
  %v1791 = vmax.f32 %v1699, %v1511
  %v1792 = vmax.f32 %v1700, %v1512
  %v1793 = vmax.f32 %v1701, %v1513
  %v1794 = vmax.f32 %v1702, %v1514
  %v1795 = vmax.f32 %v1703, %v1515
  %v1796 = vmax.f32 %v1704, %v1516
  %v1797 = vmax.f32 %v1705, %v1517
  %v1798 = vmax.f32 %v1706, %v1518
  %v1799 = vmax.f32 %v1707, %v1519
  %v1800 = vmax.f32 %v1708, %v1520
  %v1801 = vmax.f32 %v1709, %v1521
  %v1802 = vmax.f32 %v1710, %v1522
  %v1803 = vmax.f32 %v1711, %v1523
  %v1804 = vmax.f32 %v1712, %v1524
  %v1805 = vmax.f32 %v1713, %v1525
  %v1806 = vmax.f32 %v1714, %v1526
  %v1807 = vmax.f32 %v1715, %v1527
  %v1808 = vmax.f32 %v1716, %v1528
  %v1809 = vmax.f32 %v1717, %v1529
  %v1810 = vmax.f32 %v1718, %v1530
  %v1811 = vmax.f32 %v1719, %v1531
  %v1812 = vmax.f32 %v1720, %v1532
  %v1813 = vmax.f32 %v1721, %v1533
  %v1814 = vmax.f32 %v1722, %v1534
  %v1815 = vmax.f32 %v1723, %v1535
  %v1816 = vmax.f32 %v1724, %v1536
  %v1817 = vmax.f32 %v1725, %v1537
  %v1818 = vmax.f32 %v1726, %v1538
  %v1819 = vmax.f32 %v1727, %v1539
  %v1820 = vmax.f32 %v1728, %v1540
  %v1821 = vmax.f32 %v1729, %v1541
  %v1822 = vmax.f32 %v1730, %v1542
  %v1823 = vmax.f32 %v1731, %v1543
  %v1824 = vmax.f32 %v1732, %v1544
  %v1825 = vmax.f32 %v1733, %v1545
  %v1826 = vmax.f32 %v1734, %v1546
  %v1827 = vmax.f32 %v1735, %v1547
  %v1828 = vmax.f32 %v1736, %v1548
  %v1829 = vmax.f32 %v1737, %v1549
  %v1830 = vmax.f32 %v1738, %v1550
  %v1831 = vmax.f32 %v1739, %v1551
  %v1832 = vmax.f32 %v1740, %v1552
  %v1833 = vmax.f32 %v1741, %v1553
  %v1834 = vmax.f32 %v1742, %v1554
  %v1835 = vmax.f32 %v1743, %v1555
  %v1836 = vmax.f32 %v1744, %v1556
  %v1837 = vmax.f32 %v1745, %v1557
  %v1838 = vmax.f32 %v1746, %v1558
  %v1839 = vmax.f32 %v1747, %v1559
  %v1840 = vmax.f32 %v1748, %v1560
  %v1841 = vmax.f32 %v1749, %v1561
  %v1842 = vmax.f32 %v1750, %v1562
  %v1843 = vmax.f32 %v1751, %v1563
  %v1844 = vmax.f32 %v1752, %v1564
  %v1845 = vmax.f32 %v1753, %v1565
  %v1846 = vmax.f32 %v1754, %v1566
  %v1847 = vmax.f32 %v1755, %v1567
  %v1848 = vmax.f32 %v1756, %v1568
  %v1849 = vmax.f32 %v1757, %v1569
  %v1850 = vmax.f32 %v1758, %v1570
  %v1851 = vmax.f32 %v1759, %v1571
  %v1852 = vmax.f32 %v1760, %v1572
  %v1853 = vmax.f32 %v1761, %v1573
  %v1854 = vmax.f32 %v1762, %v1574
  %v1855 = vmax.f32 %v1763, %v1575
  %v1856 = vmax.f32 %v1764, %v1576
  %v1857 = vmax.f32 %v1765, %v1577
  %v1858 = vmax.f32 %v1766, %v1578
  %v1859 = vmax.f32 %v1767, %v1579
  %v1860 = vmax.f32 %v1768, %v1580
  %v1861 = vmax.f32 %v1769, %v1581
  %v1862 = vmax.f32 %v1770, %v1582
  %v1863 = vmax.f32 %v1771, %v1583
  %v1864 = vmax.f32 %v1772, %v1584
  %v1865 = vmax.f32 %v1773, %v1585
  %v1866 = vmax.f32 %v1774, %v1586
  %v1867 = vmax.f32 %v1775, %v1591
  %v1868 = vmax.f32 %v1776, %v1592
  %v1869 = vmax.f32 %v1777, %v1593
  %v1870 = vmax.f32 %v1778, %v1594
  %v1871 = vmax.f32 %v1779, %v1595
  %v1872 = vmax.f32 %v1780, %v1596
  %v1873 = vmax.f32 %v1781, %v1597
  %v1874 = vmax.f32 %v1782, %v1598
  %v1875 = vmax.f32 %v1783, %v1599
  %v1876 = vmax.f32 %v1784, %v1600
  %v1877 = vmax.f32 %v1785, %v1601
  %v1878 = vmax.f32 %v1786, %v1602
  %v1879 = vmax.f32 %v1787, %v1603
  %v1880 = vmax.f32 %v1788, %v1604
  %v1881 = vmax.f32 %v1789, %v1605
  %v1882 = vmax.f32 %v1790, %v1606
  %v1883 = vmax.f32 %v1791, %v1607
  %v1884 = vmax.f32 %v1792, %v1608
  %v1885 = vmax.f32 %v1793, %v1609
  %v1886 = vmax.f32 %v1794, %v1610
  %v1887 = vmax.f32 %v1795, %v1611
  %v1888 = vmax.f32 %v1796, %v1612
  %v1889 = vmax.f32 %v1797, %v1613
  %v1890 = vmax.f32 %v1798, %v1614
  %v1891 = vmax.f32 %v1799, %v1615
  %v1892 = vmax.f32 %v1800, %v1616
  %v1893 = vmax.f32 %v1801, %v1617
  %v1894 = vmax.f32 %v1802, %v1618
  %v1895 = vmax.f32 %v1803, %v1619
  %v1896 = vmax.f32 %v1804, %v1620
  %v1897 = vmax.f32 %v1805, %v1621
  %v1898 = vmax.f32 %v1806, %v1622
  %v1899 = vmax.f32 %v1807, %v1623
  %v1900 = vmax.f32 %v1808, %v1624
  %v1901 = vmax.f32 %v1809, %v1625
  %v1902 = vmax.f32 %v1810, %v1626
  %v1903 = vmax.f32 %v1811, %v1627
  %v1904 = vmax.f32 %v1812, %v1628
  %v1905 = vmax.f32 %v1813, %v1629
  %v1906 = vmax.f32 %v1814, %v1630
  %v1907 = vmax.f32 %v1815, %v1631
  %v1908 = vmax.f32 %v1816, %v1632
  %v1909 = vmax.f32 %v1817, %v1633
  %v1910 = vmax.f32 %v1818, %v1634
  %v1911 = vmax.f32 %v1819, %v1635
  %v1912 = vmax.f32 %v1820, %v1636
  %v1913 = vmax.f32 %v1821, %v1637
  %v1914 = vmax.f32 %v1822, %v1638
  %v1915 = vmax.f32 %v1823, %v1639
  %v1916 = vmax.f32 %v1824, %v1640
  %v1917 = vmax.f32 %v1825, %v1641
  %v1918 = vmax.f32 %v1826, %v1642
  %v1919 = vmax.f32 %v1827, %v1643
  %v1920 = vmax.f32 %v1828, %v1644
  %v1921 = vmax.f32 %v1829, %v1645
  %v1922 = vmax.f32 %v1830, %v1646
  %v1923 = vmax.f32 %v1831, %v1647
  %v1924 = vmax.f32 %v1832, %v1648
  %v1925 = vmax.f32 %v1833, %v1649
  %v1926 = vmax.f32 %v1834, %v1650
  %v1927 = vmax.f32 %v1835, %v1651
  %v1928 = vmax.f32 %v1836, %v1652
  %v1929 = vmax.f32 %v1837, %v1653
  %v1930 = vmax.f32 %v1838, %v1654
  %v1931 = vmax.f32 %v1839, %v1655
  %v1932 = vmax.f32 %v1840, %v1656
  %v1933 = vmax.f32 %v1841, %v1657
  %v1934 = vmax.f32 %v1842, %v1658
  %v1935 = vmax.f32 %v1843, %v1659
  %v1936 = vmax.f32 %v1844, %v1660
  %v1937 = vmax.f32 %v1845, %v1661
  %v1938 = vmax.f32 %v1846, %v1662
  %v1939 = vmax.f32 %v1847, %v1663
  %v1940 = vmax.f32 %v1848, %v1664
  %v1941 = vmax.f32 %v1849, %v1665
  %v1942 = vmax.f32 %v1850, %v1666
  %v1943 = vmax.f32 %v1851, %v1667
  %v1944 = vmax.f32 %v1852, %v1668
  %v1945 = vmax.f32 %v1853, %v1669
  %v1946 = vmax.f32 %v1854, %v1670
  %v1947 = vmax.f32 %v1855, %v1671
  %v1948 = vmax.f32 %v1856, %v1672
  %v1949 = vmax.f32 %v1857, %v1673
  %v1950 = vmax.f32 %v1858, %v1674
  %v1951 = vmax.f32 %v1859, %v1675
  %v1952 = vmax.f32 %v1860, %v1676
  %v1953 = vmax.f32 %v1861, %v1677
  %v1954 = vmax.f32 %v1862, %v1678
  %v1955 = vmax.f32 %v1863, %v1679
  %v1956 = vmax.f32 %v1864, %v1680
  %v1957 = vmax.f32 %v1865, %v1681
  %v1958 = vmax.f32 %v1866, %v1682
  %v1959 = vmax.f32 %v1867, %v1497
  %v1960 = vmax.f32 %v1868, %v1498
  %v1961 = vmax.f32 %v1869, %v1499
  %v1962 = vmax.f32 %v1870, %v1500
  %v1963 = vmax.f32 %v1871, %v1501
  %v1964 = vmax.f32 %v1872, %v1502
  %v1965 = vmax.f32 %v1873, %v1503
  %v1966 = vmax.f32 %v1874, %v1504
  %v1967 = vmax.f32 %v1875, %v1505
  %v1968 = vmax.f32 %v1876, %v1506
  %v1969 = vmax.f32 %v1877, %v1507
  %v1970 = vmax.f32 %v1878, %v1508
  %v1971 = vmax.f32 %v1879, %v1509
  %v1972 = vmax.f32 %v1880, %v1510
  %v1973 = vmax.f32 %v1881, %v1511
  %v1974 = vmax.f32 %v1882, %v1512
  %v1975 = vmax.f32 %v1883, %v1513
  %v1976 = vmax.f32 %v1884, %v1514
  %v1977 = vmax.f32 %v1885, %v1515
  %v1978 = vmax.f32 %v1886, %v1516
  %v1979 = vmax.f32 %v1887, %v1517
  %v1980 = vmax.f32 %v1888, %v1518
  %v1981 = vmax.f32 %v1889, %v1519
  %v1982 = vmax.f32 %v1890, %v1520
  %v1983 = vmax.f32 %v1891, %v1521
  %v1984 = vmax.f32 %v1892, %v1522
  %v1985 = vmax.f32 %v1893, %v1523
  %v1986 = vmax.f32 %v1894, %v1524
  %v1987 = vmax.f32 %v1895, %v1525
  %v1988 = vmax.f32 %v1896, %v1526
  %v1989 = vmax.f32 %v1897, %v1527
  %v1990 = vmax.f32 %v1898, %v1528
  %v1991 = vmax.f32 %v1899, %v1529
  %v1992 = vmax.f32 %v1900, %v1530
  %v1993 = vmax.f32 %v1901, %v1531
  %v1994 = vmax.f32 %v1902, %v1532
  %v1995 = vmax.f32 %v1903, %v1533
  %v1996 = vmax.f32 %v1904, %v1534
  %v1997 = vmax.f32 %v1905, %v1535
  %v1998 = vmax.f32 %v1906, %v1536
  %v1999 = vmax.f32 %v1907, %v1537
  %v2000 = vmax.f32 %v1908, %v1538
  %v2001 = vmax.f32 %v1909, %v1539
  %v2002 = vmax.f32 %v1910, %v1540
  %v2003 = vmax.f32 %v1911, %v1541
  %v2004 = vmax.f32 %v1912, %v1542
  %v2005 = vmax.f32 %v1913, %v1543
  %v2006 = vmax.f32 %v1914, %v1544
  %v2007 = vmax.f32 %v1915, %v1545
  %v2008 = vmax.f32 %v1916, %v1546
  %v2009 = vmax.f32 %v1917, %v1547
  %v2010 = vmax.f32 %v1918, %v1548
  %v2011 = vmax.f32 %v1919, %v1549
  %v2012 = vmax.f32 %v1920, %v1550
  %v2013 = vmax.f32 %v1921, %v1551
  %v2014 = vmax.f32 %v1922, %v1552
  %v2015 = vmax.f32 %v1923, %v1553
  %v2016 = vmax.f32 %v1924, %v1554
  %v2017 = vmax.f32 %v1925, %v1555
  %v2018 = vmax.f32 %v1926, %v1556
  %v2019 = vmax.f32 %v1927, %v1557
  %v2020 = vmax.f32 %v1928, %v1558
  %v2021 = vmax.f32 %v1929, %v1559
  %v2022 = vmax.f32 %v1930, %v1560
  %v2023 = vmax.f32 %v1931, %v1561
  %v2024 = vmax.f32 %v1932, %v1562
  %v2025 = vmax.f32 %v1933, %v1563
  %v2026 = vmax.f32 %v1934, %v1564
  %v2027 = vmax.f32 %v1935, %v1565
  %v2028 = vmax.f32 %v1936, %v1566
  %v2029 = vmax.f32 %v1937, %v1567
  %v2030 = vmax.f32 %v1938, %v1568
  %v2031 = vmax.f32 %v1939, %v1569
  %v2032 = vmax.f32 %v1940, %v1570
  %v2033 = vmax.f32 %v1941, %v1571
  %v2034 = vmax.f32 %v1942, %v1572
  %v2035 = vmax.f32 %v1943, %v1573
  %v2036 = vmax.f32 %v1944, %v1574
  %v2037 = vmax.f32 %v1945, %v1575
  %v2038 = vmax.f32 %v1946, %v1576
  %v2039 = vmax.f32 %v1947, %v1577
  %v2040 = vmax.f32 %v1948, %v1578
  %v2041 = vmax.f32 %v1949, %v1579
  %v2042 = vmax.f32 %v1950, %v1580
  %v2043 = vmax.f32 %v1951, %v1581
  %v2044 = vmax.f32 %v1952, %v1582
  %v2045 = vmax.f32 %v1953, %v1583
  %v2046 = vmax.f32 %v1954, %v1584
  %v2047 = vmax.f32 %v1955, %v1585
  %v2048 = vmax.f32 %v1956, %v1586
  %v2049 = vmax.f32 %v1957, %v1587
  %v2050 = vmax.f32 %v1958, %v1588
  %v2051 = vpack.c.bf16 %v1959, %v1959
  %v2052 = vpack.c.bf16 %v1960, %v1960
  %v2053 = vpack.c.bf16 %v1961, %v1961
  %v2054 = vpack.c.bf16 %v1962, %v1962
  %v2055 = vpack.c.bf16 %v1963, %v1963
  %v2056 = vpack.c.bf16 %v1964, %v1964
  %v2057 = vpack.c.bf16 %v1965, %v1965
  %v2058 = vpack.c.bf16 %v1966, %v1966
  %v2059 = vpack.c.bf16 %v1967, %v1967
  %v2060 = vpack.c.bf16 %v1968, %v1968
  %v2061 = vpack.c.bf16 %v1969, %v1969
  %v2062 = vpack.c.bf16 %v1970, %v1970
  %v2063 = vpack.c.bf16 %v1971, %v1971
  %v2064 = vpack.c.bf16 %v1972, %v1972
  %v2065 = vpack.c.bf16 %v1973, %v1973
  %v2066 = vpack.c.bf16 %v1974, %v1974
  %v2067 = vpack.c.bf16 %v1975, %v1975
  %v2068 = vpack.c.bf16 %v1976, %v1976
  %v2069 = vpack.c.bf16 %v1977, %v1977
  %v2070 = vpack.c.bf16 %v1978, %v1978
  %v2071 = vpack.c.bf16 %v1979, %v1979
  %v2072 = vpack.c.bf16 %v1980, %v1980
  %v2073 = vpack.c.bf16 %v1981, %v1981
  %v2074 = vpack.c.bf16 %v1982, %v1982
  %v2075 = vpack.c.bf16 %v1983, %v1983
  %v2076 = vpack.c.bf16 %v1984, %v1984
  %v2077 = vpack.c.bf16 %v1985, %v1985
  %v2078 = vpack.c.bf16 %v1986, %v1986
  %v2079 = vpack.c.bf16 %v1987, %v1987
  %v2080 = vpack.c.bf16 %v1988, %v1988
  %v2081 = vpack.c.bf16 %v1989, %v1989
  %v2082 = vpack.c.bf16 %v1990, %v1990
  %v2083 = vpack.c.bf16 %v1991, %v1991
  %v2084 = vpack.c.bf16 %v1992, %v1992
  %v2085 = vpack.c.bf16 %v1993, %v1993
  %v2086 = vpack.c.bf16 %v1994, %v1994
  %v2087 = vpack.c.bf16 %v1995, %v1995
  %v2088 = vpack.c.bf16 %v1996, %v1996
  %v2089 = vpack.c.bf16 %v1997, %v1997
  %v2090 = vpack.c.bf16 %v1998, %v1998
  %v2091 = vpack.c.bf16 %v1999, %v1999
  %v2092 = vpack.c.bf16 %v2000, %v2000
  %v2093 = vpack.c.bf16 %v2001, %v2001
  %v2094 = vpack.c.bf16 %v2002, %v2002
  %v2095 = vpack.c.bf16 %v2003, %v2003
  %v2096 = vpack.c.bf16 %v2004, %v2004
  %v2097 = vpack.c.bf16 %v2005, %v2005
  %v2098 = vpack.c.bf16 %v2006, %v2006
  %v2099 = vpack.c.bf16 %v2007, %v2007
  %v2100 = vpack.c.bf16 %v2008, %v2008
  %v2101 = vpack.c.bf16 %v2009, %v2009
  %v2102 = vpack.c.bf16 %v2010, %v2010
  %v2103 = vpack.c.bf16 %v2011, %v2011
  %v2104 = vpack.c.bf16 %v2012, %v2012
  %v2105 = vpack.c.bf16 %v2013, %v2013
  %v2106 = vpack.c.bf16 %v2014, %v2014
  %v2107 = vpack.c.bf16 %v2015, %v2015
  %v2108 = vpack.c.bf16 %v2016, %v2016
  %v2109 = vpack.c.bf16 %v2017, %v2017
  %v2110 = vpack.c.bf16 %v2018, %v2018
  %v2111 = vpack.c.bf16 %v2019, %v2019
  %v2112 = vpack.c.bf16 %v2020, %v2020
  %v2113 = vpack.c.bf16 %v2021, %v2021
  %v2114 = vpack.c.bf16 %v2022, %v2022
  %v2115 = vpack.c.bf16 %v2023, %v2023
  %v2116 = vpack.c.bf16 %v2024, %v2024
  %v2117 = vpack.c.bf16 %v2025, %v2025
  %v2118 = vpack.c.bf16 %v2026, %v2026
  %v2119 = vpack.c.bf16 %v2027, %v2027
  %v2120 = vpack.c.bf16 %v2028, %v2028
  %v2121 = vpack.c.bf16 %v2029, %v2029
  %v2122 = vpack.c.bf16 %v2030, %v2030
  %v2123 = vpack.c.bf16 %v2031, %v2031
  %v2124 = vpack.c.bf16 %v2032, %v2032
  %v2125 = vpack.c.bf16 %v2033, %v2033
  %v2126 = vpack.c.bf16 %v2034, %v2034
  %v2127 = vpack.c.bf16 %v2035, %v2035
  %v2128 = vpack.c.bf16 %v2036, %v2036
  %v2129 = vpack.c.bf16 %v2037, %v2037
  %v2130 = vpack.c.bf16 %v2038, %v2038
  %v2131 = vpack.c.bf16 %v2039, %v2039
  %v2132 = vpack.c.bf16 %v2040, %v2040
  %v2133 = vpack.c.bf16 %v2041, %v2041
  %v2134 = vpack.c.bf16 %v2042, %v2042
  %v2135 = vpack.c.bf16 %v2043, %v2043
  %v2136 = vpack.c.bf16 %v2044, %v2044
  %v2137 = vpack.c.bf16 %v2045, %v2045
  %v2138 = vpack.c.bf16 %v2046, %v2046
  %v2139 = vpack.c.bf16 %v2047, %v2047
  %v2140 = vpack.c.bf16 %v2048, %v2048
  %v2141 = vpack.c.bf16 %v2049, %v2049
  %v2142 = vpack.c.bf16 %v2050, %v2050
  %v2227 = vunpack.c.l.b16 %v2051
  %v2228 = vunpack.c.l.b16 %v2052
  %v2229 = vunpack.c.l.b16 %v2053
  %v2230 = vunpack.c.l.b16 %v2054
  %v2231 = vunpack.c.l.b16 %v2055
  %v2232 = vunpack.c.l.b16 %v2056
  %v2233 = vunpack.c.l.b16 %v2057
  %v2234 = vunpack.c.l.b16 %v2058
  %v2235 = vunpack.c.l.b16 %v2059
  %v2236 = vunpack.c.l.b16 %v2060
  %v2237 = vunpack.c.l.b16 %v2061
  %v2238 = vunpack.c.l.b16 %v2062
  %v2239 = vunpack.c.l.b16 %v2063
  %v2240 = vunpack.c.l.b16 %v2064
  %v2241 = vunpack.c.l.b16 %v2065
  %v2242 = vunpack.c.l.b16 %v2066
  %v2243 = vunpack.c.l.b16 %v2067
  %v2244 = vunpack.c.l.b16 %v2068
  %v2245 = vunpack.c.l.b16 %v2069
  %v2246 = vunpack.c.l.b16 %v2070
  %v2247 = vunpack.c.l.b16 %v2071
  %v2248 = vunpack.c.l.b16 %v2072
  %v2249 = vunpack.c.l.b16 %v2073
  %v2250 = vunpack.c.l.b16 %v2074
  %v2251 = vunpack.c.l.b16 %v2075
  %v2252 = vunpack.c.l.b16 %v2076
  %v2253 = vunpack.c.l.b16 %v2077
  %v2254 = vunpack.c.l.b16 %v2078
  %v2255 = vunpack.c.l.b16 %v2079
  %v2256 = vunpack.c.l.b16 %v2080
  %v2257 = vunpack.c.l.b16 %v2081
  %v2258 = vunpack.c.l.b16 %v2082
  %v2259 = vunpack.c.l.b16 %v2083
  %v2260 = vunpack.c.l.b16 %v2084
  %v2261 = vunpack.c.l.b16 %v2085
  %v2262 = vunpack.c.l.b16 %v2086
  %v2263 = vunpack.c.l.b16 %v2087
  %v2264 = vunpack.c.l.b16 %v2088
  %v2265 = vunpack.c.l.b16 %v2089
  %v2266 = vunpack.c.l.b16 %v2090
  %v2267 = vunpack.c.l.b16 %v2091
  %v2268 = vunpack.c.l.b16 %v2092
  %v2269 = vunpack.c.l.b16 %v2093
  %v2270 = vunpack.c.l.b16 %v2094
  %v2271 = vunpack.c.l.b16 %v2095
  %v2272 = vunpack.c.l.b16 %v2096
  %v2273 = vunpack.c.l.b16 %v2097
  %v2274 = vunpack.c.l.b16 %v2098
  %v2275 = vunpack.c.l.b16 %v2099
  %v2276 = vunpack.c.l.b16 %v2100
  %v2277 = vunpack.c.l.b16 %v2101
  %v2278 = vunpack.c.l.b16 %v2102
  %v2279 = vunpack.c.l.b16 %v2103
  %v2280 = vunpack.c.l.b16 %v2104
  %v2281 = vunpack.c.l.b16 %v2105
  %v2282 = vunpack.c.l.b16 %v2106
  %v2283 = vunpack.c.l.b16 %v2107
  %v2284 = vunpack.c.l.b16 %v2108
  %v2285 = vunpack.c.l.b16 %v2109
  %v2286 = vunpack.c.l.b16 %v2110
  %v2287 = vunpack.c.l.b16 %v2111
  %v2288 = vunpack.c.l.b16 %v2112
  %v2289 = vunpack.c.l.b16 %v2113
  %v2290 = vunpack.c.l.b16 %v2114
  %v2291 = vunpack.c.l.b16 %v2115
  %v2292 = vunpack.c.l.b16 %v2116
  %v2293 = vunpack.c.l.b16 %v2117
  %v2294 = vunpack.c.l.b16 %v2118
  %v2295 = vunpack.c.l.b16 %v2119
  %v2296 = vunpack.c.l.b16 %v2120
  %v2297 = vunpack.c.l.b16 %v2121
  %v2298 = vunpack.c.l.b16 %v2122
  %v2299 = vunpack.c.l.b16 %v2123
  %v2300 = vunpack.c.l.b16 %v2124
  %v2301 = vunpack.c.l.b16 %v2125
  %v2302 = vunpack.c.l.b16 %v2126
  %v2303 = vunpack.c.l.b16 %v2127
  %v2304 = vunpack.c.l.b16 %v2128
  %v2305 = vunpack.c.l.b16 %v2129
  %v2306 = vunpack.c.l.b16 %v2130
  %v2307 = vunpack.c.l.b16 %v2131
  %v2308 = vunpack.c.l.b16 %v2132
  %v2309 = vunpack.c.l.b16 %v2133
  %v2310 = vunpack.c.l.b16 %v2134
  %v2311 = vpack.c.b16 %v2228, %v2227
  %v2312 = vpack.c.b16 %v2230, %v2229
  %v2313 = vpack.c.b16 %v2232, %v2231
  %v2314 = vpack.c.b16 %v2234, %v2233
  %v2315 = vpack.c.b16 %v2236, %v2235
  %v2316 = vpack.c.b16 %v2238, %v2237
  %v2317 = vpack.c.b16 %v2240, %v2239
  %v2318 = vpack.c.b16 %v2242, %v2241
  %v2319 = vpack.c.b16 %v2244, %v2243
  %v2320 = vpack.c.b16 %v2246, %v2245
  %v2321 = vpack.c.b16 %v2248, %v2247
  %v2322 = vpack.c.b16 %v2250, %v2249
  %v2323 = vpack.c.b16 %v2252, %v2251
  %v2324 = vpack.c.b16 %v2254, %v2253
  %v2325 = vpack.c.b16 %v2256, %v2255
  %v2326 = vpack.c.b16 %v2258, %v2257
  %v2327 = vpack.c.b16 %v2260, %v2259
  %v2328 = vpack.c.b16 %v2262, %v2261
  %v2329 = vpack.c.b16 %v2264, %v2263
  %v2330 = vpack.c.b16 %v2266, %v2265
  %v2331 = vpack.c.b16 %v2268, %v2267
  %v2332 = vpack.c.b16 %v2270, %v2269
  %v2333 = vpack.c.b16 %v2272, %v2271
  %v2334 = vpack.c.b16 %v2274, %v2273
  %v2335 = vpack.c.b16 %v2276, %v2275
  %v2336 = vpack.c.b16 %v2278, %v2277
  %v2337 = vpack.c.b16 %v2280, %v2279
  %v2338 = vpack.c.b16 %v2282, %v2281
  %v2339 = vpack.c.b16 %v2284, %v2283
  %v2340 = vpack.c.b16 %v2286, %v2285
  %v2341 = vpack.c.b16 %v2288, %v2287
  %v2342 = vpack.c.b16 %v2290, %v2289
  %v2343 = vpack.c.b16 %v2292, %v2291
  %v2344 = vpack.c.b16 %v2294, %v2293
  %v2345 = vpack.c.b16 %v2296, %v2295
  %v2346 = vpack.c.b16 %v2298, %v2297
  %v2347 = vpack.c.b16 %v2300, %v2299
  %v2348 = vpack.c.b16 %v2302, %v2301
  %v2349 = vpack.c.b16 %v2304, %v2303
  %v2350 = vpack.c.b16 %v2306, %v2305
  %v2351 = vpack.c.b16 %v2308, %v2307
  %v2352 = vpack.c.b16 %v2310, %v2309
  %v2355 = vunpack.c.l.b16 %v2135
  %v2356 = vunpack.c.l.b16 %v2136
  %v2357 = vpack.c.b16 %v2356, %v2355
  %2358 = vrot.lane.b32.xlu0 %v2312, 32
  %v2359 = vpop.permute.xlu0 %2358
  %2360 = vrot.lane.b32.xlu0 %v2313, 32
  %v2361 = vpop.permute.xlu0 %2360
  %2362 = vrot.lane.b32.xlu0 %v2314, 32
  %v2363 = vpop.permute.xlu0 %2362
  %2364 = vrot.lane.b32.xlu0 %v2315, 32
  %v2365 = vpop.permute.xlu0 %2364
  %2366 = vrot.lane.b32.xlu0 %v2316, 32
  %v2367 = vpop.permute.xlu0 %2366
  %2368 = vrot.lane.b32.xlu0 %v2317, 32
  %v2369 = vpop.permute.xlu0 %2368
  %2370 = vrot.lane.b32.xlu0 %v2318, 32
  %v2371 = vpop.permute.xlu0 %2370
  %2372 = vrot.lane.b32.xlu0 %v2319, 32
  %v2373 = vpop.permute.xlu0 %2372
  %2374 = vrot.lane.b32.xlu0 %v2320, 32
  %v2375 = vpop.permute.xlu0 %2374
  %2376 = vrot.lane.b32.xlu0 %v2321, 32
  %v2377 = vpop.permute.xlu0 %2376
  %2378 = vrot.lane.b32.xlu0 %v2322, 32
  %v2379 = vpop.permute.xlu0 %2378
  %2380 = vrot.lane.b32.xlu0 %v2323, 32
  %v2381 = vpop.permute.xlu0 %2380
  %2382 = vrot.lane.b32.xlu0 %v2324, 32
  %v2383 = vpop.permute.xlu0 %2382
  %2384 = vrot.lane.b32.xlu0 %v2325, 32
  %v2385 = vpop.permute.xlu0 %2384
  %2386 = vrot.lane.b32.xlu0 %v2326, 32
  %v2387 = vpop.permute.xlu0 %2386
  %2388 = vrot.lane.b32.xlu0 %v2327, 32
  %v2389 = vpop.permute.xlu0 %2388
  %2390 = vrot.lane.b32.xlu0 %v2328, 32
  %v2391 = vpop.permute.xlu0 %2390
  %2392 = vrot.lane.b32.xlu0 %v2329, 32
  %v2393 = vpop.permute.xlu0 %2392
  %2394 = vrot.lane.b32.xlu0 %v2330, 32
  %v2395 = vpop.permute.xlu0 %2394
  %2396 = vrot.lane.b32.xlu0 %v2331, 32
  %v2397 = vpop.permute.xlu0 %2396
  %2398 = vrot.lane.b32.xlu0 %v2332, 32
  %v2399 = vpop.permute.xlu0 %2398
  %2400 = vrot.lane.b32.xlu0 %v2333, 32
  %v2401 = vpop.permute.xlu0 %2400
  %2402 = vrot.lane.b32.xlu0 %v2334, 32
  %v2403 = vpop.permute.xlu0 %2402
  %2404 = vrot.lane.b32.xlu0 %v2335, 32
  %v2405 = vpop.permute.xlu0 %2404
  %2406 = vrot.lane.b32.xlu0 %v2336, 32
  %v2407 = vpop.permute.xlu0 %2406
  %2408 = vrot.lane.b32.xlu0 %v2337, 32
  %v2409 = vpop.permute.xlu0 %2408
  %2410 = vrot.lane.b32.xlu0 %v2338, 32
  %v2411 = vpop.permute.xlu0 %2410
  %2412 = vrot.lane.b32.xlu0 %v2339, 32
  %v2413 = vpop.permute.xlu0 %2412
  %2414 = vrot.lane.b32.xlu0 %v2340, 32
  %v2415 = vpop.permute.xlu0 %2414
  %2416 = vrot.lane.b32.xlu0 %v2341, 32
  %v2417 = vpop.permute.xlu0 %2416
  %2418 = vrot.lane.b32.xlu0 %v2342, 32
  %v2419 = vpop.permute.xlu0 %2418
  %2420 = vrot.lane.b32.xlu0 %v2343, 32
  %v2421 = vpop.permute.xlu0 %2420
  %2422 = vrot.lane.b32.xlu0 %v2344, 32
  %v2423 = vpop.permute.xlu0 %2422
  %2424 = vrot.lane.b32.xlu0 %v2345, 32
  %v2425 = vpop.permute.xlu0 %2424
  %2426 = vrot.lane.b32.xlu0 %v2346, 32
  %v2427 = vpop.permute.xlu0 %2426
  %2428 = vrot.lane.b32.xlu0 %v2347, 32
  %v2429 = vpop.permute.xlu0 %2428
  %2430 = vrot.lane.b32.xlu0 %v2348, 32
  %v2431 = vpop.permute.xlu0 %2430
  %2432 = vrot.lane.b32.xlu0 %v2349, 32
  %v2433 = vpop.permute.xlu0 %2432
  %2434 = vrot.lane.b32.xlu0 %v2350, 32
  %v2435 = vpop.permute.xlu0 %2434
  %2436 = vrot.lane.b32.xlu0 %v2351, 32
  %v2437 = vpop.permute.xlu0 %2436
  %2438 = vrot.lane.b32.xlu0 %v2352, 32
  %v2439 = vpop.permute.xlu0 %2438
  %2440 = vrot.lane.b32.xlu0 %v2357, 32
  %v2441 = vpop.permute.xlu0 %2440
  %v2444 = vunpack.c.l.b16 %v2137
  %v2445 = vunpack.c.l.b16 %v2138
  %v2446 = vpack.c.b16 %v2445, %v2444
  %2447 = vrot.lane.b32.xlu0 %v2313, 64
  %v2448 = vpop.permute.xlu0 %2447
  %2449 = vrot.lane.b32.xlu0 %v2314, 64
  %v2450 = vpop.permute.xlu0 %2449
  %2451 = vrot.lane.b32.xlu0 %v2315, 64
  %v2452 = vpop.permute.xlu0 %2451
  %2453 = vrot.lane.b32.xlu0 %v2316, 64
  %v2454 = vpop.permute.xlu0 %2453
  %2455 = vrot.lane.b32.xlu0 %v2317, 64
  %v2456 = vpop.permute.xlu0 %2455
  %2457 = vrot.lane.b32.xlu0 %v2318, 64
  %v2458 = vpop.permute.xlu0 %2457
  %2459 = vrot.lane.b32.xlu0 %v2319, 64
  %v2460 = vpop.permute.xlu0 %2459
  %2461 = vrot.lane.b32.xlu0 %v2320, 64
  %v2462 = vpop.permute.xlu0 %2461
  %2463 = vrot.lane.b32.xlu0 %v2321, 64
  %v2464 = vpop.permute.xlu0 %2463
  %2465 = vrot.lane.b32.xlu0 %v2322, 64
  %v2466 = vpop.permute.xlu0 %2465
  %2467 = vrot.lane.b32.xlu0 %v2323, 64
  %v2468 = vpop.permute.xlu0 %2467
  %2469 = vrot.lane.b32.xlu0 %v2324, 64
  %v2470 = vpop.permute.xlu0 %2469
  %2471 = vrot.lane.b32.xlu0 %v2325, 64
  %v2472 = vpop.permute.xlu0 %2471
  %2473 = vrot.lane.b32.xlu0 %v2326, 64
  %v2474 = vpop.permute.xlu0 %2473
  %2475 = vrot.lane.b32.xlu0 %v2327, 64
  %v2476 = vpop.permute.xlu0 %2475
  %2477 = vrot.lane.b32.xlu0 %v2328, 64
  %v2478 = vpop.permute.xlu0 %2477
  %2479 = vrot.lane.b32.xlu0 %v2329, 64
  %v2480 = vpop.permute.xlu0 %2479
  %2481 = vrot.lane.b32.xlu0 %v2330, 64
  %v2482 = vpop.permute.xlu0 %2481
  %2483 = vrot.lane.b32.xlu0 %v2331, 64
  %v2484 = vpop.permute.xlu0 %2483
  %2485 = vrot.lane.b32.xlu0 %v2332, 64
  %v2486 = vpop.permute.xlu0 %2485
  %2487 = vrot.lane.b32.xlu0 %v2333, 64
  %v2488 = vpop.permute.xlu0 %2487
  %2489 = vrot.lane.b32.xlu0 %v2334, 64
  %v2490 = vpop.permute.xlu0 %2489
  %2491 = vrot.lane.b32.xlu0 %v2335, 64
  %v2492 = vpop.permute.xlu0 %2491
  %2493 = vrot.lane.b32.xlu0 %v2336, 64
  %v2494 = vpop.permute.xlu0 %2493
  %2495 = vrot.lane.b32.xlu0 %v2337, 64
  %v2496 = vpop.permute.xlu0 %2495
  %2497 = vrot.lane.b32.xlu0 %v2338, 64
  %v2498 = vpop.permute.xlu0 %2497
  %2499 = vrot.lane.b32.xlu0 %v2339, 64
  %v2500 = vpop.permute.xlu0 %2499
  %2501 = vrot.lane.b32.xlu0 %v2340, 64
  %v2502 = vpop.permute.xlu0 %2501
  %2503 = vrot.lane.b32.xlu0 %v2341, 64
  %v2504 = vpop.permute.xlu0 %2503
  %2505 = vrot.lane.b32.xlu0 %v2342, 64
  %v2506 = vpop.permute.xlu0 %2505
  %2507 = vrot.lane.b32.xlu0 %v2343, 64
  %v2508 = vpop.permute.xlu0 %2507
  %2509 = vrot.lane.b32.xlu0 %v2344, 64
  %v2510 = vpop.permute.xlu0 %2509
  %2511 = vrot.lane.b32.xlu0 %v2345, 64
  %v2512 = vpop.permute.xlu0 %2511
  %2513 = vrot.lane.b32.xlu0 %v2346, 64
  %v2514 = vpop.permute.xlu0 %2513
  %2515 = vrot.lane.b32.xlu0 %v2347, 64
  %v2516 = vpop.permute.xlu0 %2515
  %2517 = vrot.lane.b32.xlu0 %v2348, 64
  %v2518 = vpop.permute.xlu0 %2517
  %2519 = vrot.lane.b32.xlu0 %v2349, 64
  %v2520 = vpop.permute.xlu0 %2519
  %2521 = vrot.lane.b32.xlu0 %v2350, 64
  %v2522 = vpop.permute.xlu0 %2521
  %2523 = vrot.lane.b32.xlu0 %v2351, 64
  %v2524 = vpop.permute.xlu0 %2523
  %2525 = vrot.lane.b32.xlu0 %v2352, 64
  %v2526 = vpop.permute.xlu0 %2525
  %2527 = vrot.lane.b32.xlu0 %v2357, 64
  %v2528 = vpop.permute.xlu0 %2527
  %2529 = vrot.lane.b32.xlu0 %v2446, 64
  %v2530 = vpop.permute.xlu0 %2529
  %v2533 = vunpack.c.l.b16 %v2139
  %v2534 = vunpack.c.l.b16 %v2140
  %v2535 = vpack.c.b16 %v2534, %v2533
  %2536 = vrot.lane.b32.xlu0 %v2314, 96
  %v2537 = vpop.permute.xlu0 %2536
  %2538 = vrot.lane.b32.xlu0 %v2315, 96
  %v2539 = vpop.permute.xlu0 %2538
  %2540 = vrot.lane.b32.xlu0 %v2316, 96
  %v2541 = vpop.permute.xlu0 %2540
  %2542 = vrot.lane.b32.xlu0 %v2317, 96
  %v2543 = vpop.permute.xlu0 %2542
  %2544 = vrot.lane.b32.xlu0 %v2318, 96
  %v2545 = vpop.permute.xlu0 %2544
  %2546 = vrot.lane.b32.xlu0 %v2319, 96
  %v2547 = vpop.permute.xlu0 %2546
  %2548 = vrot.lane.b32.xlu0 %v2320, 96
  %v2549 = vpop.permute.xlu0 %2548
  %2550 = vrot.lane.b32.xlu0 %v2321, 96
  %v2551 = vpop.permute.xlu0 %2550
  %2552 = vrot.lane.b32.xlu0 %v2322, 96
  %v2553 = vpop.permute.xlu0 %2552
  %2554 = vrot.lane.b32.xlu0 %v2323, 96
  %v2555 = vpop.permute.xlu0 %2554
  %2556 = vrot.lane.b32.xlu0 %v2324, 96
  %v2557 = vpop.permute.xlu0 %2556
  %2558 = vrot.lane.b32.xlu0 %v2325, 96
  %v2559 = vpop.permute.xlu0 %2558
  %2560 = vrot.lane.b32.xlu0 %v2326, 96
  %v2561 = vpop.permute.xlu0 %2560
  %2562 = vrot.lane.b32.xlu0 %v2327, 96
  %v2563 = vpop.permute.xlu0 %2562
  %2564 = vrot.lane.b32.xlu0 %v2328, 96
  %v2565 = vpop.permute.xlu0 %2564
  %2566 = vrot.lane.b32.xlu0 %v2329, 96
  %v2567 = vpop.permute.xlu0 %2566
  %2568 = vrot.lane.b32.xlu0 %v2330, 96
  %v2569 = vpop.permute.xlu0 %2568
  %2570 = vrot.lane.b32.xlu0 %v2331, 96
  %v2571 = vpop.permute.xlu0 %2570
  %2572 = vrot.lane.b32.xlu0 %v2332, 96
  %v2573 = vpop.permute.xlu0 %2572
  %2574 = vrot.lane.b32.xlu0 %v2333, 96
  %v2575 = vpop.permute.xlu0 %2574
  %2576 = vrot.lane.b32.xlu0 %v2334, 96
  %v2577 = vpop.permute.xlu0 %2576
  %2578 = vrot.lane.b32.xlu0 %v2335, 96
  %v2579 = vpop.permute.xlu0 %2578
  %2580 = vrot.lane.b32.xlu0 %v2336, 96
  %v2581 = vpop.permute.xlu0 %2580
  %2582 = vrot.lane.b32.xlu0 %v2337, 96
  %v2583 = vpop.permute.xlu0 %2582
  %2584 = vrot.lane.b32.xlu0 %v2338, 96
  %v2585 = vpop.permute.xlu0 %2584
  %2586 = vrot.lane.b32.xlu0 %v2339, 96
  %v2587 = vpop.permute.xlu0 %2586
  %2588 = vrot.lane.b32.xlu0 %v2340, 96
  %v2589 = vpop.permute.xlu0 %2588
  %2590 = vrot.lane.b32.xlu0 %v2341, 96
  %v2591 = vpop.permute.xlu0 %2590
  %2592 = vrot.lane.b32.xlu0 %v2342, 96
  %v2593 = vpop.permute.xlu0 %2592
  %2594 = vrot.lane.b32.xlu0 %v2343, 96
  %v2595 = vpop.permute.xlu0 %2594
  %2596 = vrot.lane.b32.xlu0 %v2344, 96
  %v2597 = vpop.permute.xlu0 %2596
  %2598 = vrot.lane.b32.xlu0 %v2345, 96
  %v2599 = vpop.permute.xlu0 %2598
  %2600 = vrot.lane.b32.xlu0 %v2346, 96
  %v2601 = vpop.permute.xlu0 %2600
  %2602 = vrot.lane.b32.xlu0 %v2347, 96
  %v2603 = vpop.permute.xlu0 %2602
  %2604 = vrot.lane.b32.xlu0 %v2348, 96
  %v2605 = vpop.permute.xlu0 %2604
  %2606 = vrot.lane.b32.xlu0 %v2349, 96
  %v2607 = vpop.permute.xlu0 %2606
  %2608 = vrot.lane.b32.xlu0 %v2350, 96
  %v2609 = vpop.permute.xlu0 %2608
  %2610 = vrot.lane.b32.xlu0 %v2351, 96
  %v2611 = vpop.permute.xlu0 %2610
  %2612 = vrot.lane.b32.xlu0 %v2352, 96
  %v2613 = vpop.permute.xlu0 %2612
  %2614 = vrot.lane.b32.xlu0 %v2357, 96
  %v2615 = vpop.permute.xlu0 %2614
  %2616 = vrot.lane.b32.xlu0 %v2446, 96
  %v2617 = vpop.permute.xlu0 %2616
  %2618 = vrot.lane.b32.xlu0 %v2535, 96
  %v2619 = vpop.permute.xlu0 %2618
  %v2622 = vunpack.c.l.b16 %v2141
  %v2623 = vunpack.c.l.b16 %v2142
  %v2624 = vpack.c.b16 %v2623, %v2622
  %vm2625 = vcmask 261120
  %v2628 = vsel %vm2625, %v2311, %v2359
  %v2631 = vsel %vm2625, %v2312, %v2361
  %v2634 = vsel %vm2625, %v2313, %v2363
  %v2637 = vsel %vm2625, %v2314, %v2365
  %v2640 = vsel %vm2625, %v2315, %v2367
  %v2643 = vsel %vm2625, %v2316, %v2369
  %v2646 = vsel %vm2625, %v2317, %v2371
  %v2649 = vsel %vm2625, %v2318, %v2373
  %v2652 = vsel %vm2625, %v2319, %v2375
  %v2655 = vsel %vm2625, %v2320, %v2377
  %v2658 = vsel %vm2625, %v2321, %v2379
  %v2661 = vsel %vm2625, %v2322, %v2381
  %v2664 = vsel %vm2625, %v2323, %v2383
  %v2667 = vsel %vm2625, %v2324, %v2385
  %v2670 = vsel %vm2625, %v2325, %v2387
  %v2673 = vsel %vm2625, %v2326, %v2389
  %v2676 = vsel %vm2625, %v2327, %v2391
  %v2679 = vsel %vm2625, %v2328, %v2393
  %v2682 = vsel %vm2625, %v2329, %v2395
  %v2685 = vsel %vm2625, %v2330, %v2397
  %v2688 = vsel %vm2625, %v2331, %v2399
  %v2691 = vsel %vm2625, %v2332, %v2401
  %v2694 = vsel %vm2625, %v2333, %v2403
  %v2697 = vsel %vm2625, %v2334, %v2405
  %v2700 = vsel %vm2625, %v2335, %v2407
  %v2703 = vsel %vm2625, %v2336, %v2409
  %v2706 = vsel %vm2625, %v2337, %v2411
  %v2709 = vsel %vm2625, %v2338, %v2413
  %v2712 = vsel %vm2625, %v2339, %v2415
  %v2715 = vsel %vm2625, %v2340, %v2417
  %v2718 = vsel %vm2625, %v2341, %v2419
  %v2721 = vsel %vm2625, %v2342, %v2421
  %v2724 = vsel %vm2625, %v2343, %v2423
  %v2727 = vsel %vm2625, %v2344, %v2425
  %v2730 = vsel %vm2625, %v2345, %v2427
  %v2733 = vsel %vm2625, %v2346, %v2429
  %v2736 = vsel %vm2625, %v2347, %v2431
  %v2739 = vsel %vm2625, %v2348, %v2433
  %v2742 = vsel %vm2625, %v2349, %v2435
  %v2745 = vsel %vm2625, %v2350, %v2437
  %v2748 = vsel %vm2625, %v2351, %v2439
  %v2751 = vsel %vm2625, %v2352, %v2441
  %vm2752 = vcmask 523264
  %v2754 = vsel %vm2752, %v2628, %v2448
  %v2756 = vsel %vm2752, %v2631, %v2450
  %v2758 = vsel %vm2752, %v2634, %v2452
  %v2760 = vsel %vm2752, %v2637, %v2454
  %v2762 = vsel %vm2752, %v2640, %v2456
  %v2764 = vsel %vm2752, %v2643, %v2458
  %v2766 = vsel %vm2752, %v2646, %v2460
  %v2768 = vsel %vm2752, %v2649, %v2462
  %v2770 = vsel %vm2752, %v2652, %v2464
  %v2772 = vsel %vm2752, %v2655, %v2466
  %v2774 = vsel %vm2752, %v2658, %v2468
  %v2776 = vsel %vm2752, %v2661, %v2470
  %v2778 = vsel %vm2752, %v2664, %v2472
  %v2780 = vsel %vm2752, %v2667, %v2474
  %v2782 = vsel %vm2752, %v2670, %v2476
  %v2784 = vsel %vm2752, %v2673, %v2478
  %v2786 = vsel %vm2752, %v2676, %v2480
  %v2788 = vsel %vm2752, %v2679, %v2482
  %v2790 = vsel %vm2752, %v2682, %v2484
  %v2792 = vsel %vm2752, %v2685, %v2486
  %v2794 = vsel %vm2752, %v2688, %v2488
  %v2796 = vsel %vm2752, %v2691, %v2490
  %v2798 = vsel %vm2752, %v2694, %v2492
  %v2800 = vsel %vm2752, %v2697, %v2494
  %v2802 = vsel %vm2752, %v2700, %v2496
  %v2804 = vsel %vm2752, %v2703, %v2498
  %v2806 = vsel %vm2752, %v2706, %v2500
  %v2808 = vsel %vm2752, %v2709, %v2502
  %v2810 = vsel %vm2752, %v2712, %v2504
  %v2812 = vsel %vm2752, %v2715, %v2506
  %v2814 = vsel %vm2752, %v2718, %v2508
  %v2816 = vsel %vm2752, %v2721, %v2510
  %v2818 = vsel %vm2752, %v2724, %v2512
  %v2820 = vsel %vm2752, %v2727, %v2514
  %v2822 = vsel %vm2752, %v2730, %v2516
  %v2824 = vsel %vm2752, %v2733, %v2518
  %v2826 = vsel %vm2752, %v2736, %v2520
  %v2828 = vsel %vm2752, %v2739, %v2522
  %v2830 = vsel %vm2752, %v2742, %v2524
  %v2832 = vsel %vm2752, %v2745, %v2526
  %v2834 = vsel %vm2752, %v2748, %v2528
  %v2836 = vsel %vm2752, %v2751, %v2530
  %vm2837 = vcmask 785408
  %v2839 = vsel %vm2837, %v2754, %v2537
  %v2842 = vsel %vm2837, %v2756, %v2539
  %v2845 = vsel %vm2837, %v2758, %v2541
  %v2848 = vsel %vm2837, %v2760, %v2543
  %v2851 = vsel %vm2837, %v2762, %v2545
  %v2854 = vsel %vm2837, %v2764, %v2547
  %v2857 = vsel %vm2837, %v2766, %v2549
  %v2860 = vsel %vm2837, %v2768, %v2551
  %v2863 = vsel %vm2837, %v2770, %v2553
  %v2866 = vsel %vm2837, %v2772, %v2555
  %v2869 = vsel %vm2837, %v2774, %v2557
  %v2872 = vsel %vm2837, %v2776, %v2559
  %v2875 = vsel %vm2837, %v2778, %v2561
  %v2878 = vsel %vm2837, %v2780, %v2563
  %v2881 = vsel %vm2837, %v2782, %v2565
  %v2884 = vsel %vm2837, %v2784, %v2567
  %v2887 = vsel %vm2837, %v2786, %v2569
  %v2890 = vsel %vm2837, %v2788, %v2571
  %v2893 = vsel %vm2837, %v2790, %v2573
  %v2896 = vsel %vm2837, %v2792, %v2575
  %v2899 = vsel %vm2837, %v2794, %v2577
  %v2902 = vsel %vm2837, %v2796, %v2579
  %v2905 = vsel %vm2837, %v2798, %v2581
  %v2908 = vsel %vm2837, %v2800, %v2583
  %v2911 = vsel %vm2837, %v2802, %v2585
  %v2914 = vsel %vm2837, %v2804, %v2587
  %v2917 = vsel %vm2837, %v2806, %v2589
  %v2920 = vsel %vm2837, %v2808, %v2591
  %v2923 = vsel %vm2837, %v2810, %v2593
  %v2926 = vsel %vm2837, %v2812, %v2595
  %v2929 = vsel %vm2837, %v2814, %v2597
  %v2932 = vsel %vm2837, %v2816, %v2599
  %v2935 = vsel %vm2837, %v2818, %v2601
  %v2938 = vsel %vm2837, %v2820, %v2603
  %v2941 = vsel %vm2837, %v2822, %v2605
  %v2944 = vsel %vm2837, %v2824, %v2607
  %v2947 = vsel %vm2837, %v2826, %v2609
  %v2950 = vsel %vm2837, %v2828, %v2611
  %v2953 = vsel %vm2837, %v2830, %v2613
  %v2956 = vsel %vm2837, %v2832, %v2615
  %v2959 = vsel %vm2837, %v2834, %v2617
  %v2962 = vsel %vm2837, %v2836, %v2619
  %v2964 = vld [vmem:[%s3] sm:$0xf]
  %v2965 = vld [vmem:[%s3 + $0x4] sm:$0xf]
  %v2966 = vld [vmem:[%s3 + $0x8] sm:$0xf]
  %v2967 = vld [vmem:[%s3 + $0xc] sm:$0xf]
  %v2968 = vld [vmem:[%s3 + $0x10] sm:$0xf]
  %v2969 = vld [vmem:[%s3 + $0x14] sm:$0xf]
  %v2970 = vld [vmem:[%s3 + $0x18] sm:$0xf]
  %v2971 = vld [vmem:[%s3 + $0x1c] sm:$0xf]
  %v2972 = vld [vmem:[%s3 + $0x20] sm:$0xf]
  %v2973 = vld [vmem:[%s3 + $0x24] sm:$0xf]
  %v2974 = vld [vmem:[%s3 + $0x28] sm:$0xf]
  %v2975 = vld [vmem:[%s3 + $0x2c] sm:$0xf]
  %v2976 = vld [vmem:[%s3 + $0x30] sm:$0xf]
  %v2977 = vld [vmem:[%s3 + $0x34] sm:$0xf]
  %v2978 = vld [vmem:[%s3 + $0x38] sm:$0xf]
  %v2979 = vld [vmem:[%s3 + $0x3c] sm:$0xf]
  %v2980 = vld [vmem:[%s3 + $0x40] sm:$0xf]
  %v2981 = vld [vmem:[%s3 + $0x44] sm:$0xf]
  %v2982 = vld [vmem:[%s3 + $0x48] sm:$0xf]
  %v2983 = vld [vmem:[%s3 + $0x4c] sm:$0xf]
  %v2984 = vld [vmem:[%s4] sm:$0x1]
  %v2986 = vperm.slane %v2984, 0
  %v3008 = vunpack.c.l.b16 %v2964
  %v3009 = vunpack.c.l.b16 %v2965
  %v3010 = vunpack.c.l.b16 %v2966
  %v3011 = vunpack.c.l.b16 %v2967
  %v3012 = vunpack.c.l.b16 %v2968
  %v3013 = vunpack.c.l.b16 %v2969
  %v3014 = vunpack.c.l.b16 %v2970
  %v3015 = vunpack.c.l.b16 %v2971
  %v3016 = vunpack.c.l.b16 %v2972
  %v3017 = vunpack.c.l.b16 %v2973
  %v3018 = vunpack.c.l.b16 %v2974
  %v3019 = vunpack.c.l.b16 %v2975
  %v3020 = vunpack.c.l.b16 %v2976
  %v3021 = vunpack.c.l.b16 %v2977
  %v3022 = vunpack.c.l.b16 %v2978
  %v3023 = vunpack.c.l.b16 %v2979
  %v3024 = vunpack.c.l.b16 %v2980
  %v3025 = vunpack.c.l.b16 %v2981
  %v3026 = vunpack.c.l.b16 %v2982
  %v3027 = vunpack.c.l.b16 %v2983
  %v3028 = vpack.c.b16 %v3009, %v3008
  %v3029 = vpack.c.b16 %v3011, %v3010
  %v3030 = vpack.c.b16 %v3013, %v3012
  %v3031 = vpack.c.b16 %v3015, %v3014
  %v3032 = vpack.c.b16 %v3017, %v3016
  %v3033 = vpack.c.b16 %v3019, %v3018
  %v3034 = vpack.c.b16 %v3021, %v3020
  %v3035 = vpack.c.b16 %v3023, %v3022
  %v3036 = vpack.c.b16 %v3025, %v3024
  %v3037 = vpack.c.b16 %v3027, %v3026
  %v3048 = vsel %vm2625, %v2315, 0
  %v3050 = vsel %vm2625, %v2316, 0
  %v3052 = vsel %vm2625, %v2317, 0
  %v3054 = vsel %vm2625, %v2318, 0
  %v3056 = vsel %vm2625, %v2319, 0
  %v3058 = vsel %vm2625, %v2320, 0
  %v3060 = vsel %vm2625, %v2321, 0
  %v3062 = vsel %vm2625, %v2322, 0
  %v3064 = vsel %vm2625, %v2323, 0
  %v3066 = vsel %vm2625, %v2324, 0
  %v3068 = vsel %vm2625, %v2325, 0
  %v3070 = vsel %vm2625, %v2326, 0
  %v3072 = vsel %vm2625, %v2327, 0
  %v3074 = vsel %vm2625, %v2328, 0
  %v3076 = vsel %vm2625, %v2329, 0
  %v3078 = vsel %vm2625, %v2330, 0
  %v3080 = vsel %vm2625, %v2331, 0
  %v3082 = vsel %vm2625, %v2332, 0
  %v3084 = vsel %vm2625, %v2333, 0
  %v3086 = vsel %vm2625, %v2334, 0
  %v3088 = vsel %vm2625, %v2335, 0
  %v3090 = vsel %vm2625, %v2336, 0
  %v3092 = vsel %vm2625, %v2337, 0
  %v3094 = vsel %vm2625, %v2338, 0
  %v3096 = vsel %vm2625, %v2339, 0
  %v3098 = vsel %vm2625, %v2340, 0
  %v3100 = vsel %vm2625, %v2341, 0
  %v3102 = vsel %vm2625, %v2342, 0
  %v3104 = vsel %vm2625, %v2343, 0
  %v3106 = vsel %vm2625, %v2344, 0
  %v3108 = vsel %vm2625, %v2345, 0
  %v3110 = vsel %vm2625, %v2346, 0
  %v3112 = vsel %vm2625, %v2347, 0
  %v3114 = vsel %vm2625, %v2348, 0
  %v3116 = vsel %vm2625, %v2349, 0
  %v3118 = vsel %vm2625, %v2350, 0
  %v3120 = vsel %vm2625, %v2351, 0
  %v3122 = vsel %vm2625, %v2352, 0
  %v3125 = vsel %vm2625, %v2357, 0
  %v3128 = vsel %vm2625, %v2446, 0
  %v3131 = vsel %vm2625, %v2535, 0
  %v3134 = vsel %vm2625, %v2624, 0
  %3136 = vmatpush.bf16.msra.mxu0 %v3035
  %3137 = vmatpush.bf16.msra.mxu0 %v3034
  %3138 = vmatpush.bf16.msra.mxu0 %v3033
  %3139 = vmatpush.bf16.msra.mxu0 %v3032
  %3140 = vmatpush.bf16.msra.mxu0 %v3031
  %3141 = vmatpush.bf16.msra.mxu0 %v3030
  %3142 = vmatpush.bf16.msra.mxu0 %v3029
  %3143 = vmatpush.bf16.msra.mxu0 %v3028
  %3144 = vmatmul.bf16.gmra.mxu0 %v2839
  %v3145 = vpop.f32.mrf.mxu0
  %v3146 = vadd.f32 %v2986, %v3145
  %v3147 = vpop.f32.mrf.mxu0
  %v3148 = vadd.f32 %v2986, %v3147
  %3149 = vmatmul.bf16.gmra.mxu0 %v2842
  %v3150 = vpop.f32.mrf.mxu0
  %v3151 = vadd.f32 %v2986, %v3150
  %v3152 = vpop.f32.mrf.mxu0
  %v3153 = vadd.f32 %v2986, %v3152
  %3154 = vmatmul.bf16.gmra.mxu0 %v2845
  %v3155 = vpop.f32.mrf.mxu0
  %v3156 = vadd.f32 %v2986, %v3155
  %v3157 = vpop.f32.mrf.mxu0
  %v3158 = vadd.f32 %v2986, %v3157
  %3159 = vmatmul.bf16.gmra.mxu0 %v2848
  %v3160 = vpop.f32.mrf.mxu0
  %v3161 = vadd.f32 %v2986, %v3160
  %v3162 = vpop.f32.mrf.mxu0
  %v3163 = vadd.f32 %v2986, %v3162
  %3164 = vmatmul.bf16.gmra.mxu0 %v2851
  %v3165 = vpop.f32.mrf.mxu0
  %v3166 = vadd.f32 %v2986, %v3165
  %v3167 = vpop.f32.mrf.mxu0
  %v3168 = vadd.f32 %v2986, %v3167
  %3169 = vmatmul.bf16.gmra.mxu0 %v2854
  %v3170 = vpop.f32.mrf.mxu0
  %v3171 = vadd.f32 %v2986, %v3170
  %v3172 = vpop.f32.mrf.mxu0
  %v3173 = vadd.f32 %v2986, %v3172
  %3174 = vmatmul.bf16.gmra.mxu0 %v2857
  %v3175 = vpop.f32.mrf.mxu0
  %v3176 = vadd.f32 %v2986, %v3175
  %v3177 = vpop.f32.mrf.mxu0
  %v3178 = vadd.f32 %v2986, %v3177
  %3179 = vmatmul.bf16.gmra.mxu0 %v2860
  %v3180 = vpop.f32.mrf.mxu0
  %v3181 = vadd.f32 %v2986, %v3180
  %v3182 = vpop.f32.mrf.mxu0
  %v3183 = vadd.f32 %v2986, %v3182
  %3184 = vmatmul.bf16.gmra.mxu0 %v2863
  %v3185 = vpop.f32.mrf.mxu0
  %v3186 = vadd.f32 %v2986, %v3185
  %v3187 = vpop.f32.mrf.mxu0
  %v3188 = vadd.f32 %v2986, %v3187
  %3189 = vmatmul.bf16.gmra.mxu0 %v2866
  %v3190 = vpop.f32.mrf.mxu0
  %v3191 = vadd.f32 %v2986, %v3190
  %v3192 = vpop.f32.mrf.mxu0
  %v3193 = vadd.f32 %v2986, %v3192
  %3194 = vmatmul.bf16.gmra.mxu0 %v2869
  %v3195 = vpop.f32.mrf.mxu0
  %v3196 = vadd.f32 %v2986, %v3195
  %v3197 = vpop.f32.mrf.mxu0
  %v3198 = vadd.f32 %v2986, %v3197
  %3199 = vmatmul.bf16.gmra.mxu0 %v2872
  %v3200 = vpop.f32.mrf.mxu0
  %v3201 = vadd.f32 %v2986, %v3200
  %v3202 = vpop.f32.mrf.mxu0
  %v3203 = vadd.f32 %v2986, %v3202
  %3204 = vmatmul.bf16.gmra.mxu0 %v2875
  %v3205 = vpop.f32.mrf.mxu0
  %v3206 = vadd.f32 %v2986, %v3205
  %v3207 = vpop.f32.mrf.mxu0
  %v3208 = vadd.f32 %v2986, %v3207
  %3209 = vmatmul.bf16.gmra.mxu0 %v2878
  %v3210 = vpop.f32.mrf.mxu0
  %v3211 = vadd.f32 %v2986, %v3210
  %v3212 = vpop.f32.mrf.mxu0
  %v3213 = vadd.f32 %v2986, %v3212
  %3214 = vmatmul.bf16.gmra.mxu0 %v2881
  %v3215 = vpop.f32.mrf.mxu0
  %v3216 = vadd.f32 %v2986, %v3215
  %v3217 = vpop.f32.mrf.mxu0
  %v3218 = vadd.f32 %v2986, %v3217
  %3219 = vmatmul.bf16.gmra.mxu0 %v2884
  %v3220 = vpop.f32.mrf.mxu0
  %v3221 = vadd.f32 %v2986, %v3220
  %v3222 = vpop.f32.mrf.mxu0
  %v3223 = vadd.f32 %v2986, %v3222
  %3224 = vmatmul.bf16.gmra.mxu0 %v2887
  %v3225 = vpop.f32.mrf.mxu0
  %v3226 = vadd.f32 %v2986, %v3225
  %v3227 = vpop.f32.mrf.mxu0
  %v3228 = vadd.f32 %v2986, %v3227
  %3229 = vmatmul.bf16.gmra.mxu0 %v2890
  %v3230 = vpop.f32.mrf.mxu0
  %v3231 = vadd.f32 %v2986, %v3230
  %v3232 = vpop.f32.mrf.mxu0
  %v3233 = vadd.f32 %v2986, %v3232
  %3234 = vmatmul.bf16.gmra.mxu0 %v2893
  %v3235 = vpop.f32.mrf.mxu0
  %v3236 = vadd.f32 %v2986, %v3235
  %v3237 = vpop.f32.mrf.mxu0
  %v3238 = vadd.f32 %v2986, %v3237
  %3239 = vmatmul.bf16.gmra.mxu0 %v2896
  %v3240 = vpop.f32.mrf.mxu0
  %v3241 = vadd.f32 %v2986, %v3240
  %v3242 = vpop.f32.mrf.mxu0
  %v3243 = vadd.f32 %v2986, %v3242
  %3244 = vmatmul.bf16.gmra.mxu0 %v2899
  %v3245 = vpop.f32.mrf.mxu0
  %v3246 = vadd.f32 %v2986, %v3245
  %v3247 = vpop.f32.mrf.mxu0
  %v3248 = vadd.f32 %v2986, %v3247
  %3249 = vmatmul.bf16.gmra.mxu0 %v2902
  %v3250 = vpop.f32.mrf.mxu0
  %v3251 = vadd.f32 %v2986, %v3250
  %v3252 = vpop.f32.mrf.mxu0
  %v3253 = vadd.f32 %v2986, %v3252
  %3254 = vmatmul.bf16.gmra.mxu0 %v2905
  %v3255 = vpop.f32.mrf.mxu0
  %v3256 = vadd.f32 %v2986, %v3255
  %v3257 = vpop.f32.mrf.mxu0
  %v3258 = vadd.f32 %v2986, %v3257
  %3259 = vmatmul.bf16.gmra.mxu0 %v2908
  %v3260 = vpop.f32.mrf.mxu0
  %v3261 = vadd.f32 %v2986, %v3260
  %v3262 = vpop.f32.mrf.mxu0
  %v3263 = vadd.f32 %v2986, %v3262
  %3264 = vmatmul.bf16.gmra.mxu0 %v2911
  %v3265 = vpop.f32.mrf.mxu0
  %v3266 = vadd.f32 %v2986, %v3265
  %v3267 = vpop.f32.mrf.mxu0
  %v3268 = vadd.f32 %v2986, %v3267
  %3269 = vmatmul.bf16.gmra.mxu0 %v2914
  %v3270 = vpop.f32.mrf.mxu0
  %v3271 = vadd.f32 %v2986, %v3270
  %v3272 = vpop.f32.mrf.mxu0
  %v3273 = vadd.f32 %v2986, %v3272
  %3274 = vmatmul.bf16.gmra.mxu0 %v2917
  %v3275 = vpop.f32.mrf.mxu0
  %v3276 = vadd.f32 %v2986, %v3275
  %v3277 = vpop.f32.mrf.mxu0
  %v3278 = vadd.f32 %v2986, %v3277
  %3279 = vmatmul.bf16.gmra.mxu0 %v2920
  %v3280 = vpop.f32.mrf.mxu0
  %v3281 = vadd.f32 %v2986, %v3280
  %v3282 = vpop.f32.mrf.mxu0
  %v3283 = vadd.f32 %v2986, %v3282
  %3284 = vmatmul.bf16.gmra.mxu0 %v2923
  %v3285 = vpop.f32.mrf.mxu0
  %v3286 = vadd.f32 %v2986, %v3285
  %v3287 = vpop.f32.mrf.mxu0
  %v3288 = vadd.f32 %v2986, %v3287
  %3289 = vmatmul.bf16.gmra.mxu0 %v2926
  %v3290 = vpop.f32.mrf.mxu0
  %v3291 = vadd.f32 %v2986, %v3290
  %v3292 = vpop.f32.mrf.mxu0
  %v3293 = vadd.f32 %v2986, %v3292
  %3294 = vmatmul.bf16.gmra.mxu0 %v2929
  %v3295 = vpop.f32.mrf.mxu0
  %v3296 = vadd.f32 %v2986, %v3295
  %v3297 = vpop.f32.mrf.mxu0
  %v3298 = vadd.f32 %v2986, %v3297
  %3299 = vmatmul.bf16.gmra.mxu0 %v2932
  %v3300 = vpop.f32.mrf.mxu0
  %v3301 = vadd.f32 %v2986, %v3300
  %v3302 = vpop.f32.mrf.mxu0
  %v3303 = vadd.f32 %v2986, %v3302
  %3304 = vmatmul.bf16.gmra.mxu0 %v2935
  %v3305 = vpop.f32.mrf.mxu0
  %v3306 = vadd.f32 %v2986, %v3305
  %v3307 = vpop.f32.mrf.mxu0
  %v3308 = vadd.f32 %v2986, %v3307
  %3309 = vmatmul.bf16.gmra.mxu0 %v2938
  %v3310 = vpop.f32.mrf.mxu0
  %v3311 = vadd.f32 %v2986, %v3310
  %v3312 = vpop.f32.mrf.mxu0
  %v3313 = vadd.f32 %v2986, %v3312
  %3314 = vmatmul.bf16.gmra.mxu0 %v2941
  %v3315 = vpop.f32.mrf.mxu0
  %v3316 = vadd.f32 %v2986, %v3315
  %v3317 = vpop.f32.mrf.mxu0
  %v3318 = vadd.f32 %v2986, %v3317
  %3319 = vmatmul.bf16.gmra.mxu0 %v2944
  %v3320 = vpop.f32.mrf.mxu0
  %v3321 = vadd.f32 %v2986, %v3320
  %v3322 = vpop.f32.mrf.mxu0
  %v3323 = vadd.f32 %v2986, %v3322
  %3324 = vmatmul.bf16.gmra.mxu0 %v2947
  %v3325 = vpop.f32.mrf.mxu0
  %v3326 = vadd.f32 %v2986, %v3325
  %v3327 = vpop.f32.mrf.mxu0
  %v3328 = vadd.f32 %v2986, %v3327
  %3329 = vmatmul.bf16.gmra.mxu0 %v2950
  %v3330 = vpop.f32.mrf.mxu0
  %v3331 = vadd.f32 %v2986, %v3330
  %v3332 = vpop.f32.mrf.mxu0
  %v3333 = vadd.f32 %v2986, %v3332
  %3334 = vmatmul.bf16.gmra.mxu0 %v2953
  %v3335 = vpop.f32.mrf.mxu0
  %v3336 = vadd.f32 %v2986, %v3335
  %v3337 = vpop.f32.mrf.mxu0
  %v3338 = vadd.f32 %v2986, %v3337
  %3339 = vmatmul.bf16.gmra.mxu0 %v2956
  %v3340 = vpop.f32.mrf.mxu0
  %v3341 = vadd.f32 %v2986, %v3340
  %v3342 = vpop.f32.mrf.mxu0
  %v3343 = vadd.f32 %v2986, %v3342
  %3344 = vmatmul.bf16.gmra.mxu0 %v2959
  %v3345 = vpop.f32.mrf.mxu0
  %v3346 = vadd.f32 %v2986, %v3345
  %v3347 = vpop.f32.mrf.mxu0
  %v3348 = vadd.f32 %v2986, %v3347
  %3349 = vmatmul.bf16.gmra.mxu0 %v2962
  %v3350 = vpop.f32.mrf.mxu0
  %v3351 = vadd.f32 %v2986, %v3350
  %v3352 = vpop.f32.mrf.mxu0
  %v3353 = vadd.f32 %v2986, %v3352
  %3354 = vdwg.mxu0
  %3355 = vmatpush.bf16.msra.mxu0 0
  %3356 = vmatpush.bf16.msra.mxu0 0
  %3357 = vmatpush.bf16.msra.mxu0 0
  %3358 = vmatpush.bf16.msra.mxu0 0
  %3359 = vmatpush.bf16.msra.mxu0 0
  %3360 = vmatpush.bf16.msra.mxu0 0
  %3361 = vmatpush.bf16.msra.mxu0 %v3037
  %3362 = vmatpush.bf16.msra.mxu0 %v3036
  %3363 = vmatmul.bf16.gmra.mxu0 %v3048
  %v3364 = vpop.f32.mrf.mxu0
  %v3365 = vadd.f32 %v3146, %v3364
  %v3366 = vpop.f32.mrf.mxu0
  %v3367 = vadd.f32 %v3148, %v3366
  %3368 = vmatmul.bf16.gmra.mxu0 %v3050
  %v3369 = vpop.f32.mrf.mxu0
  %v3370 = vadd.f32 %v3151, %v3369
  %v3371 = vpop.f32.mrf.mxu0
  %v3372 = vadd.f32 %v3153, %v3371
  %3373 = vmatmul.bf16.gmra.mxu0 %v3052
  %v3374 = vpop.f32.mrf.mxu0
  %v3375 = vadd.f32 %v3156, %v3374
  %v3376 = vpop.f32.mrf.mxu0
  %v3377 = vadd.f32 %v3158, %v3376
  %3378 = vmatmul.bf16.gmra.mxu0 %v3054
  %v3379 = vpop.f32.mrf.mxu0
  %v3380 = vadd.f32 %v3161, %v3379
  %v3381 = vpop.f32.mrf.mxu0
  %v3382 = vadd.f32 %v3163, %v3381
  %3383 = vmatmul.bf16.gmra.mxu0 %v3056
  %v3384 = vpop.f32.mrf.mxu0
  %v3385 = vadd.f32 %v3166, %v3384
  %v3386 = vpop.f32.mrf.mxu0
  %v3387 = vadd.f32 %v3168, %v3386
  %3388 = vmatmul.bf16.gmra.mxu0 %v3058
  %v3389 = vpop.f32.mrf.mxu0
  %v3390 = vadd.f32 %v3171, %v3389
  %v3391 = vpop.f32.mrf.mxu0
  %v3392 = vadd.f32 %v3173, %v3391
  %3393 = vmatmul.bf16.gmra.mxu0 %v3060
  %v3394 = vpop.f32.mrf.mxu0
  %v3395 = vadd.f32 %v3176, %v3394
  %v3396 = vpop.f32.mrf.mxu0
  %v3397 = vadd.f32 %v3178, %v3396
  %3398 = vmatmul.bf16.gmra.mxu0 %v3062
  %v3399 = vpop.f32.mrf.mxu0
  %v3400 = vadd.f32 %v3181, %v3399
  %v3401 = vpop.f32.mrf.mxu0
  %v3402 = vadd.f32 %v3183, %v3401
  %3403 = vmatmul.bf16.gmra.mxu0 %v3064
  %v3404 = vpop.f32.mrf.mxu0
  %v3405 = vadd.f32 %v3186, %v3404
  %v3406 = vpop.f32.mrf.mxu0
  %v3407 = vadd.f32 %v3188, %v3406
  %3408 = vmatmul.bf16.gmra.mxu0 %v3066
  %v3409 = vpop.f32.mrf.mxu0
  %v3410 = vadd.f32 %v3191, %v3409
  %v3411 = vpop.f32.mrf.mxu0
  %v3412 = vadd.f32 %v3193, %v3411
  %3413 = vmatmul.bf16.gmra.mxu0 %v3068
  %v3414 = vpop.f32.mrf.mxu0
  %v3415 = vadd.f32 %v3196, %v3414
  %v3416 = vpop.f32.mrf.mxu0
  %v3417 = vadd.f32 %v3198, %v3416
  %3418 = vmatmul.bf16.gmra.mxu0 %v3070
  %v3419 = vpop.f32.mrf.mxu0
  %v3420 = vadd.f32 %v3201, %v3419
  %v3421 = vpop.f32.mrf.mxu0
  %v3422 = vadd.f32 %v3203, %v3421
  %3423 = vmatmul.bf16.gmra.mxu0 %v3072
  %v3424 = vpop.f32.mrf.mxu0
  %v3425 = vadd.f32 %v3206, %v3424
  %v3426 = vpop.f32.mrf.mxu0
  %v3427 = vadd.f32 %v3208, %v3426
  %3428 = vmatmul.bf16.gmra.mxu0 %v3074
  %v3429 = vpop.f32.mrf.mxu0
  %v3430 = vadd.f32 %v3211, %v3429
  %v3431 = vpop.f32.mrf.mxu0
  %v3432 = vadd.f32 %v3213, %v3431
  %3433 = vmatmul.bf16.gmra.mxu0 %v3076
  %v3434 = vpop.f32.mrf.mxu0
  %v3435 = vadd.f32 %v3216, %v3434
  %v3436 = vpop.f32.mrf.mxu0
  %v3437 = vadd.f32 %v3218, %v3436
  %3438 = vmatmul.bf16.gmra.mxu0 %v3078
  %v3439 = vpop.f32.mrf.mxu0
  %v3440 = vadd.f32 %v3221, %v3439
  %v3441 = vpop.f32.mrf.mxu0
  %v3442 = vadd.f32 %v3223, %v3441
  %3443 = vmatmul.bf16.gmra.mxu0 %v3080
  %v3444 = vpop.f32.mrf.mxu0
  %v3445 = vadd.f32 %v3226, %v3444
  %v3446 = vpop.f32.mrf.mxu0
  %v3447 = vadd.f32 %v3228, %v3446
  %3448 = vmatmul.bf16.gmra.mxu0 %v3082
  %v3449 = vpop.f32.mrf.mxu0
  %v3450 = vadd.f32 %v3231, %v3449
  %v3451 = vpop.f32.mrf.mxu0
  %v3452 = vadd.f32 %v3233, %v3451
  %3453 = vmatmul.bf16.gmra.mxu0 %v3084
  %v3454 = vpop.f32.mrf.mxu0
  %v3455 = vadd.f32 %v3236, %v3454
  %v3456 = vpop.f32.mrf.mxu0
  %v3457 = vadd.f32 %v3238, %v3456
  %3458 = vmatmul.bf16.gmra.mxu0 %v3086
  %v3459 = vpop.f32.mrf.mxu0
  %v3460 = vadd.f32 %v3241, %v3459
  %v3461 = vpop.f32.mrf.mxu0
  %v3462 = vadd.f32 %v3243, %v3461
  %3463 = vmatmul.bf16.gmra.mxu0 %v3088
  %v3464 = vpop.f32.mrf.mxu0
  %v3465 = vadd.f32 %v3246, %v3464
  %v3466 = vpop.f32.mrf.mxu0
  %v3467 = vadd.f32 %v3248, %v3466
  %3468 = vmatmul.bf16.gmra.mxu0 %v3090
  %v3469 = vpop.f32.mrf.mxu0
  %v3470 = vadd.f32 %v3251, %v3469
  %v3471 = vpop.f32.mrf.mxu0
  %v3472 = vadd.f32 %v3253, %v3471
  %3473 = vmatmul.bf16.gmra.mxu0 %v3092
  %v3474 = vpop.f32.mrf.mxu0
  %v3475 = vadd.f32 %v3256, %v3474
  %v3476 = vpop.f32.mrf.mxu0
  %v3477 = vadd.f32 %v3258, %v3476
  %3478 = vmatmul.bf16.gmra.mxu0 %v3094
  %v3479 = vpop.f32.mrf.mxu0
  %v3480 = vadd.f32 %v3261, %v3479
  %v3481 = vpop.f32.mrf.mxu0
  %v3482 = vadd.f32 %v3263, %v3481
  %3483 = vmatmul.bf16.gmra.mxu0 %v3096
  %v3484 = vpop.f32.mrf.mxu0
  %v3485 = vadd.f32 %v3266, %v3484
  %v3486 = vpop.f32.mrf.mxu0
  %v3487 = vadd.f32 %v3268, %v3486
  %3488 = vmatmul.bf16.gmra.mxu0 %v3098
  %v3489 = vpop.f32.mrf.mxu0
  %v3490 = vadd.f32 %v3271, %v3489
  %v3491 = vpop.f32.mrf.mxu0
  %v3492 = vadd.f32 %v3273, %v3491
  %3493 = vmatmul.bf16.gmra.mxu0 %v3100
  %v3494 = vpop.f32.mrf.mxu0
  %v3495 = vadd.f32 %v3276, %v3494
  %v3496 = vpop.f32.mrf.mxu0
  %v3497 = vadd.f32 %v3278, %v3496
  %3498 = vmatmul.bf16.gmra.mxu0 %v3102
  %v3499 = vpop.f32.mrf.mxu0
  %v3500 = vadd.f32 %v3281, %v3499
  %v3501 = vpop.f32.mrf.mxu0
  %v3502 = vadd.f32 %v3283, %v3501
  %3503 = vmatmul.bf16.gmra.mxu0 %v3104
  %v3504 = vpop.f32.mrf.mxu0
  %v3505 = vadd.f32 %v3286, %v3504
  %v3506 = vpop.f32.mrf.mxu0
  %v3507 = vadd.f32 %v3288, %v3506
  %3508 = vmatmul.bf16.gmra.mxu0 %v3106
  %v3509 = vpop.f32.mrf.mxu0
  %v3510 = vadd.f32 %v3291, %v3509
  %v3511 = vpop.f32.mrf.mxu0
  %v3512 = vadd.f32 %v3293, %v3511
  %3513 = vmatmul.bf16.gmra.mxu0 %v3108
  %v3514 = vpop.f32.mrf.mxu0
  %v3515 = vadd.f32 %v3296, %v3514
  %v3516 = vpop.f32.mrf.mxu0
  %v3517 = vadd.f32 %v3298, %v3516
  %3518 = vmatmul.bf16.gmra.mxu0 %v3110
  %v3519 = vpop.f32.mrf.mxu0
  %v3520 = vadd.f32 %v3301, %v3519
  %v3521 = vpop.f32.mrf.mxu0
  %v3522 = vadd.f32 %v3303, %v3521
  %3523 = vmatmul.bf16.gmra.mxu0 %v3112
  %v3524 = vpop.f32.mrf.mxu0
  %v3525 = vadd.f32 %v3306, %v3524
  %v3526 = vpop.f32.mrf.mxu0
  %v3527 = vadd.f32 %v3308, %v3526
  %3528 = vmatmul.bf16.gmra.mxu0 %v3114
  %v3529 = vpop.f32.mrf.mxu0
  %v3530 = vadd.f32 %v3311, %v3529
  %v3531 = vpop.f32.mrf.mxu0
  %v3532 = vadd.f32 %v3313, %v3531
  %3533 = vmatmul.bf16.gmra.mxu0 %v3116
  %v3534 = vpop.f32.mrf.mxu0
  %v3535 = vadd.f32 %v3316, %v3534
  %v3536 = vpop.f32.mrf.mxu0
  %v3537 = vadd.f32 %v3318, %v3536
  %3538 = vmatmul.bf16.gmra.mxu0 %v3118
  %v3539 = vpop.f32.mrf.mxu0
  %v3540 = vadd.f32 %v3321, %v3539
  %v3541 = vpop.f32.mrf.mxu0
  %v3542 = vadd.f32 %v3323, %v3541
  %3543 = vmatmul.bf16.gmra.mxu0 %v3120
  %v3544 = vpop.f32.mrf.mxu0
  %v3545 = vadd.f32 %v3326, %v3544
  %v3546 = vpop.f32.mrf.mxu0
  %v3547 = vadd.f32 %v3328, %v3546
  %3548 = vmatmul.bf16.gmra.mxu0 %v3122
  %v3549 = vpop.f32.mrf.mxu0
  %v3550 = vadd.f32 %v3331, %v3549
  %v3551 = vpop.f32.mrf.mxu0
  %v3552 = vadd.f32 %v3333, %v3551
  %3553 = vmatmul.bf16.gmra.mxu0 %v3125
  %v3554 = vpop.f32.mrf.mxu0
  %v3555 = vadd.f32 %v3336, %v3554
  %v3556 = vpop.f32.mrf.mxu0
  %v3557 = vadd.f32 %v3338, %v3556
  %3558 = vmatmul.bf16.gmra.mxu0 %v3128
  %v3559 = vpop.f32.mrf.mxu0
  %v3560 = vadd.f32 %v3341, %v3559
  %v3561 = vpop.f32.mrf.mxu0
  %v3562 = vadd.f32 %v3343, %v3561
  %3563 = vmatmul.bf16.gmra.mxu0 %v3131
  %v3564 = vpop.f32.mrf.mxu0
  %v3565 = vadd.f32 %v3346, %v3564
  %v3566 = vpop.f32.mrf.mxu0
  %v3567 = vadd.f32 %v3348, %v3566
  %3568 = vmatmul.bf16.gmra.mxu0 %v3134
  %v3569 = vpop.f32.mrf.mxu0
  %v3570 = vadd.f32 %v3351, %v3569
  %v3571 = vpop.f32.mrf.mxu0
  %v3572 = vadd.f32 %v3353, %v3571
  %3573 = vdwg.mxu0
  %v3574 = vmax.f32 %v3365, 0.0
  %v3575 = vmax.f32 %v3367, 0.0
  %v3576 = vmax.f32 %v3370, 0.0
  %v3577 = vmax.f32 %v3372, 0.0
  %v3578 = vmax.f32 %v3375, 0.0
  %v3579 = vmax.f32 %v3377, 0.0
  %v3580 = vmax.f32 %v3380, 0.0
  %v3581 = vmax.f32 %v3382, 0.0
  %v3582 = vmax.f32 %v3385, 0.0
  %v3583 = vmax.f32 %v3387, 0.0
  %v3584 = vmax.f32 %v3390, 0.0
  %v3585 = vmax.f32 %v3392, 0.0
  %v3586 = vmax.f32 %v3395, 0.0
  %v3587 = vmax.f32 %v3397, 0.0
  %v3588 = vmax.f32 %v3400, 0.0
  %v3589 = vmax.f32 %v3402, 0.0
  %v3590 = vmax.f32 %v3405, 0.0
  %v3591 = vmax.f32 %v3407, 0.0
  %v3592 = vmax.f32 %v3410, 0.0
  %v3593 = vmax.f32 %v3412, 0.0
  %v3594 = vmax.f32 %v3415, 0.0
  %v3595 = vmax.f32 %v3417, 0.0
  %v3596 = vmax.f32 %v3420, 0.0
  %v3597 = vmax.f32 %v3422, 0.0
  %v3598 = vmax.f32 %v3425, 0.0
  %v3599 = vmax.f32 %v3427, 0.0
  %v3600 = vmax.f32 %v3430, 0.0
  %v3601 = vmax.f32 %v3432, 0.0
  %v3602 = vmax.f32 %v3435, 0.0
  %v3603 = vmax.f32 %v3437, 0.0
  %v3604 = vmax.f32 %v3440, 0.0
  %v3605 = vmax.f32 %v3442, 0.0
  %v3606 = vmax.f32 %v3445, 0.0
  %v3607 = vmax.f32 %v3447, 0.0
  %v3608 = vmax.f32 %v3450, 0.0
  %v3609 = vmax.f32 %v3452, 0.0
  %v3610 = vmax.f32 %v3455, 0.0
  %v3611 = vmax.f32 %v3457, 0.0
  %v3612 = vmax.f32 %v3460, 0.0
  %v3613 = vmax.f32 %v3462, 0.0
  %v3614 = vmax.f32 %v3465, 0.0
  %v3615 = vmax.f32 %v3467, 0.0
  %v3616 = vmax.f32 %v3470, 0.0
  %v3617 = vmax.f32 %v3472, 0.0
  %v3618 = vmax.f32 %v3475, 0.0
  %v3619 = vmax.f32 %v3477, 0.0
  %v3620 = vmax.f32 %v3480, 0.0
  %v3621 = vmax.f32 %v3482, 0.0
  %v3622 = vmax.f32 %v3485, 0.0
  %v3623 = vmax.f32 %v3487, 0.0
  %v3624 = vmax.f32 %v3490, 0.0
  %v3625 = vmax.f32 %v3492, 0.0
  %v3626 = vmax.f32 %v3495, 0.0
  %v3627 = vmax.f32 %v3497, 0.0
  %v3628 = vmax.f32 %v3500, 0.0
  %v3629 = vmax.f32 %v3502, 0.0
  %v3630 = vmax.f32 %v3505, 0.0
  %v3631 = vmax.f32 %v3507, 0.0
  %v3632 = vmax.f32 %v3510, 0.0
  %v3633 = vmax.f32 %v3512, 0.0
  %v3634 = vmax.f32 %v3515, 0.0
  %v3635 = vmax.f32 %v3517, 0.0
  %v3636 = vmax.f32 %v3520, 0.0
  %v3637 = vmax.f32 %v3522, 0.0
  %v3638 = vmax.f32 %v3525, 0.0
  %v3639 = vmax.f32 %v3527, 0.0
  %v3640 = vmax.f32 %v3530, 0.0
  %v3641 = vmax.f32 %v3532, 0.0
  %v3642 = vmax.f32 %v3535, 0.0
  %v3643 = vmax.f32 %v3537, 0.0
  %v3644 = vmax.f32 %v3540, 0.0
  %v3645 = vmax.f32 %v3542, 0.0
  %v3646 = vmax.f32 %v3545, 0.0
  %v3647 = vmax.f32 %v3547, 0.0
  %v3648 = vmax.f32 %v3550, 0.0
  %v3649 = vmax.f32 %v3552, 0.0
  %v3650 = vmax.f32 %v3555, 0.0
  %v3651 = vmax.f32 %v3557, 0.0
  %v3652 = vmax.f32 %v3560, 0.0
  %v3653 = vmax.f32 %v3562, 0.0
  %v3654 = vmax.f32 %v3565, 0.0
  %v3655 = vmax.f32 %v3567, 0.0
  %v3656 = vmax.f32 %v3570, 0.0
  %v3657 = vmax.f32 %v3572, 0.0
  %v3658 = vmax.f32 %v3574, %v3576
  %v3659 = vmax.f32 %v3575, %v3577
  %v3660 = vmax.f32 %v3576, %v3578
  %v3661 = vmax.f32 %v3577, %v3579
  %v3662 = vmax.f32 %v3578, %v3580
  %v3663 = vmax.f32 %v3579, %v3581
  %v3664 = vmax.f32 %v3580, %v3582
  %v3665 = vmax.f32 %v3581, %v3583
  %v3666 = vmax.f32 %v3582, %v3584
  %v3667 = vmax.f32 %v3583, %v3585
  %v3668 = vmax.f32 %v3584, %v3586
  %v3669 = vmax.f32 %v3585, %v3587
  %v3670 = vmax.f32 %v3586, %v3588
  %v3671 = vmax.f32 %v3587, %v3589
  %v3672 = vmax.f32 %v3588, %v3590
  %v3673 = vmax.f32 %v3589, %v3591
  %v3674 = vmax.f32 %v3590, %v3592
  %v3675 = vmax.f32 %v3591, %v3593
  %v3676 = vmax.f32 %v3592, %v3594
  %v3677 = vmax.f32 %v3593, %v3595
  %v3678 = vmax.f32 %v3594, %v3596
  %v3679 = vmax.f32 %v3595, %v3597
  %v3680 = vmax.f32 %v3596, %v3598
  %v3681 = vmax.f32 %v3597, %v3599
  %v3682 = vmax.f32 %v3598, %v3600
  %v3683 = vmax.f32 %v3599, %v3601
  %v3684 = vmax.f32 %v3600, %v3602
  %v3685 = vmax.f32 %v3601, %v3603
  %v3686 = vmax.f32 %v3602, %v3604
  %v3687 = vmax.f32 %v3603, %v3605
  %v3688 = vmax.f32 %v3604, %v3606
  %v3689 = vmax.f32 %v3605, %v3607
  %v3690 = vmax.f32 %v3606, %v3608
  %v3691 = vmax.f32 %v3607, %v3609
  %v3692 = vmax.f32 %v3608, %v3610
  %v3693 = vmax.f32 %v3609, %v3611
  %v3694 = vmax.f32 %v3610, %v3612
  %v3695 = vmax.f32 %v3611, %v3613
  %v3696 = vmax.f32 %v3612, %v3614
  %v3697 = vmax.f32 %v3613, %v3615
  %v3698 = vmax.f32 %v3614, %v3616
  %v3699 = vmax.f32 %v3615, %v3617
  %v3700 = vmax.f32 %v3616, %v3618
  %v3701 = vmax.f32 %v3617, %v3619
  %v3702 = vmax.f32 %v3618, %v3620
  %v3703 = vmax.f32 %v3619, %v3621
  %v3704 = vmax.f32 %v3620, %v3622
  %v3705 = vmax.f32 %v3621, %v3623
  %v3706 = vmax.f32 %v3622, %v3624
  %v3707 = vmax.f32 %v3623, %v3625
  %v3708 = vmax.f32 %v3624, %v3626
  %v3709 = vmax.f32 %v3625, %v3627
  %v3710 = vmax.f32 %v3626, %v3628
  %v3711 = vmax.f32 %v3627, %v3629
  %v3712 = vmax.f32 %v3628, %v3630
  %v3713 = vmax.f32 %v3629, %v3631
  %v3714 = vmax.f32 %v3630, %v3632
  %v3715 = vmax.f32 %v3631, %v3633
  %v3716 = vmax.f32 %v3632, %v3634
  %v3717 = vmax.f32 %v3633, %v3635
  %v3718 = vmax.f32 %v3634, %v3636
  %v3719 = vmax.f32 %v3635, %v3637
  %v3720 = vmax.f32 %v3636, %v3638
  %v3721 = vmax.f32 %v3637, %v3639
  %v3722 = vmax.f32 %v3638, %v3640
  %v3723 = vmax.f32 %v3639, %v3641
  %v3724 = vmax.f32 %v3640, %v3642
  %v3725 = vmax.f32 %v3641, %v3643
  %v3726 = vmax.f32 %v3642, %v3644
  %v3727 = vmax.f32 %v3643, %v3645
  %v3728 = vmax.f32 %v3644, %v3646
  %v3729 = vmax.f32 %v3645, %v3647
  %v3730 = vmax.f32 %v3646, %v3648
  %v3731 = vmax.f32 %v3647, %v3649
  %v3732 = vmax.f32 %v3648, %v3650
  %v3733 = vmax.f32 %v3649, %v3651
  %v3734 = vmax.f32 %v3650, %v3652
  %v3735 = vmax.f32 %v3651, %v3653
  %v3736 = vmax.f32 %v3652, %v3654
  %v3737 = vmax.f32 %v3653, %v3655
  %v3738 = vmax.f32 %v3658, %v3578
  %v3739 = vmax.f32 %v3659, %v3579
  %v3740 = vmax.f32 %v3660, %v3580
  %v3741 = vmax.f32 %v3661, %v3581
  %v3742 = vmax.f32 %v3662, %v3582
  %v3743 = vmax.f32 %v3663, %v3583
  %v3744 = vmax.f32 %v3664, %v3584
  %v3745 = vmax.f32 %v3665, %v3585
  %v3746 = vmax.f32 %v3666, %v3586
  %v3747 = vmax.f32 %v3667, %v3587
  %v3748 = vmax.f32 %v3668, %v3588
  %v3749 = vmax.f32 %v3669, %v3589
  %v3750 = vmax.f32 %v3670, %v3590
  %v3751 = vmax.f32 %v3671, %v3591
  %v3752 = vmax.f32 %v3672, %v3592
  %v3753 = vmax.f32 %v3673, %v3593
  %v3754 = vmax.f32 %v3674, %v3594
  %v3755 = vmax.f32 %v3675, %v3595
  %v3756 = vmax.f32 %v3676, %v3596
  %v3757 = vmax.f32 %v3677, %v3597
  %v3758 = vmax.f32 %v3678, %v3598
  %v3759 = vmax.f32 %v3679, %v3599
  %v3760 = vmax.f32 %v3680, %v3600
  %v3761 = vmax.f32 %v3681, %v3601
  %v3762 = vmax.f32 %v3682, %v3602
  %v3763 = vmax.f32 %v3683, %v3603
  %v3764 = vmax.f32 %v3684, %v3604
  %v3765 = vmax.f32 %v3685, %v3605
  %v3766 = vmax.f32 %v3686, %v3606
  %v3767 = vmax.f32 %v3687, %v3607
  %v3768 = vmax.f32 %v3688, %v3608
  %v3769 = vmax.f32 %v3689, %v3609
  %v3770 = vmax.f32 %v3690, %v3610
  %v3771 = vmax.f32 %v3691, %v3611
  %v3772 = vmax.f32 %v3692, %v3612
  %v3773 = vmax.f32 %v3693, %v3613
  %v3774 = vmax.f32 %v3694, %v3614
  %v3775 = vmax.f32 %v3695, %v3615
  %v3776 = vmax.f32 %v3696, %v3616
  %v3777 = vmax.f32 %v3697, %v3617
  %v3778 = vmax.f32 %v3698, %v3618
  %v3779 = vmax.f32 %v3699, %v3619
  %v3780 = vmax.f32 %v3700, %v3620
  %v3781 = vmax.f32 %v3701, %v3621
  %v3782 = vmax.f32 %v3702, %v3622
  %v3783 = vmax.f32 %v3703, %v3623
  %v3784 = vmax.f32 %v3704, %v3624
  %v3785 = vmax.f32 %v3705, %v3625
  %v3786 = vmax.f32 %v3706, %v3626
  %v3787 = vmax.f32 %v3707, %v3627
  %v3788 = vmax.f32 %v3708, %v3628
  %v3789 = vmax.f32 %v3709, %v3629
  %v3790 = vmax.f32 %v3710, %v3630
  %v3791 = vmax.f32 %v3711, %v3631
  %v3792 = vmax.f32 %v3712, %v3632
  %v3793 = vmax.f32 %v3713, %v3633
  %v3794 = vmax.f32 %v3714, %v3634
  %v3795 = vmax.f32 %v3715, %v3635
  %v3796 = vmax.f32 %v3716, %v3636
  %v3797 = vmax.f32 %v3717, %v3637
  %v3798 = vmax.f32 %v3718, %v3638
  %v3799 = vmax.f32 %v3719, %v3639
  %v3800 = vmax.f32 %v3720, %v3640
  %v3801 = vmax.f32 %v3721, %v3641
  %v3802 = vmax.f32 %v3722, %v3642
  %v3803 = vmax.f32 %v3723, %v3643
  %v3804 = vmax.f32 %v3724, %v3644
  %v3805 = vmax.f32 %v3725, %v3645
  %v3806 = vmax.f32 %v3726, %v3646
  %v3807 = vmax.f32 %v3727, %v3647
  %v3808 = vmax.f32 %v3728, %v3648
  %v3809 = vmax.f32 %v3729, %v3649
  %v3810 = vmax.f32 %v3730, %v3650
  %v3811 = vmax.f32 %v3731, %v3651
  %v3812 = vmax.f32 %v3732, %v3652
  %v3813 = vmax.f32 %v3733, %v3653
  %v3814 = vmax.f32 %v3734, %v3654
  %v3815 = vmax.f32 %v3735, %v3655
  %v3816 = vmax.f32 %v3736, %v3656
  %v3817 = vmax.f32 %v3737, %v3657
  %v3818 = vld [vmem:[%s5] sm:$0x1]
  %v3820 = vperm.slane %v3818, 0
  %v3822 = vmul.f32 %v3738, %v3820
  %v3823 = vmul.f32 %v3739, %v3820
  %v3824 = vmul.f32 %v3740, %v3820
  %v3825 = vmul.f32 %v3741, %v3820
  %v3826 = vmul.f32 %v3742, %v3820
  %v3827 = vmul.f32 %v3743, %v3820
  %v3828 = vmul.f32 %v3744, %v3820
  %v3829 = vmul.f32 %v3745, %v3820
  %v3830 = vmul.f32 %v3746, %v3820
  %v3831 = vmul.f32 %v3747, %v3820
  %v3832 = vmul.f32 %v3748, %v3820
  %v3833 = vmul.f32 %v3749, %v3820
  %v3834 = vmul.f32 %v3750, %v3820
  %v3835 = vmul.f32 %v3751, %v3820
  %v3836 = vmul.f32 %v3752, %v3820
  %v3837 = vmul.f32 %v3753, %v3820
  %v3838 = vmul.f32 %v3754, %v3820
  %v3839 = vmul.f32 %v3755, %v3820
  %v3840 = vmul.f32 %v3756, %v3820
  %v3841 = vmul.f32 %v3757, %v3820
  %v3842 = vmul.f32 %v3758, %v3820
  %v3843 = vmul.f32 %v3759, %v3820
  %v3844 = vmul.f32 %v3760, %v3820
  %v3845 = vmul.f32 %v3761, %v3820
  %v3846 = vmul.f32 %v3762, %v3820
  %v3847 = vmul.f32 %v3763, %v3820
  %v3848 = vmul.f32 %v3764, %v3820
  %v3849 = vmul.f32 %v3765, %v3820
  %v3850 = vmul.f32 %v3766, %v3820
  %v3851 = vmul.f32 %v3767, %v3820
  %v3852 = vmul.f32 %v3768, %v3820
  %v3853 = vmul.f32 %v3769, %v3820
  %v3854 = vmul.f32 %v3770, %v3820
  %v3855 = vmul.f32 %v3771, %v3820
  %v3856 = vmul.f32 %v3772, %v3820
  %v3857 = vmul.f32 %v3773, %v3820
  %v3858 = vmul.f32 %v3774, %v3820
  %v3859 = vmul.f32 %v3775, %v3820
  %v3860 = vmul.f32 %v3776, %v3820
  %v3861 = vmul.f32 %v3777, %v3820
  %v3862 = vmul.f32 %v3778, %v3820
  %v3863 = vmul.f32 %v3779, %v3820
  %v3864 = vmul.f32 %v3780, %v3820
  %v3865 = vmul.f32 %v3781, %v3820
  %v3866 = vmul.f32 %v3782, %v3820
  %v3867 = vmul.f32 %v3783, %v3820
  %v3868 = vmul.f32 %v3784, %v3820
  %v3869 = vmul.f32 %v3785, %v3820
  %v3870 = vmul.f32 %v3786, %v3820
  %v3871 = vmul.f32 %v3787, %v3820
  %v3872 = vmul.f32 %v3788, %v3820
  %v3873 = vmul.f32 %v3789, %v3820
  %v3874 = vmul.f32 %v3790, %v3820
  %v3875 = vmul.f32 %v3791, %v3820
  %v3876 = vmul.f32 %v3792, %v3820
  %v3877 = vmul.f32 %v3793, %v3820
  %v3878 = vmul.f32 %v3794, %v3820
  %v3879 = vmul.f32 %v3795, %v3820
  %v3880 = vmul.f32 %v3796, %v3820
  %v3881 = vmul.f32 %v3797, %v3820
  %v3882 = vmul.f32 %v3798, %v3820
  %v3883 = vmul.f32 %v3799, %v3820
  %v3884 = vmul.f32 %v3800, %v3820
  %v3885 = vmul.f32 %v3801, %v3820
  %v3886 = vmul.f32 %v3802, %v3820
  %v3887 = vmul.f32 %v3803, %v3820
  %v3888 = vmul.f32 %v3804, %v3820
  %v3889 = vmul.f32 %v3805, %v3820
  %v3890 = vmul.f32 %v3806, %v3820
  %v3891 = vmul.f32 %v3807, %v3820
  %v3892 = vmul.f32 %v3808, %v3820
  %v3893 = vmul.f32 %v3809, %v3820
  %v3894 = vmul.f32 %v3810, %v3820
  %v3895 = vmul.f32 %v3811, %v3820
  %v3896 = vmul.f32 %v3812, %v3820
  %v3897 = vmul.f32 %v3813, %v3820
  %v3898 = vmul.f32 %v3814, %v3820
  %v3899 = vmul.f32 %v3815, %v3820
  %v3900 = vmul.f32 %v3816, %v3820
  %v3901 = vmul.f32 %v3817, %v3820
  %v3902 = vsel %vm2752, %v3822, 0.0
  %3903 = vadd.xlane.f32.xlu0 %v3902
  %v3904 = vpop.xlane.xlu0 %3903
  %v3905 = vsel %vm2752, %v3823, 0.0
  %3906 = vadd.xlane.f32.xlu0 %v3905
  %v3907 = vpop.xlane.xlu0 %3906
  %v3908 = vsel %vm2752, %v3824, 0.0
  %3909 = vadd.xlane.f32.xlu0 %v3908
  %v3910 = vpop.xlane.xlu0 %3909
  %v3911 = vsel %vm2752, %v3825, 0.0
  %3912 = vadd.xlane.f32.xlu0 %v3911
  %v3913 = vpop.xlane.xlu0 %3912
  %v3914 = vsel %vm2752, %v3826, 0.0
  %3915 = vadd.xlane.f32.xlu0 %v3914
  %v3916 = vpop.xlane.xlu0 %3915
  %v3917 = vsel %vm2752, %v3827, 0.0
  %3918 = vadd.xlane.f32.xlu0 %v3917
  %v3919 = vpop.xlane.xlu0 %3918
  %v3920 = vsel %vm2752, %v3828, 0.0
  %3921 = vadd.xlane.f32.xlu0 %v3920
  %v3922 = vpop.xlane.xlu0 %3921
  %v3923 = vsel %vm2752, %v3829, 0.0
  %3924 = vadd.xlane.f32.xlu0 %v3923
  %v3925 = vpop.xlane.xlu0 %3924
  %v3926 = vsel %vm2752, %v3830, 0.0
  %3927 = vadd.xlane.f32.xlu0 %v3926
  %v3928 = vpop.xlane.xlu0 %3927
  %v3929 = vsel %vm2752, %v3831, 0.0
  %3930 = vadd.xlane.f32.xlu0 %v3929
  %v3931 = vpop.xlane.xlu0 %3930
  %v3932 = vsel %vm2752, %v3832, 0.0
  %3933 = vadd.xlane.f32.xlu0 %v3932
  %v3934 = vpop.xlane.xlu0 %3933
  %v3935 = vsel %vm2752, %v3833, 0.0
  %3936 = vadd.xlane.f32.xlu0 %v3935
  %v3937 = vpop.xlane.xlu0 %3936
  %v3938 = vsel %vm2752, %v3834, 0.0
  %3939 = vadd.xlane.f32.xlu0 %v3938
  %v3940 = vpop.xlane.xlu0 %3939
  %v3941 = vsel %vm2752, %v3835, 0.0
  %3942 = vadd.xlane.f32.xlu0 %v3941
  %v3943 = vpop.xlane.xlu0 %3942
  %v3944 = vsel %vm2752, %v3836, 0.0
  %3945 = vadd.xlane.f32.xlu0 %v3944
  %v3946 = vpop.xlane.xlu0 %3945
  %v3947 = vsel %vm2752, %v3837, 0.0
  %3948 = vadd.xlane.f32.xlu0 %v3947
  %v3949 = vpop.xlane.xlu0 %3948
  %v3950 = vsel %vm2752, %v3838, 0.0
  %3951 = vadd.xlane.f32.xlu0 %v3950
  %v3952 = vpop.xlane.xlu0 %3951
  %v3953 = vsel %vm2752, %v3839, 0.0
  %3954 = vadd.xlane.f32.xlu0 %v3953
  %v3955 = vpop.xlane.xlu0 %3954
  %v3956 = vsel %vm2752, %v3840, 0.0
  %3957 = vadd.xlane.f32.xlu0 %v3956
  %v3958 = vpop.xlane.xlu0 %3957
  %v3959 = vsel %vm2752, %v3841, 0.0
  %3960 = vadd.xlane.f32.xlu0 %v3959
  %v3961 = vpop.xlane.xlu0 %3960
  %v3962 = vsel %vm2752, %v3842, 0.0
  %3963 = vadd.xlane.f32.xlu0 %v3962
  %v3964 = vpop.xlane.xlu0 %3963
  %v3965 = vsel %vm2752, %v3843, 0.0
  %3966 = vadd.xlane.f32.xlu0 %v3965
  %v3967 = vpop.xlane.xlu0 %3966
  %v3968 = vsel %vm2752, %v3844, 0.0
  %3969 = vadd.xlane.f32.xlu0 %v3968
  %v3970 = vpop.xlane.xlu0 %3969
  %v3971 = vsel %vm2752, %v3845, 0.0
  %3972 = vadd.xlane.f32.xlu0 %v3971
  %v3973 = vpop.xlane.xlu0 %3972
  %v3974 = vsel %vm2752, %v3846, 0.0
  %3975 = vadd.xlane.f32.xlu0 %v3974
  %v3976 = vpop.xlane.xlu0 %3975
  %v3977 = vsel %vm2752, %v3847, 0.0
  %3978 = vadd.xlane.f32.xlu0 %v3977
  %v3979 = vpop.xlane.xlu0 %3978
  %v3980 = vsel %vm2752, %v3848, 0.0
  %3981 = vadd.xlane.f32.xlu0 %v3980
  %v3982 = vpop.xlane.xlu0 %3981
  %v3983 = vsel %vm2752, %v3849, 0.0
  %3984 = vadd.xlane.f32.xlu0 %v3983
  %v3985 = vpop.xlane.xlu0 %3984
  %v3986 = vsel %vm2752, %v3850, 0.0
  %3987 = vadd.xlane.f32.xlu0 %v3986
  %v3988 = vpop.xlane.xlu0 %3987
  %v3989 = vsel %vm2752, %v3851, 0.0
  %3990 = vadd.xlane.f32.xlu0 %v3989
  %v3991 = vpop.xlane.xlu0 %3990
  %v3992 = vsel %vm2752, %v3852, 0.0
  %3993 = vadd.xlane.f32.xlu0 %v3992
  %v3994 = vpop.xlane.xlu0 %3993
  %v3995 = vsel %vm2752, %v3853, 0.0
  %3996 = vadd.xlane.f32.xlu0 %v3995
  %v3997 = vpop.xlane.xlu0 %3996
  %v3998 = vsel %vm2752, %v3854, 0.0
  %3999 = vadd.xlane.f32.xlu0 %v3998
  %v4000 = vpop.xlane.xlu0 %3999
  %v4001 = vsel %vm2752, %v3855, 0.0
  %4002 = vadd.xlane.f32.xlu0 %v4001
  %v4003 = vpop.xlane.xlu0 %4002
  %v4004 = vsel %vm2752, %v3856, 0.0
  %4005 = vadd.xlane.f32.xlu0 %v4004
  %v4006 = vpop.xlane.xlu0 %4005
  %v4007 = vsel %vm2752, %v3857, 0.0
  %4008 = vadd.xlane.f32.xlu0 %v4007
  %v4009 = vpop.xlane.xlu0 %4008
  %v4010 = vsel %vm2752, %v3858, 0.0
  %4011 = vadd.xlane.f32.xlu0 %v4010
  %v4012 = vpop.xlane.xlu0 %4011
  %v4013 = vsel %vm2752, %v3859, 0.0
  %4014 = vadd.xlane.f32.xlu0 %v4013
  %v4015 = vpop.xlane.xlu0 %4014
  %v4016 = vsel %vm2752, %v3860, 0.0
  %4017 = vadd.xlane.f32.xlu0 %v4016
  %v4018 = vpop.xlane.xlu0 %4017
  %v4019 = vsel %vm2752, %v3861, 0.0
  %4020 = vadd.xlane.f32.xlu0 %v4019
  %v4021 = vpop.xlane.xlu0 %4020
  %v4022 = vsel %vm2752, %v3862, 0.0
  %4023 = vadd.xlane.f32.xlu0 %v4022
  %v4024 = vpop.xlane.xlu0 %4023
  %v4025 = vsel %vm2752, %v3863, 0.0
  %4026 = vadd.xlane.f32.xlu0 %v4025
  %v4027 = vpop.xlane.xlu0 %4026
  %v4028 = vsel %vm2752, %v3864, 0.0
  %4029 = vadd.xlane.f32.xlu0 %v4028
  %v4030 = vpop.xlane.xlu0 %4029
  %v4031 = vsel %vm2752, %v3865, 0.0
  %4032 = vadd.xlane.f32.xlu0 %v4031
  %v4033 = vpop.xlane.xlu0 %4032
  %v4034 = vsel %vm2752, %v3866, 0.0
  %4035 = vadd.xlane.f32.xlu0 %v4034
  %v4036 = vpop.xlane.xlu0 %4035
  %v4037 = vsel %vm2752, %v3867, 0.0
  %4038 = vadd.xlane.f32.xlu0 %v4037
  %v4039 = vpop.xlane.xlu0 %4038
  %v4040 = vsel %vm2752, %v3868, 0.0
  %4041 = vadd.xlane.f32.xlu0 %v4040
  %v4042 = vpop.xlane.xlu0 %4041
  %v4043 = vsel %vm2752, %v3869, 0.0
  %4044 = vadd.xlane.f32.xlu0 %v4043
  %v4045 = vpop.xlane.xlu0 %4044
  %v4046 = vsel %vm2752, %v3870, 0.0
  %4047 = vadd.xlane.f32.xlu0 %v4046
  %v4048 = vpop.xlane.xlu0 %4047
  %v4049 = vsel %vm2752, %v3871, 0.0
  %4050 = vadd.xlane.f32.xlu0 %v4049
  %v4051 = vpop.xlane.xlu0 %4050
  %v4052 = vsel %vm2752, %v3872, 0.0
  %4053 = vadd.xlane.f32.xlu0 %v4052
  %v4054 = vpop.xlane.xlu0 %4053
  %v4055 = vsel %vm2752, %v3873, 0.0
  %4056 = vadd.xlane.f32.xlu0 %v4055
  %v4057 = vpop.xlane.xlu0 %4056
  %v4058 = vsel %vm2752, %v3874, 0.0
  %4059 = vadd.xlane.f32.xlu0 %v4058
  %v4060 = vpop.xlane.xlu0 %4059
  %v4061 = vsel %vm2752, %v3875, 0.0
  %4062 = vadd.xlane.f32.xlu0 %v4061
  %v4063 = vpop.xlane.xlu0 %4062
  %v4064 = vsel %vm2752, %v3876, 0.0
  %4065 = vadd.xlane.f32.xlu0 %v4064
  %v4066 = vpop.xlane.xlu0 %4065
  %v4067 = vsel %vm2752, %v3877, 0.0
  %4068 = vadd.xlane.f32.xlu0 %v4067
  %v4069 = vpop.xlane.xlu0 %4068
  %v4070 = vsel %vm2752, %v3878, 0.0
  %4071 = vadd.xlane.f32.xlu0 %v4070
  %v4072 = vpop.xlane.xlu0 %4071
  %v4073 = vsel %vm2752, %v3879, 0.0
  %4074 = vadd.xlane.f32.xlu0 %v4073
  %v4075 = vpop.xlane.xlu0 %4074
  %v4076 = vsel %vm2752, %v3880, 0.0
  %4077 = vadd.xlane.f32.xlu0 %v4076
  %v4078 = vpop.xlane.xlu0 %4077
  %v4079 = vsel %vm2752, %v3881, 0.0
  %4080 = vadd.xlane.f32.xlu0 %v4079
  %v4081 = vpop.xlane.xlu0 %4080
  %v4082 = vsel %vm2752, %v3882, 0.0
  %4083 = vadd.xlane.f32.xlu0 %v4082
  %v4084 = vpop.xlane.xlu0 %4083
  %v4085 = vsel %vm2752, %v3883, 0.0
  %4086 = vadd.xlane.f32.xlu0 %v4085
  %v4087 = vpop.xlane.xlu0 %4086
  %v4088 = vsel %vm2752, %v3884, 0.0
  %4089 = vadd.xlane.f32.xlu0 %v4088
  %v4090 = vpop.xlane.xlu0 %4089
  %v4091 = vsel %vm2752, %v3885, 0.0
  %4092 = vadd.xlane.f32.xlu0 %v4091
  %v4093 = vpop.xlane.xlu0 %4092
  %v4094 = vsel %vm2752, %v3886, 0.0
  %4095 = vadd.xlane.f32.xlu0 %v4094
  %v4096 = vpop.xlane.xlu0 %4095
  %v4097 = vsel %vm2752, %v3887, 0.0
  %4098 = vadd.xlane.f32.xlu0 %v4097
  %v4099 = vpop.xlane.xlu0 %4098
  %v4100 = vsel %vm2752, %v3888, 0.0
  %4101 = vadd.xlane.f32.xlu0 %v4100
  %v4102 = vpop.xlane.xlu0 %4101
  %v4103 = vsel %vm2752, %v3889, 0.0
  %4104 = vadd.xlane.f32.xlu0 %v4103
  %v4105 = vpop.xlane.xlu0 %4104
  %v4106 = vsel %vm2752, %v3890, 0.0
  %4107 = vadd.xlane.f32.xlu0 %v4106
  %v4108 = vpop.xlane.xlu0 %4107
  %v4109 = vsel %vm2752, %v3891, 0.0
  %4110 = vadd.xlane.f32.xlu0 %v4109
  %v4111 = vpop.xlane.xlu0 %4110
  %v4112 = vsel %vm2752, %v3892, 0.0
  %4113 = vadd.xlane.f32.xlu0 %v4112
  %v4114 = vpop.xlane.xlu0 %4113
  %v4115 = vsel %vm2752, %v3893, 0.0
  %4116 = vadd.xlane.f32.xlu0 %v4115
  %v4117 = vpop.xlane.xlu0 %4116
  %v4118 = vsel %vm2752, %v3894, 0.0
  %4119 = vadd.xlane.f32.xlu0 %v4118
  %v4120 = vpop.xlane.xlu0 %4119
  %v4121 = vsel %vm2752, %v3895, 0.0
  %4122 = vadd.xlane.f32.xlu0 %v4121
  %v4123 = vpop.xlane.xlu0 %4122
  %v4124 = vsel %vm2752, %v3896, 0.0
  %4125 = vadd.xlane.f32.xlu0 %v4124
  %v4126 = vpop.xlane.xlu0 %4125
  %v4127 = vsel %vm2752, %v3897, 0.0
  %4128 = vadd.xlane.f32.xlu0 %v4127
  %v4129 = vpop.xlane.xlu0 %4128
  %v4130 = vsel %vm2752, %v3898, 0.0
  %4131 = vadd.xlane.f32.xlu0 %v4130
  %v4132 = vpop.xlane.xlu0 %4131
  %v4133 = vsel %vm2752, %v3899, 0.0
  %4134 = vadd.xlane.f32.xlu0 %v4133
  %v4135 = vpop.xlane.xlu0 %4134
  %v4136 = vsel %vm2752, %v3900, 0.0
  %4137 = vadd.xlane.f32.xlu0 %v4136
  %v4138 = vpop.xlane.xlu0 %4137
  %v4139 = vsel %vm2752, %v3901, 0.0
  %4140 = vadd.xlane.f32.xlu0 %v4139
  %v4141 = vpop.xlane.xlu0 %4140
  %v4142 = vsub.f32 %v3904, %v3907
  %v4143 = vsub.f32 %v3907, %v3910
  %v4144 = vsub.f32 %v3910, %v3913
  %v4145 = vsub.f32 %v3913, %v3916
  %v4146 = vsub.f32 %v3916, %v3919
  %v4147 = vsub.f32 %v3919, %v3922
  %v4148 = vsub.f32 %v3922, %v3925
  %v4149 = vsub.f32 %v3925, %v3928
  %v4150 = vsub.f32 %v3928, %v3931
  %v4151 = vsub.f32 %v3931, %v3934
  %v4152 = vsub.f32 %v3934, %v3937
  %v4153 = vsub.f32 %v3937, %v3940
  %v4154 = vsub.f32 %v3940, %v3943
  %v4155 = vsub.f32 %v3943, %v3946
  %v4156 = vsub.f32 %v3946, %v3949
  %v4157 = vsub.f32 %v3949, %v3952
  %v4158 = vsub.f32 %v3952, %v3955
  %v4159 = vsub.f32 %v3955, %v3958
  %v4160 = vsub.f32 %v3958, %v3961
  %v4161 = vsub.f32 %v3961, %v3964
  %v4162 = vsub.f32 %v3964, %v3967
  %v4163 = vsub.f32 %v3967, %v3970
  %v4164 = vsub.f32 %v3970, %v3973
  %v4165 = vsub.f32 %v3973, %v3976
  %v4166 = vsub.f32 %v3976, %v3979
  %v4167 = vsub.f32 %v3979, %v3982
  %v4168 = vsub.f32 %v3982, %v3985
  %v4169 = vsub.f32 %v3985, %v3988
  %v4170 = vsub.f32 %v3988, %v3991
  %v4171 = vsub.f32 %v3991, %v3994
  %v4172 = vsub.f32 %v3994, %v3997
  %v4173 = vsub.f32 %v3997, %v4000
  %v4174 = vsub.f32 %v4000, %v4003
  %v4175 = vsub.f32 %v4003, %v4006
  %v4176 = vsub.f32 %v4006, %v4009
  %v4177 = vsub.f32 %v4009, %v4012
  %v4178 = vsub.f32 %v4012, %v4015
  %v4179 = vsub.f32 %v4015, %v4018
  %v4180 = vsub.f32 %v4018, %v4021
  %v4181 = vsub.f32 %v4021, %v4024
  %v4182 = vsub.f32 %v4024, %v4027
  %v4183 = vsub.f32 %v4027, %v4030
  %v4184 = vsub.f32 %v4030, %v4033
  %v4185 = vsub.f32 %v4033, %v4036
  %v4186 = vsub.f32 %v4036, %v4039
  %v4187 = vsub.f32 %v4039, %v4042
  %v4188 = vsub.f32 %v4042, %v4045
  %v4189 = vsub.f32 %v4045, %v4048
  %v4190 = vsub.f32 %v4048, %v4051
  %v4191 = vsub.f32 %v4051, %v4054
  %v4192 = vsub.f32 %v4054, %v4057
  %v4193 = vsub.f32 %v4057, %v4060
  %v4194 = vsub.f32 %v4060, %v4063
  %v4195 = vsub.f32 %v4063, %v4066
  %v4196 = vsub.f32 %v4066, %v4069
  %v4197 = vsub.f32 %v4069, %v4072
  %v4198 = vsub.f32 %v4072, %v4075
  %v4199 = vsub.f32 %v4075, %v4078
  %v4200 = vsub.f32 %v4078, %v4081
  %v4201 = vsub.f32 %v4081, %v4084
  %v4202 = vsub.f32 %v4084, %v4087
  %v4203 = vsub.f32 %v4087, %v4090
  %v4204 = vsub.f32 %v4090, %v4093
  %v4205 = vsub.f32 %v4093, %v4096
  %v4206 = vsub.f32 %v4096, %v4099
  %v4207 = vsub.f32 %v4099, %v4102
  %v4208 = vsub.f32 %v4102, %v4105
  %v4209 = vsub.f32 %v4105, %v4108
  %v4210 = vsub.f32 %v4108, %v4111
  %v4211 = vsub.f32 %v4111, %v4114
  %v4212 = vsub.f32 %v4114, %v4117
  %v4213 = vsub.f32 %v4117, %v4120
  %v4214 = vsub.f32 %v4120, %v4123
  %v4215 = vsub.f32 %v4123, %v4126
  %v4216 = vsub.f32 %v4126, %v4129
  %v4217 = vsub.f32 %v4129, %v4132
  %v4218 = vsub.f32 %v4132, %v4135
  %v4219 = vsub.f32 %v4135, %v4138
  %v4220 = vsub.f32 %v4138, %v4141
  %v4221 = vmul.f32 %v4142, %v4142
  %v4222 = vmul.f32 %v4143, %v4143
  %v4223 = vmul.f32 %v4144, %v4144
  %v4224 = vmul.f32 %v4145, %v4145
  %v4225 = vmul.f32 %v4146, %v4146
  %v4226 = vmul.f32 %v4147, %v4147
  %v4227 = vmul.f32 %v4148, %v4148
  %v4228 = vmul.f32 %v4149, %v4149
  %v4229 = vmul.f32 %v4150, %v4150
  %v4230 = vmul.f32 %v4151, %v4151
  %v4231 = vmul.f32 %v4152, %v4152
  %v4232 = vmul.f32 %v4153, %v4153
  %v4233 = vmul.f32 %v4154, %v4154
  %v4234 = vmul.f32 %v4155, %v4155
  %v4235 = vmul.f32 %v4156, %v4156
  %v4236 = vmul.f32 %v4157, %v4157
  %v4237 = vmul.f32 %v4158, %v4158
  %v4238 = vmul.f32 %v4159, %v4159
  %v4239 = vmul.f32 %v4160, %v4160
  %v4240 = vmul.f32 %v4161, %v4161
  %v4241 = vmul.f32 %v4162, %v4162
  %v4242 = vmul.f32 %v4163, %v4163
  %v4243 = vmul.f32 %v4164, %v4164
  %v4244 = vmul.f32 %v4165, %v4165
  %v4245 = vmul.f32 %v4166, %v4166
  %v4246 = vmul.f32 %v4167, %v4167
  %v4247 = vmul.f32 %v4168, %v4168
  %v4248 = vmul.f32 %v4169, %v4169
  %v4249 = vmul.f32 %v4170, %v4170
  %v4250 = vmul.f32 %v4171, %v4171
  %v4251 = vmul.f32 %v4172, %v4172
  %v4252 = vmul.f32 %v4173, %v4173
  %v4253 = vmul.f32 %v4174, %v4174
  %v4254 = vmul.f32 %v4175, %v4175
  %v4255 = vmul.f32 %v4176, %v4176
  %v4256 = vmul.f32 %v4177, %v4177
  %v4257 = vmul.f32 %v4178, %v4178
  %v4258 = vmul.f32 %v4179, %v4179
  %v4259 = vmul.f32 %v4180, %v4180
  %v4260 = vmul.f32 %v4181, %v4181
  %v4261 = vmul.f32 %v4182, %v4182
  %v4262 = vmul.f32 %v4183, %v4183
  %v4263 = vmul.f32 %v4184, %v4184
  %v4264 = vmul.f32 %v4185, %v4185
  %v4265 = vmul.f32 %v4186, %v4186
  %v4266 = vmul.f32 %v4187, %v4187
  %v4267 = vmul.f32 %v4188, %v4188
  %v4268 = vmul.f32 %v4189, %v4189
  %v4269 = vmul.f32 %v4190, %v4190
  %v4270 = vmul.f32 %v4191, %v4191
  %v4271 = vmul.f32 %v4192, %v4192
  %v4272 = vmul.f32 %v4193, %v4193
  %v4273 = vmul.f32 %v4194, %v4194
  %v4274 = vmul.f32 %v4195, %v4195
  %v4275 = vmul.f32 %v4196, %v4196
  %v4276 = vmul.f32 %v4197, %v4197
  %v4277 = vmul.f32 %v4198, %v4198
  %v4278 = vmul.f32 %v4199, %v4199
  %v4279 = vmul.f32 %v4200, %v4200
  %v4280 = vmul.f32 %v4201, %v4201
  %v4281 = vmul.f32 %v4202, %v4202
  %v4282 = vmul.f32 %v4203, %v4203
  %v4283 = vmul.f32 %v4204, %v4204
  %v4284 = vmul.f32 %v4205, %v4205
  %v4285 = vmul.f32 %v4206, %v4206
  %v4286 = vmul.f32 %v4207, %v4207
  %v4287 = vmul.f32 %v4208, %v4208
  %v4288 = vmul.f32 %v4209, %v4209
  %v4289 = vmul.f32 %v4210, %v4210
  %v4290 = vmul.f32 %v4211, %v4211
  %v4291 = vmul.f32 %v4212, %v4212
  %v4292 = vmul.f32 %v4213, %v4213
  %v4293 = vmul.f32 %v4214, %v4214
  %v4294 = vmul.f32 %v4215, %v4215
  %v4295 = vmul.f32 %v4216, %v4216
  %v4296 = vmul.f32 %v4217, %v4217
  %v4297 = vmul.f32 %v4218, %v4218
  %v4298 = vmul.f32 %v4219, %v4219
  %v4299 = vmul.f32 %v4220, %v4220
  %v4300 = vld [vmem:[%s6] sm:$0xff]
  %v4301 = vld [vmem:[%s6 + $0x8] sm:$0xff]
  %v4302 = vld [vmem:[%s6 + $0x10] sm:$0xff]
  %v4303 = vld [vmem:[%s6 + $0x18] sm:$0xff]
  %v4304 = vld [vmem:[%s6 + $0x20] sm:$0xff]
  %v4305 = vld [vmem:[%s6 + $0x28] sm:$0xff]
  %v4306 = vld [vmem:[%s6 + $0x30] sm:$0xff]
  %v4307 = vld [vmem:[%s6 + $0x38] sm:$0xff]
  %v4308 = vld [vmem:[%s6 + $0x40] sm:$0xff]
  %v4309 = vld [vmem:[%s6 + $0x48] sm:$0xff]
  %v4310 = vld [vmem:[%s6 + $0x50] sm:$0xff]
  %v4311 = vld [vmem:[%s6 + $0x58] sm:$0xff]
  %v4312 = vld [vmem:[%s6 + $0x60] sm:$0xff]
  %v4313 = vld [vmem:[%s6 + $0x68] sm:$0xff]
  %v4314 = vld [vmem:[%s6 + $0x70] sm:$0xff]
  %v4315 = vld [vmem:[%s6 + $0x78] sm:$0xff]
  %v4316 = vld [vmem:[%s6 + $0x80] sm:$0xff]
  %v4317 = vld [vmem:[%s6 + $0x88] sm:$0xff]
  %v4318 = vld [vmem:[%s6 + $0x90] sm:$0xff]
  %v4319 = vld [vmem:[%s6 + $0x98] sm:$0xff]
  %v4320 = vld [vmem:[%s6 + $0xa0] sm:$0xff]
  %v4321 = vld [vmem:[%s6 + $0xa8] sm:$0xff]
  %v4322 = vld [vmem:[%s6 + $0xb0] sm:$0xff]
  %v4323 = vld [vmem:[%s6 + $0xb8] sm:$0xff]
  %v4324 = vld [vmem:[%s6 + $0xc0] sm:$0xff]
  %v4325 = vld [vmem:[%s6 + $0xc8] sm:$0xff]
  %v4326 = vld [vmem:[%s6 + $0xd0] sm:$0xff]
  %v4327 = vld [vmem:[%s6 + $0xd8] sm:$0xff]
  %v4328 = vld [vmem:[%s6 + $0xe0] sm:$0xff]
  %v4329 = vld [vmem:[%s6 + $0xe8] sm:$0xff]
  %v4330 = vld [vmem:[%s6 + $0xf0] sm:$0xff]
  %v4331 = vld [vmem:[%s6 + $0xf8] sm:$0xff]
  %v4332 = vld [vmem:[%s6 + $0x100] sm:$0xff]
  %v4333 = vld [vmem:[%s6 + $0x108] sm:$0xff]
  %v4334 = vld [vmem:[%s6 + $0x110] sm:$0xff]
  %v4335 = vld [vmem:[%s6 + $0x118] sm:$0xff]
  %v4336 = vld [vmem:[%s6 + $0x120] sm:$0xff]
  %v4337 = vld [vmem:[%s6 + $0x128] sm:$0xff]
  %v4338 = vld [vmem:[%s6 + $0x130] sm:$0xff]
  %v4339 = vld [vmem:[%s6 + $0x138] sm:$0xff]
  %v4340 = vld [vmem:[%s6 + $0x140] sm:$0xff]
  %v4341 = vld [vmem:[%s6 + $0x148] sm:$0xff]
  %v4342 = vld [vmem:[%s6 + $0x150] sm:$0xff]
  %v4343 = vld [vmem:[%s6 + $0x158] sm:$0xff]
  %v4344 = vld [vmem:[%s6 + $0x160] sm:$0xff]
  %v4345 = vld [vmem:[%s6 + $0x168] sm:$0xff]
  %v4346 = vld [vmem:[%s6 + $0x170] sm:$0xff]
  %v4347 = vld [vmem:[%s6 + $0x178] sm:$0xff]
  %v4348 = vld [vmem:[%s6 + $0x180] sm:$0xff]
  %v4349 = vld [vmem:[%s6 + $0x188] sm:$0xff]
  %v4350 = vld [vmem:[%s6 + $0x190] sm:$0xff]
  %v4351 = vld [vmem:[%s6 + $0x198] sm:$0xff]
  %v4352 = vld [vmem:[%s6 + $0x1a0] sm:$0xff]
  %v4353 = vld [vmem:[%s6 + $0x1a8] sm:$0xff]
  %v4354 = vld [vmem:[%s6 + $0x1b0] sm:$0xff]
  %v4355 = vld [vmem:[%s6 + $0x1b8] sm:$0xff]
  %v4356 = vld [vmem:[%s6 + $0x1c0] sm:$0xff]
  %v4357 = vld [vmem:[%s6 + $0x1c8] sm:$0xff]
  %v4358 = vld [vmem:[%s6 + $0x1d0] sm:$0xff]
  %v4359 = vld [vmem:[%s6 + $0x1d8] sm:$0xff]
  %v4360 = vld [vmem:[%s6 + $0x1e0] sm:$0xff]
  %v4361 = vld [vmem:[%s6 + $0x1e8] sm:$0xff]
  %v4362 = vld [vmem:[%s6 + $0x1f0] sm:$0xff]
  %v4363 = vld [vmem:[%s6 + $0x1f8] sm:$0xff]
  %v4364 = vld [vmem:[%s6 + $0x200] sm:$0xff]
  %v4365 = vld [vmem:[%s6 + $0x208] sm:$0xff]
  %v4366 = vld [vmem:[%s6 + $0x210] sm:$0xff]
  %v4367 = vld [vmem:[%s6 + $0x218] sm:$0xff]
  %v4368 = vld [vmem:[%s6 + $0x220] sm:$0xff]
  %v4369 = vld [vmem:[%s6 + $0x228] sm:$0xff]
  %v4370 = vld [vmem:[%s6 + $0x230] sm:$0xff]
  %v4371 = vld [vmem:[%s6 + $0x238] sm:$0xff]
  %v4372 = vld [vmem:[%s6 + $0x240] sm:$0xff]
  %v4373 = vld [vmem:[%s6 + $0x248] sm:$0xff]
  %v4374 = vld [vmem:[%s6 + $0x250] sm:$0xff]
  %v4375 = vld [vmem:[%s6 + $0x258] sm:$0xff]
  %v4376 = vld [vmem:[%s6 + $0x260] sm:$0xff]
  %v4377 = vld [vmem:[%s6 + $0x268] sm:$0xff]
  %v4378 = vld [vmem:[%s6 + $0x270] sm:$0xff]
  %v4379 = vmul.f32 %v4221, %v4300
  %v4380 = vmul.f32 %v4222, %v4301
  %v4381 = vmul.f32 %v4223, %v4302
  %v4382 = vmul.f32 %v4224, %v4303
  %v4383 = vmul.f32 %v4225, %v4304
  %v4384 = vmul.f32 %v4226, %v4305
  %v4385 = vmul.f32 %v4227, %v4306
  %v4386 = vmul.f32 %v4228, %v4307
  %v4387 = vmul.f32 %v4229, %v4308
  %v4388 = vmul.f32 %v4230, %v4309
  %v4389 = vmul.f32 %v4231, %v4310
  %v4390 = vmul.f32 %v4232, %v4311
  %v4391 = vmul.f32 %v4233, %v4312
  %v4392 = vmul.f32 %v4234, %v4313
  %v4393 = vmul.f32 %v4235, %v4314
  %v4394 = vmul.f32 %v4236, %v4315
  %v4395 = vmul.f32 %v4237, %v4316
  %v4396 = vmul.f32 %v4238, %v4317
  %v4397 = vmul.f32 %v4239, %v4318
  %v4398 = vmul.f32 %v4240, %v4319
  %v4399 = vmul.f32 %v4241, %v4320
  %v4400 = vmul.f32 %v4242, %v4321
  %v4401 = vmul.f32 %v4243, %v4322
  %v4402 = vmul.f32 %v4244, %v4323
  %v4403 = vmul.f32 %v4245, %v4324
  %v4404 = vmul.f32 %v4246, %v4325
  %v4405 = vmul.f32 %v4247, %v4326
  %v4406 = vmul.f32 %v4248, %v4327
  %v4407 = vmul.f32 %v4249, %v4328
  %v4408 = vmul.f32 %v4250, %v4329
  %v4409 = vmul.f32 %v4251, %v4330
  %v4410 = vmul.f32 %v4252, %v4331
  %v4411 = vmul.f32 %v4253, %v4332
  %v4412 = vmul.f32 %v4254, %v4333
  %v4413 = vmul.f32 %v4255, %v4334
  %v4414 = vmul.f32 %v4256, %v4335
  %v4415 = vmul.f32 %v4257, %v4336
  %v4416 = vmul.f32 %v4258, %v4337
  %v4417 = vmul.f32 %v4259, %v4338
  %v4418 = vmul.f32 %v4260, %v4339
  %v4419 = vmul.f32 %v4261, %v4340
  %v4420 = vmul.f32 %v4262, %v4341
  %v4421 = vmul.f32 %v4263, %v4342
  %v4422 = vmul.f32 %v4264, %v4343
  %v4423 = vmul.f32 %v4265, %v4344
  %v4424 = vmul.f32 %v4266, %v4345
  %v4425 = vmul.f32 %v4267, %v4346
  %v4426 = vmul.f32 %v4268, %v4347
  %v4427 = vmul.f32 %v4269, %v4348
  %v4428 = vmul.f32 %v4270, %v4349
  %v4429 = vmul.f32 %v4271, %v4350
  %v4430 = vmul.f32 %v4272, %v4351
  %v4431 = vmul.f32 %v4273, %v4352
  %v4432 = vmul.f32 %v4274, %v4353
  %v4433 = vmul.f32 %v4275, %v4354
  %v4434 = vmul.f32 %v4276, %v4355
  %v4435 = vmul.f32 %v4277, %v4356
  %v4436 = vmul.f32 %v4278, %v4357
  %v4437 = vmul.f32 %v4279, %v4358
  %v4438 = vmul.f32 %v4280, %v4359
  %v4439 = vmul.f32 %v4281, %v4360
  %v4440 = vmul.f32 %v4282, %v4361
  %v4441 = vmul.f32 %v4283, %v4362
  %v4442 = vmul.f32 %v4284, %v4363
  %v4443 = vmul.f32 %v4285, %v4364
  %v4444 = vmul.f32 %v4286, %v4365
  %v4445 = vmul.f32 %v4287, %v4366
  %v4446 = vmul.f32 %v4288, %v4367
  %v4447 = vmul.f32 %v4289, %v4368
  %v4448 = vmul.f32 %v4290, %v4369
  %v4449 = vmul.f32 %v4291, %v4370
  %v4450 = vmul.f32 %v4292, %v4371
  %v4451 = vmul.f32 %v4293, %v4372
  %v4452 = vmul.f32 %v4294, %v4373
  %v4453 = vmul.f32 %v4295, %v4374
  %v4454 = vmul.f32 %v4296, %v4375
  %v4455 = vmul.f32 %v4297, %v4376
  %v4456 = vmul.f32 %v4298, %v4377
  %v4457 = vmul.f32 %v4299, %v4378
  %vm4458 = vcmask 64512
  %v4459 = vsel %vm4458, %v4379, 0.0
  %v4460 = vsel %vm4458, %v4380, 0.0
  %v4461 = vadd.f32 %v4459, %v4460
  %v4462 = vsel %vm4458, %v4381, 0.0
  %v4463 = vadd.f32 %v4461, %v4462
  %v4464 = vsel %vm4458, %v4382, 0.0
  %v4465 = vadd.f32 %v4463, %v4464
  %v4466 = vsel %vm4458, %v4383, 0.0
  %v4467 = vadd.f32 %v4465, %v4466
  %v4468 = vsel %vm4458, %v4384, 0.0
  %v4469 = vadd.f32 %v4467, %v4468
  %v4470 = vsel %vm4458, %v4385, 0.0
  %v4471 = vadd.f32 %v4469, %v4470
  %v4472 = vsel %vm4458, %v4386, 0.0
  %v4473 = vadd.f32 %v4471, %v4472
  %v4474 = vsel %vm4458, %v4387, 0.0
  %v4475 = vadd.f32 %v4473, %v4474
  %v4476 = vsel %vm4458, %v4388, 0.0
  %v4477 = vadd.f32 %v4475, %v4476
  %v4478 = vsel %vm4458, %v4389, 0.0
  %v4479 = vadd.f32 %v4477, %v4478
  %v4480 = vsel %vm4458, %v4390, 0.0
  %v4481 = vadd.f32 %v4479, %v4480
  %v4482 = vsel %vm4458, %v4391, 0.0
  %v4483 = vadd.f32 %v4481, %v4482
  %v4484 = vsel %vm4458, %v4392, 0.0
  %v4485 = vadd.f32 %v4483, %v4484
  %v4486 = vsel %vm4458, %v4393, 0.0
  %v4487 = vadd.f32 %v4485, %v4486
  %v4488 = vsel %vm4458, %v4394, 0.0
  %v4489 = vadd.f32 %v4487, %v4488
  %v4490 = vsel %vm4458, %v4395, 0.0
  %v4491 = vadd.f32 %v4489, %v4490
  %v4492 = vsel %vm4458, %v4396, 0.0
  %v4493 = vadd.f32 %v4491, %v4492
  %v4494 = vsel %vm4458, %v4397, 0.0
  %v4495 = vadd.f32 %v4493, %v4494
  %v4496 = vsel %vm4458, %v4398, 0.0
  %v4497 = vadd.f32 %v4495, %v4496
  %v4498 = vsel %vm4458, %v4399, 0.0
  %v4499 = vadd.f32 %v4497, %v4498
  %v4500 = vsel %vm4458, %v4400, 0.0
  %v4501 = vadd.f32 %v4499, %v4500
  %v4502 = vsel %vm4458, %v4401, 0.0
  %v4503 = vadd.f32 %v4501, %v4502
  %v4504 = vsel %vm4458, %v4402, 0.0
  %v4505 = vadd.f32 %v4503, %v4504
  %v4506 = vsel %vm4458, %v4403, 0.0
  %v4507 = vadd.f32 %v4505, %v4506
  %v4508 = vsel %vm4458, %v4404, 0.0
  %v4509 = vadd.f32 %v4507, %v4508
  %v4510 = vsel %vm4458, %v4405, 0.0
  %v4511 = vadd.f32 %v4509, %v4510
  %v4512 = vsel %vm4458, %v4406, 0.0
  %v4513 = vadd.f32 %v4511, %v4512
  %v4514 = vsel %vm4458, %v4407, 0.0
  %v4515 = vadd.f32 %v4513, %v4514
  %v4516 = vsel %vm4458, %v4408, 0.0
  %v4517 = vadd.f32 %v4515, %v4516
  %v4518 = vsel %vm4458, %v4409, 0.0
  %v4519 = vadd.f32 %v4517, %v4518
  %v4520 = vsel %vm4458, %v4410, 0.0
  %v4521 = vadd.f32 %v4519, %v4520
  %v4522 = vsel %vm4458, %v4411, 0.0
  %v4523 = vadd.f32 %v4521, %v4522
  %v4524 = vsel %vm4458, %v4412, 0.0
  %v4525 = vadd.f32 %v4523, %v4524
  %v4526 = vsel %vm4458, %v4413, 0.0
  %v4527 = vadd.f32 %v4525, %v4526
  %v4528 = vsel %vm4458, %v4414, 0.0
  %v4529 = vadd.f32 %v4527, %v4528
  %v4530 = vsel %vm4458, %v4415, 0.0
  %v4531 = vadd.f32 %v4529, %v4530
  %v4532 = vsel %vm4458, %v4416, 0.0
  %v4533 = vadd.f32 %v4531, %v4532
  %v4534 = vsel %vm4458, %v4417, 0.0
  %v4535 = vadd.f32 %v4533, %v4534
  %v4536 = vsel %vm4458, %v4418, 0.0
  %v4537 = vadd.f32 %v4535, %v4536
  %v4538 = vsel %vm4458, %v4419, 0.0
  %v4539 = vadd.f32 %v4537, %v4538
  %v4540 = vsel %vm4458, %v4420, 0.0
  %v4541 = vadd.f32 %v4539, %v4540
  %v4542 = vsel %vm4458, %v4421, 0.0
  %v4543 = vadd.f32 %v4541, %v4542
  %v4544 = vsel %vm4458, %v4422, 0.0
  %v4545 = vadd.f32 %v4543, %v4544
  %v4546 = vsel %vm4458, %v4423, 0.0
  %v4547 = vadd.f32 %v4545, %v4546
  %v4548 = vsel %vm4458, %v4424, 0.0
  %v4549 = vadd.f32 %v4547, %v4548
  %v4550 = vsel %vm4458, %v4425, 0.0
  %v4551 = vadd.f32 %v4549, %v4550
  %v4552 = vsel %vm4458, %v4426, 0.0
  %v4553 = vadd.f32 %v4551, %v4552
  %v4554 = vsel %vm4458, %v4427, 0.0
  %v4555 = vadd.f32 %v4553, %v4554
  %v4556 = vsel %vm4458, %v4428, 0.0
  %v4557 = vadd.f32 %v4555, %v4556
  %v4558 = vsel %vm4458, %v4429, 0.0
  %v4559 = vadd.f32 %v4557, %v4558
  %v4560 = vsel %vm4458, %v4430, 0.0
  %v4561 = vadd.f32 %v4559, %v4560
  %v4562 = vsel %vm4458, %v4431, 0.0
  %v4563 = vadd.f32 %v4561, %v4562
  %v4564 = vsel %vm4458, %v4432, 0.0
  %v4565 = vadd.f32 %v4563, %v4564
  %v4566 = vsel %vm4458, %v4433, 0.0
  %v4567 = vadd.f32 %v4565, %v4566
  %v4568 = vsel %vm4458, %v4434, 0.0
  %v4569 = vadd.f32 %v4567, %v4568
  %v4570 = vsel %vm4458, %v4435, 0.0
  %v4571 = vadd.f32 %v4569, %v4570
  %v4572 = vsel %vm4458, %v4436, 0.0
  %v4573 = vadd.f32 %v4571, %v4572
  %v4574 = vsel %vm4458, %v4437, 0.0
  %v4575 = vadd.f32 %v4573, %v4574
  %v4576 = vsel %vm4458, %v4438, 0.0
  %v4577 = vadd.f32 %v4575, %v4576
  %v4578 = vsel %vm4458, %v4439, 0.0
  %v4579 = vadd.f32 %v4577, %v4578
  %v4580 = vsel %vm4458, %v4440, 0.0
  %v4581 = vadd.f32 %v4579, %v4580
  %v4582 = vsel %vm4458, %v4441, 0.0
  %v4583 = vadd.f32 %v4581, %v4582
  %v4584 = vsel %vm4458, %v4442, 0.0
  %v4585 = vadd.f32 %v4583, %v4584
  %v4586 = vsel %vm4458, %v4443, 0.0
  %v4587 = vadd.f32 %v4585, %v4586
  %v4588 = vsel %vm4458, %v4444, 0.0
  %v4589 = vadd.f32 %v4587, %v4588
  %v4590 = vsel %vm4458, %v4445, 0.0
  %v4591 = vadd.f32 %v4589, %v4590
  %v4592 = vsel %vm4458, %v4446, 0.0
  %v4593 = vadd.f32 %v4591, %v4592
  %v4594 = vsel %vm4458, %v4447, 0.0
  %v4595 = vadd.f32 %v4593, %v4594
  %v4596 = vsel %vm4458, %v4448, 0.0
  %v4597 = vadd.f32 %v4595, %v4596
  %v4598 = vsel %vm4458, %v4449, 0.0
  %v4599 = vadd.f32 %v4597, %v4598
  %v4600 = vsel %vm4458, %v4450, 0.0
  %v4601 = vadd.f32 %v4599, %v4600
  %v4602 = vsel %vm4458, %v4451, 0.0
  %v4603 = vadd.f32 %v4601, %v4602
  %v4604 = vsel %vm4458, %v4452, 0.0
  %v4605 = vadd.f32 %v4603, %v4604
  %v4606 = vsel %vm4458, %v4453, 0.0
  %v4607 = vadd.f32 %v4605, %v4606
  %v4608 = vsel %vm4458, %v4454, 0.0
  %v4609 = vadd.f32 %v4607, %v4608
  %v4610 = vsel %vm4458, %v4455, 0.0
  %v4611 = vadd.f32 %v4609, %v4610
  %v4612 = vsel %vm4458, %v4456, 0.0
  %v4613 = vadd.f32 %v4611, %v4612
  %v4614 = vsel %vm4458, %v4457, 0.0
  %v4615 = vadd.f32 %v4613, %v4614
  %v4616 = vrot.slane %v4615, 4
  %v4617 = vadd.f32 %v4615, %v4616
  %v4618 = vrot.slane %v4617, 2
  %v4619 = vadd.f32 %v4617, %v4618
  %v4620 = vrot.slane %v4619, 1
  %v4621 = vadd.f32 %v4619, %v4620
  %v4622 = vrsqrt.pop %v4621
  %v4623 = vmul.f32 %v4622, %v4621
  %v4624 = vmul.f32 %v4623, %v4622
  %v4625 = vmul.f32 0.5, %v4624
  %v4626 = vsub.f32 1.5, %v4625
  %v4627 = vmul.f32 %v4622, %v4626
  %v4628 = vmul.f32 %v4621, %v4627
  %vm4629 = vcmp.eq.f32.partialorder %v4621, inf
  %v4630 = vsel %vm4629, %v4621, %v4628
  %vm4631 = vcmp.eq.f32.partialorder %v4621, 0.0
  %v4632 = vand.u32 %v4621, 2147483648
  %v4633 = vsel %vm4631, %v4632, %v4630
  %vm4634 = vcmask 57344
  %4635 = vst.msk [vmem:[%s7] sm:$0x1] %vm4634, %v4633
  // Predicated region
  $region30: #{cnn_rank_forward.1} parent=0 // pred_check
    _
  $region31: #{cnn_rank_forward.1} parent=0 // pred_check_branch
    %4637 = sbr.rel (0) target = $region33
  $region32: #{cnn_rank_forward.1} parent=0 // pred_region
    _
  $region33: #{cnn_rank_forward.1} parent=0 // pred_fallthru
    _
  // Predicated region
  $region34: #{cnn_rank_forward.1} parent=0 // pred_check
    _
  $region35: #{cnn_rank_forward.1} parent=0 // pred_check_branch
    %4639 = sbr.rel (0) target = $region37
  $region36: #{cnn_rank_forward.1} parent=0 // pred_region
    _
  $region37: #{cnn_rank_forward.1} parent=0 // pred_fallthru
    _

</llo_original>
